<compile_context>
chip_gen: v7x
topology: tpu7x:2x2x1
jax: 0.10.0
libtpu: 0.0.40
codegen_flags: <defaults>
</compile_context>

<pallas_src>
import functools

import numpy as np
import jax
import jax.numpy as jnp
from jax import lax
from jax.experimental import pallas as pl
from jax.experimental.pallas import tpu as pltpu

EPS = 1e-5
LANES = 128


def _round_up(x, m):
    return ((x + m - 1) // m) * m


# --------------------------------------------------------------------------
# In-kernel helpers (values only; everything is 2-D f32,
# layout = (spatial rows, image-major x channel lanes)).
# --------------------------------------------------------------------------
def _tanh_bn(pre, bgb, *, n, c):
    """bias + tanh + BatchNorm2d (training-mode batch stats).

    pre: (rows, n*c [+ zero-padded lanes]); bgb: (8, same) packed params,
    rows [0]=bias, [1]=gamma, [2]=beta (already tiled over images, zero pads).
    Stats are over all rows AND all n image lane blocks = N*H*W positions per
    channel, biased variance (matches nn.BatchNorm2d forward in train mode).
    BN folds to a single per-channel affine via one-pass sum / sum-of-squares
    (safe here because tanh bounds the input).
    """
    bias, gamma, beta = bgb[0:1, :], bgb[1:2, :], bgb[2:3, :]
    y = jnp.tanh(pre + bias)
    rows, ncp = y.shape
    s1 = jnp.sum(y, axis=0, keepdims=True)                 # (1, ncp)
    s2 = jnp.sum(y * y, axis=0, keepdims=True)
    # Reduce the per-(image, channel) sums over the image lane blocks.
    s1c, s2c = s1[:, 0:c], s2[:, 0:c]
    for b in range(1, n):
        s1c = s1c + s1[:, b * c:(b + 1) * c]
        s2c = s2c + s2[:, b * c:(b + 1) * c]
    cnt = float(n * rows)
    mean_c = s1c / cnt
    var_c = s2c / cnt - mean_c * mean_c
    # Broadcast per-channel stats back over the image blocks (+ zero pad).
    pad = ncp - n * c
    pieces_m, pieces_v = [mean_c] * n, [var_c] * n
    if pad:
        pieces_m.append(jnp.zeros((1, pad), jnp.float32))
        pieces_v.append(jnp.zeros((1, pad), jnp.float32))
    mean = jnp.concatenate(pieces_m, axis=1) if (n > 1 or pad) else mean_c
    var = jnp.concatenate(pieces_v, axis=1) if (n > 1 or pad) else var_c
    scale = gamma * lax.rsqrt(var + EPS)                   # pad lanes: gamma=0 -> 0
    shift = beta - mean * scale                            # pad lanes: 0
    return y * scale + shift


def _strided_conv(z_prev, g, w_bd, *, m_out, k_block):
    """3x3 / stride-2 / pad-1 conv for ALL images at once, MXU only.

    z_prev: (m_in, n*c_in)         activations, image-major channel lanes.
    g:      (9*m_out, m_in)        0/1 patch selection (tap-major rows;
                                    all-zero rows encode the zero padding).
    w_bd:   (9*k_block, cols_out)  one row block per tap, each block-diagonal
                                    over the n images; k_block = n*c_in.
    Returns (m_out, cols_out) pre-activation (no bias).
    """
    pat = jnp.dot(g, z_prev, preferred_element_type=jnp.float32)
    acc = None
    for t in range(9):
        contrib = jnp.dot(pat[t * m_out:(t + 1) * m_out, :],
                          w_bd[t * k_block:(t + 1) * k_block, :],
                          preferred_element_type=jnp.float32)
        acc = contrib if acc is None else acc + contrib
    return acc


def _fused_encoder_kernel(p1_ref, w1_ref, bgb1_ref,
                          g2_ref, w2_ref, bgb2_ref,
                          g3_ref, w3_ref, bgb3_ref,
                          o_ref, *, n, c1, c2, c3, m2, m3):
    f32 = jnp.float32
    # ---- layer 1: conv1 (host im2col, lane-dense K) -> tanh -> BN ----------
    pre1 = jnp.dot(p1_ref[...], w1_ref[...], preferred_element_type=f32)
    z1 = _tanh_bn(pre1, bgb1_ref[...], n=n, c=c1)          # (m1, n*c1)

    # ---- layer 2: stride-2 conv -> tanh -> BN (all VMEM resident) ----------
    pre2 = _strided_conv(z1, g2_ref[...].astype(f32), w2_ref[...],
                         m_out=m2, k_block=n * c1)
    z2 = _tanh_bn(pre2, bgb2_ref[...], n=n, c=c2)          # (m2, n*c2)

    # ---- layer 3: stride-2 conv -> tanh -> BN --------------------------------
    pre3 = _strided_conv(z2, g3_ref[...].astype(f32), w3_ref[...],
                         m_out=m3, k_block=n * c2)
    z3 = _tanh_bn(pre3, bgb3_ref[...], n=n, c=c3)          # (m3, ncp3)

    # ---- single unmasked lane-dense output store -----------------------------
    o_ref[...] = z3


# --------------------------------------------------------------------------
# Host-side constant construction & parameter packing.
# --------------------------------------------------------------------------
@functools.lru_cache(maxsize=None)
def _patch_select_matrix(h_in, w_in, h_out, w_out, stride):
    """(9*h_out*w_out, h_in*w_in) 0/1 selection matrix for a 3x3/pad=1 conv.
    Row (t, p) selects the input pixel feeding tap t=(kh,kw) of output pixel
    p; out-of-range taps are all-zero rows (== zero padding).  Stored bf16
    (0/1 is exact) to halve the DMA/HBM bytes of the largest operand."""
    m_in, m_out = h_in * w_in, h_out * w_out
    g = np.zeros((9 * m_out, m_in), np.float32)
    for kh in range(3):
        for kw in range(3):
            t = kh * 3 + kw
            for ph in range(h_out):
                ih = stride * ph + kh - 1
                if not (0 <= ih < h_in):
                    continue
                for pw in range(w_out):
                    iw = stride * pw + kw - 1
                    if not (0 <= iw < w_in):
                        continue
                    g[t * m_out + ph * w_out + pw, ih * w_in + iw] = 1.0
    return g.astype(jnp.bfloat16)


def _im2col_layer1(x_nhwc, k_pad):
    """(N,H,W,Cin) -> (H*W, N*9*Cin) patches, columns ordered (image, tap,
    cin), zero padded on the lane axis to k_pad (zeros are inert in the dot)."""
    n, h, w, cin = x_nhwc.shape
    xp = jnp.pad(x_nhwc, ((0, 0), (1, 1), (1, 1), (0, 0)))
    taps = [xp[:, kh:kh + h, kw:kw + w, :] for kh in range(3) for kw in range(3)]
    p = jnp.stack(taps, axis=3)                            # (n, h, w, 9, cin)
    p = jnp.transpose(p, (1, 2, 0, 3, 4)).reshape(h * w, n * 9 * cin)
    if k_pad > n * 9 * cin:
        p = jnp.pad(p, ((0, 0), (0, k_pad - n * 9 * cin)))
    return p.astype(jnp.float32)


def _pack_w1(w_oihw, n, k_pad):
    """conv1 weight (Cout,Cin,3,3) -> (k_pad, n*Cout), block-diag over images."""
    c_out, c_in = w_oihw.shape[0], w_oihw.shape[1]
    wmat = jnp.transpose(w_oihw, (2, 3, 1, 0)).reshape(9 * c_in, c_out)
    wbd = jnp.kron(jnp.eye(n, dtype=jnp.float32), wmat.astype(jnp.float32))
    return jnp.pad(wbd, ((0, k_pad - n * 9 * c_in), (0, 0)))


def _pack_w_strided(w_oihw, n, cols_out):
    """conv2/3 weight (Cout,Cin,3,3) -> (9*n*Cin, cols_out): one row block per
    tap, each block-diagonal over images; columns zero padded to cols_out."""
    c_out, c_in = w_oihw.shape[0], w_oihw.shape[1]
    eye = jnp.eye(n, dtype=jnp.float32)
    blocks = [jnp.kron(eye, w_oihw[:, :, kh, kw].T.astype(jnp.float32))
              for kh in range(3) for kw in range(3)]
    wbd = jnp.concatenate(blocks, axis=0)                  # (9*n*Cin, n*Cout)
    if cols_out > n * c_out:
        wbd = jnp.pad(wbd, ((0, 0), (0, cols_out - n * c_out)))
    return wbd


def _pack_bgb(bias, gamma, beta, n, cols):
    """bias/gamma/beta tiled over images into one (8, cols) operand
    (rows 0..2; pad lanes stay zero so padded output lanes are exactly 0)."""
    c = bias.shape[0]
    out = jnp.zeros((8, cols), jnp.float32)
    out = out.at[0, :n * c].set(jnp.tile(bias.astype(jnp.float32), n))
    out = out.at[1, :n * c].set(jnp.tile(gamma.astype(jnp.float32), n))
    out = out.at[2, :n * c].set(jnp.tile(beta.astype(jnp.float32), n))
    return out


# --------------------------------------------------------------------------
# Forward pass (NCHW in / NCHW out), one fused pallas_call, jitted so the
# gather matrices / packed weights become baked constants.
# --------------------------------------------------------------------------
@jax.jit
def cnn_encoder_forward(params, x_nchw):
    cw1, cb1 = params["conv1"]; bg1, bb1 = params["bn1"]
    cw2, cb2 = params["conv2"]; bg2, bb2 = params["bn2"]
    cw3, cb3 = params["conv3"]; bg3, bb3 = params["bn3"]

    cin = cw1.shape[1]
    c1, c2, c3 = cw1.shape[0], cw2.shape[0], cw3.shape[0]

    x = jnp.transpose(x_nchw, (0, 2, 3, 1)).astype(jnp.float32)   # NHWC
    n, h1, w1, _ = x.shape
    h2, w2 = (h1 - 1) // 2 + 1, (w1 - 1) // 2 + 1          # k=3, s=2, p=1
    h3, w3 = (h2 - 1) // 2 + 1, (w2 - 1) // 2 + 1
    m1, m2, m3 = h1 * w1, h2 * w2, h3 * w3

    k1 = _round_up(n * 9 * cin, LANES)      # lane-dense layer-1 K
    ncp3 = _round_up(n * c3, LANES)         # lane-dense output store

    operands = (
        _im2col_layer1(x, k1),
        _pack_w1(cw1, n, k1),
        _pack_bgb(cb1, bg1, bb1, n, n * c1),
        jnp.asarray(_patch_select_matrix(h1, w1, h2, w2, 2)),
        _pack_w_strided(cw2, n, n * c2),
        _pack_bgb(cb2, bg2, bb2, n, n * c2),
        jnp.asarray(_patch_select_matrix(h2, w2, h3, w3, 2)),
        _pack_w_strided(cw3, n, ncp3),
        _pack_bgb(cb3, bg3, bb3, n, ncp3),
    )

    kernel = functools.partial(_fused_encoder_kernel, n=n, c1=c1, c2=c2, c3=c3,
                               m2=m2, m3=m3)
    out = pl.pallas_call(
        kernel,
        out_shape=jax.ShapeDtypeStruct((m3, ncp3), jnp.float32),
        in_specs=[pl.BlockSpec(op.shape, lambda: (0, 0)) for op in operands],
        out_specs=pl.BlockSpec((m3, ncp3), lambda: (0, 0)),
        compiler_params=pltpu.CompilerParams(vmem_limit_bytes=32 * 1024 * 1024),
    )(*operands)

    out = out[:, :n * c3].reshape(m3, n, c3)                # drop zero lanes
    out = jnp.transpose(out, (1, 2, 0)).reshape(n, c3, h3, w3)
    return out                                              # NCHW


# --------------------------------------------------------------------------
# Parameter init (PyTorch-like) and demo.
# --------------------------------------------------------------------------
def init_params(key, in_channels=1, latent_channels=64):
    ks = jax.random.split(key, 6)

    def conv_init(kw, kb, cout, cin):
        fan_in = cin * 9
        bound = 1.0 / jnp.sqrt(fan_in)
        w = jax.random.uniform(kw, (cout, cin, 3, 3), jnp.float32, -bound, bound)
        b = jax.random.uniform(kb, (cout,), jnp.float32, -bound, bound)
        return w, b

    w1, b1 = conv_init(ks[0], ks[1], 32, in_channels)
    w2, b2 = conv_init(ks[2], ks[3], 64, 32)
    w3, b3 = conv_init(ks[4], ks[5], latent_channels, 64)
    return {
        "conv1": (w1, b1), "bn1": (jnp.ones((32,)), jnp.zeros((32,))),
        "conv2": (w2, b2), "bn2": (jnp.ones((64,)), jnp.zeros((64,))),
        "conv3": (w3, b3), "bn3": (jnp.ones((latent_channels,)),
                                   jnp.zeros((latent_channels,))),
    }


if __name__ == "__main__":
    key = jax.random.PRNGKey(0)
    k_x, k_p = jax.random.split(key)
    x = jax.random.normal(k_x, (2, 1, 16, 16), dtype=jnp.float32)
    params = init_params(k_p, in_channels=1, latent_channels=64)

    out = jax.block_until_ready(cnn_encoder_forward(params, x))
    assert out.shape == (2, 64, 4, 4), out.shape
    assert bool(jnp.all(jnp.isfinite(out)))
    print("KERNEL_OK")
</pallas_src>

<mosaic_0001>
module attributes {stable_mosaic.version = 11 : i64} {
  func.func @_fused_encoder_kernel(%arg0: memref<256x128xf32, #tpu.memory_space<vmem>>, %arg1: memref<128x64xf32, #tpu.memory_space<vmem>>, %arg2: memref<8x64xf32, #tpu.memory_space<vmem>>, %arg3: memref<576x256xbf16, #tpu.memory_space<vmem>>, %arg4: memref<576x128xf32, #tpu.memory_space<vmem>>, %arg5: memref<8x128xf32, #tpu.memory_space<vmem>>, %arg6: memref<144x64xbf16, #tpu.memory_space<vmem>>, %arg7: memref<1152x128xf32, #tpu.memory_space<vmem>>, %arg8: memref<8x128xf32, #tpu.memory_space<vmem>>, %arg9: memref<16x128xf32, #tpu.memory_space<vmem>>) attributes {dimension_semantics = [], scalar_prefetch = 0 : i64, scratch_operands = 0 : i64, tpu.core_type = #tpu.core_type<tc>} {
    %c0 = arith.constant 0 : index
    %c0_0 = arith.constant 0 : index
    %0 = vector.load %arg0[%c0, %c0_0] : memref<256x128xf32, #tpu.memory_space<vmem>>, vector<256x128xf32>
    %c0_1 = arith.constant 0 : index
    %c0_2 = arith.constant 0 : index
    %1 = vector.load %arg1[%c0_1, %c0_2] : memref<128x64xf32, #tpu.memory_space<vmem>>, vector<128x64xf32>
    %cst = arith.constant dense<0.000000e+00> : vector<256x64xf32>
    %2 = tpu.matmul %0, %1, %cst {dimension_numbers = #tpu.dot_dimension_numbers<[1], [0], [0], [1], [0, 0, 1, 1], [], []>} : vector<256x128xf32>, vector<128x64xf32>, vector<256x64xf32> -> vector<256x64xf32>
    %c0_3 = arith.constant 0 : index
    %c0_4 = arith.constant 0 : index
    %3 = vector.load %arg2[%c0_3, %c0_4] : memref<8x64xf32, #tpu.memory_space<vmem>>, vector<8x64xf32>
    %4 = vector.extract_strided_slice %3 {offsets = [0, 0], sizes = [1, 64], strides = [1, 1]} : vector<8x64xf32> to vector<1x64xf32>
    %5 = vector.extract_strided_slice %3 {offsets = [1, 0], sizes = [1, 64], strides = [1, 1]} : vector<8x64xf32> to vector<1x64xf32>
    %6 = vector.extract_strided_slice %3 {offsets = [2, 0], sizes = [1, 64], strides = [1, 1]} : vector<8x64xf32> to vector<1x64xf32>
    %7 = vector.broadcast %4 : vector<1x64xf32> to vector<256x64xf32>
    %8 = arith.addf %2, %7 : vector<256x64xf32>
    %9 = math.tanh %8 : vector<256x64xf32>
    %cst_5 = arith.constant dense<0.000000e+00> : vector<64xf32>
    %10 = vector.multi_reduction <add>, %9, %cst_5 [0] : vector<256x64xf32> to vector<64xf32>
    %11 = vector.shape_cast %10 : vector<64xf32> to vector<1x64xf32>
    %12 = arith.mulf %9, %9 : vector<256x64xf32>
    %cst_6 = arith.constant dense<0.000000e+00> : vector<64xf32>
    %13 = vector.multi_reduction <add>, %12, %cst_6 [0] : vector<256x64xf32> to vector<64xf32>
    %14 = vector.shape_cast %13 : vector<64xf32> to vector<1x64xf32>
    %15 = vector.extract_strided_slice %11 {offsets = [0, 0], sizes = [1, 32], strides = [1, 1]} : vector<1x64xf32> to vector<1x32xf32>
    %16 = vector.extract_strided_slice %14 {offsets = [0, 0], sizes = [1, 32], strides = [1, 1]} : vector<1x64xf32> to vector<1x32xf32>
    %17 = vector.extract_strided_slice %11 {offsets = [0, 32], sizes = [1, 32], strides = [1, 1]} : vector<1x64xf32> to vector<1x32xf32>
    %18 = arith.addf %15, %17 : vector<1x32xf32>
    %19 = vector.extract_strided_slice %14 {offsets = [0, 32], sizes = [1, 32], strides = [1, 1]} : vector<1x64xf32> to vector<1x32xf32>
    %20 = arith.addf %16, %19 : vector<1x32xf32>
    %cst_7 = arith.constant 5.120000e+02 : f32
    %21 = vector.broadcast %cst_7 : f32 to vector<1x32xf32>
    %22 = arith.divf %18, %21 : vector<1x32xf32>
    %cst_8 = arith.constant 5.120000e+02 : f32
    %23 = vector.broadcast %cst_8 : f32 to vector<1x32xf32>
    %24 = arith.divf %20, %23 : vector<1x32xf32>
    %25 = arith.mulf %22, %22 : vector<1x32xf32>
    %26 = arith.subf %24, %25 : vector<1x32xf32>
    %27 = tpu.concatenate %22, %22 in 1 : vector<1x32xf32>, vector<1x32xf32> -> vector<1x64xf32>
    %28 = tpu.concatenate %26, %26 in 1 : vector<1x32xf32>, vector<1x32xf32> -> vector<1x64xf32>
    %cst_9 = arith.constant 9.99999974E-6 : f32
    %29 = vector.broadcast %cst_9 : f32 to vector<1x64xf32>
    %30 = arith.addf %28, %29 : vector<1x64xf32>
    %31 = math.rsqrt %30 : vector<1x64xf32>
    %32 = arith.mulf %5, %31 : vector<1x64xf32>
    %33 = arith.mulf %27, %32 : vector<1x64xf32>
    %34 = arith.subf %6, %33 : vector<1x64xf32>
    %35 = vector.broadcast %32 : vector<1x64xf32> to vector<256x64xf32>
    %36 = arith.mulf %9, %35 : vector<256x64xf32>
    %37 = vector.broadcast %34 : vector<1x64xf32> to vector<256x64xf32>
    %38 = arith.addf %36, %37 : vector<256x64xf32>
    %c0_10 = arith.constant 0 : index
    %c0_11 = arith.constant 0 : index
    %39 = vector.load %arg3[%c0_10, %c0_11] : memref<576x256xbf16, #tpu.memory_space<vmem>>, vector<576x256xbf16>
    %40 = arith.extf %39 : vector<576x256xbf16> to vector<576x256xf32>
    %c0_12 = arith.constant 0 : index
    %c0_13 = arith.constant 0 : index
    %41 = vector.load %arg4[%c0_12, %c0_13] : memref<576x128xf32, #tpu.memory_space<vmem>>, vector<576x128xf32>
    %cst_14 = arith.constant dense<0.000000e+00> : vector<576x64xf32>
    %42 = tpu.matmul %40, %38, %cst_14 {dimension_numbers = #tpu.dot_dimension_numbers<[1], [0], [0], [1], [0, 0, 1, 1], [], []>} : vector<576x256xf32>, vector<256x64xf32>, vector<576x64xf32> -> vector<576x64xf32>
    %43 = vector.extract_strided_slice %42 {offsets = [0, 0], sizes = [64, 64], strides = [1, 1]} : vector<576x64xf32> to vector<64x64xf32>
    %44 = vector.extract_strided_slice %41 {offsets = [0, 0], sizes = [64, 128], strides = [1, 1]} : vector<576x128xf32> to vector<64x128xf32>
    %cst_15 = arith.constant dense<0.000000e+00> : vector<64x128xf32>
    %45 = tpu.matmul %43, %44, %cst_15 {dimension_numbers = #tpu.dot_dimension_numbers<[1], [0], [0], [1], [0, 0, 1, 1], [], []>} : vector<64x64xf32>, vector<64x128xf32>, vector<64x128xf32> -> vector<64x128xf32>
    %46 = vector.extract_strided_slice %42 {offsets = [64, 0], sizes = [64, 64], strides = [1, 1]} : vector<576x64xf32> to vector<64x64xf32>
    %47 = vector.extract_strided_slice %41 {offsets = [64, 0], sizes = [64, 128], strides = [1, 1]} : vector<576x128xf32> to vector<64x128xf32>
    %cst_16 = arith.constant dense<0.000000e+00> : vector<64x128xf32>
    %48 = tpu.matmul %46, %47, %cst_16 {dimension_numbers = #tpu.dot_dimension_numbers<[1], [0], [0], [1], [0, 0, 1, 1], [], []>} : vector<64x64xf32>, vector<64x128xf32>, vector<64x128xf32> -> vector<64x128xf32>
    %49 = arith.addf %45, %48 : vector<64x128xf32>
    %50 = vector.extract_strided_slice %42 {offsets = [128, 0], sizes = [64, 64], strides = [1, 1]} : vector<576x64xf32> to vector<64x64xf32>
    %51 = vector.extract_strided_slice %41 {offsets = [128, 0], sizes = [64, 128], strides = [1, 1]} : vector<576x128xf32> to vector<64x128xf32>
    %cst_17 = arith.constant dense<0.000000e+00> : vector<64x128xf32>
    %52 = tpu.matmul %50, %51, %cst_17 {dimension_numbers = #tpu.dot_dimension_numbers<[1], [0], [0], [1], [0, 0, 1, 1], [], []>} : vector<64x64xf32>, vector<64x128xf32>, vector<64x128xf32> -> vector<64x128xf32>
    %53 = arith.addf %49, %52 : vector<64x128xf32>
    %54 = vector.extract_strided_slice %42 {offsets = [192, 0], sizes = [64, 64], strides = [1, 1]} : vector<576x64xf32> to vector<64x64xf32>
    %55 = vector.extract_strided_slice %41 {offsets = [192, 0], sizes = [64, 128], strides = [1, 1]} : vector<576x128xf32> to vector<64x128xf32>
    %cst_18 = arith.constant dense<0.000000e+00> : vector<64x128xf32>
    %56 = tpu.matmul %54, %55, %cst_18 {dimension_numbers = #tpu.dot_dimension_numbers<[1], [0], [0], [1], [0, 0, 1, 1], [], []>} : vector<64x64xf32>, vector<64x128xf32>, vector<64x128xf32> -> vector<64x128xf32>
    %57 = arith.addf %53, %56 : vector<64x128xf32>
    %58 = vector.extract_strided_slice %42 {offsets = [256, 0], sizes = [64, 64], strides = [1, 1]} : vector<576x64xf32> to vector<64x64xf32>
    %59 = vector.extract_strided_slice %41 {offsets = [256, 0], sizes = [64, 128], strides = [1, 1]} : vector<576x128xf32> to vector<64x128xf32>
    %cst_19 = arith.constant dense<0.000000e+00> : vector<64x128xf32>
    %60 = tpu.matmul %58, %59, %cst_19 {dimension_numbers = #tpu.dot_dimension_numbers<[1], [0], [0], [1], [0, 0, 1, 1], [], []>} : vector<64x64xf32>, vector<64x128xf32>, vector<64x128xf32> -> vector<64x128xf32>
    %61 = arith.addf %57, %60 : vector<64x128xf32>
    %62 = vector.extract_strided_slice %42 {offsets = [320, 0], sizes = [64, 64], strides = [1, 1]} : vector<576x64xf32> to vector<64x64xf32>
    %63 = vector.extract_strided_slice %41 {offsets = [320, 0], sizes = [64, 128], strides = [1, 1]} : vector<576x128xf32> to vector<64x128xf32>
    %cst_20 = arith.constant dense<0.000000e+00> : vector<64x128xf32>
    %64 = tpu.matmul %62, %63, %cst_20 {dimension_numbers = #tpu.dot_dimension_numbers<[1], [0], [0], [1], [0, 0, 1, 1], [], []>} : vector<64x64xf32>, vector<64x128xf32>, vector<64x128xf32> -> vector<64x128xf32>
    %65 = arith.addf %61, %64 : vector<64x128xf32>
    %66 = vector.extract_strided_slice %42 {offsets = [384, 0], sizes = [64, 64], strides = [1, 1]} : vector<576x64xf32> to vector<64x64xf32>
    %67 = vector.extract_strided_slice %41 {offsets = [384, 0], sizes = [64, 128], strides = [1, 1]} : vector<576x128xf32> to vector<64x128xf32>
    %cst_21 = arith.constant dense<0.000000e+00> : vector<64x128xf32>
    %68 = tpu.matmul %66, %67, %cst_21 {dimension_numbers = #tpu.dot_dimension_numbers<[1], [0], [0], [1], [0, 0, 1, 1], [], []>} : vector<64x64xf32>, vector<64x128xf32>, vector<64x128xf32> -> vector<64x128xf32>
    %69 = arith.addf %65, %68 : vector<64x128xf32>
    %70 = vector.extract_strided_slice %42 {offsets = [448, 0], sizes = [64, 64], strides = [1, 1]} : vector<576x64xf32> to vector<64x64xf32>
    %71 = vector.extract_strided_slice %41 {offsets = [448, 0], sizes = [64, 128], strides = [1, 1]} : vector<576x128xf32> to vector<64x128xf32>
    %cst_22 = arith.constant dense<0.000000e+00> : vector<64x128xf32>
    %72 = tpu.matmul %70, %71, %cst_22 {dimension_numbers = #tpu.dot_dimension_numbers<[1], [0], [0], [1], [0, 0, 1, 1], [], []>} : vector<64x64xf32>, vector<64x128xf32>, vector<64x128xf32> -> vector<64x128xf32>
    %73 = arith.addf %69, %72 : vector<64x128xf32>
    %74 = vector.extract_strided_slice %42 {offsets = [512, 0], sizes = [64, 64], strides = [1, 1]} : vector<576x64xf32> to vector<64x64xf32>
    %75 = vector.extract_strided_slice %41 {offsets = [512, 0], sizes = [64, 128], strides = [1, 1]} : vector<576x128xf32> to vector<64x128xf32>
    %cst_23 = arith.constant dense<0.000000e+00> : vector<64x128xf32>
    %76 = tpu.matmul %74, %75, %cst_23 {dimension_numbers = #tpu.dot_dimension_numbers<[1], [0], [0], [1], [0, 0, 1, 1], [], []>} : vector<64x64xf32>, vector<64x128xf32>, vector<64x128xf32> -> vector<64x128xf32>
    %77 = arith.addf %73, %76 : vector<64x128xf32>
    %c0_24 = arith.constant 0 : index
    %c0_25 = arith.constant 0 : index
    %78 = vector.load %arg5[%c0_24, %c0_25] : memref<8x128xf32, #tpu.memory_space<vmem>>, vector<8x128xf32>
    %79 = vector.extract_strided_slice %78 {offsets = [0, 0], sizes = [1, 128], strides = [1, 1]} : vector<8x128xf32> to vector<1x128xf32>
    %80 = vector.extract_strided_slice %78 {offsets = [1, 0], sizes = [1, 128], strides = [1, 1]} : vector<8x128xf32> to vector<1x128xf32>
    %81 = vector.extract_strided_slice %78 {offsets = [2, 0], sizes = [1, 128], strides = [1, 1]} : vector<8x128xf32> to vector<1x128xf32>
    %82 = vector.broadcast %79 : vector<1x128xf32> to vector<64x128xf32>
    %83 = arith.addf %77, %82 : vector<64x128xf32>
    %84 = math.tanh %83 : vector<64x128xf32>
    %cst_26 = arith.constant dense<0.000000e+00> : vector<128xf32>
    %85 = vector.multi_reduction <add>, %84, %cst_26 [0] : vector<64x128xf32> to vector<128xf32>
    %86 = vector.shape_cast %85 : vector<128xf32> to vector<1x128xf32>
    %87 = arith.mulf %84, %84 : vector<64x128xf32>
    %cst_27 = arith.constant dense<0.000000e+00> : vector<128xf32>
    %88 = vector.multi_reduction <add>, %87, %cst_27 [0] : vector<64x128xf32> to vector<128xf32>
    %89 = vector.shape_cast %88 : vector<128xf32> to vector<1x128xf32>
    %90 = vector.extract_strided_slice %86 {offsets = [0, 0], sizes = [1, 64], strides = [1, 1]} : vector<1x128xf32> to vector<1x64xf32>
    %91 = vector.extract_strided_slice %89 {offsets = [0, 0], sizes = [1, 64], strides = [1, 1]} : vector<1x128xf32> to vector<1x64xf32>
    %92 = vector.extract_strided_slice %86 {offsets = [0, 64], sizes = [1, 64], strides = [1, 1]} : vector<1x128xf32> to vector<1x64xf32>
    %93 = arith.addf %90, %92 : vector<1x64xf32>
    %94 = vector.extract_strided_slice %89 {offsets = [0, 64], sizes = [1, 64], strides = [1, 1]} : vector<1x128xf32> to vector<1x64xf32>
    %95 = arith.addf %91, %94 : vector<1x64xf32>
    %cst_28 = arith.constant 1.280000e+02 : f32
    %96 = vector.broadcast %cst_28 : f32 to vector<1x64xf32>
    %97 = arith.divf %93, %96 : vector<1x64xf32>
    %cst_29 = arith.constant 1.280000e+02 : f32
    %98 = vector.broadcast %cst_29 : f32 to vector<1x64xf32>
    %99 = arith.divf %95, %98 : vector<1x64xf32>
    %100 = arith.mulf %97, %97 : vector<1x64xf32>
    %101 = arith.subf %99, %100 : vector<1x64xf32>
    %102 = tpu.concatenate %97, %97 in 1 : vector<1x64xf32>, vector<1x64xf32> -> vector<1x128xf32>
    %103 = tpu.concatenate %101, %101 in 1 : vector<1x64xf32>, vector<1x64xf32> -> vector<1x128xf32>
    %cst_30 = arith.constant 9.99999974E-6 : f32
    %104 = vector.broadcast %cst_30 : f32 to vector<1x128xf32>
    %105 = arith.addf %103, %104 : vector<1x128xf32>
    %106 = math.rsqrt %105 : vector<1x128xf32>
    %107 = arith.mulf %80, %106 : vector<1x128xf32>
    %108 = arith.mulf %102, %107 : vector<1x128xf32>
    %109 = arith.subf %81, %108 : vector<1x128xf32>
    %110 = vector.broadcast %107 : vector<1x128xf32> to vector<64x128xf32>
    %111 = arith.mulf %84, %110 : vector<64x128xf32>
    %112 = vector.broadcast %109 : vector<1x128xf32> to vector<64x128xf32>
    %113 = arith.addf %111, %112 : vector<64x128xf32>
    %c0_31 = arith.constant 0 : index
    %c0_32 = arith.constant 0 : index
    %114 = vector.load %arg6[%c0_31, %c0_32] : memref<144x64xbf16, #tpu.memory_space<vmem>>, vector<144x64xbf16>
    %115 = arith.extf %114 : vector<144x64xbf16> to vector<144x64xf32>
    %c0_33 = arith.constant 0 : index
    %c0_34 = arith.constant 0 : index
    %116 = vector.load %arg7[%c0_33, %c0_34] : memref<1152x128xf32, #tpu.memory_space<vmem>>, vector<1152x128xf32>
    %cst_35 = arith.constant dense<0.000000e+00> : vector<144x128xf32>
    %117 = tpu.matmul %115, %113, %cst_35 {dimension_numbers = #tpu.dot_dimension_numbers<[1], [0], [0], [1], [0, 0, 1, 1], [], []>} : vector<144x64xf32>, vector<64x128xf32>, vector<144x128xf32> -> vector<144x128xf32>
    %118 = vector.extract_strided_slice %117 {offsets = [0, 0], sizes = [16, 128], strides = [1, 1]} : vector<144x128xf32> to vector<16x128xf32>
    %119 = vector.extract_strided_slice %116 {offsets = [0, 0], sizes = [128, 128], strides = [1, 1]} : vector<1152x128xf32> to vector<128x128xf32>
    %cst_36 = arith.constant dense<0.000000e+00> : vector<16x128xf32>
    %120 = tpu.matmul %118, %119, %cst_36 {dimension_numbers = #tpu.dot_dimension_numbers<[1], [0], [0], [1], [0, 0, 1, 1], [], []>} : vector<16x128xf32>, vector<128x128xf32>, vector<16x128xf32> -> vector<16x128xf32>
    %121 = vector.extract_strided_slice %117 {offsets = [16, 0], sizes = [16, 128], strides = [1, 1]} : vector<144x128xf32> to vector<16x128xf32>
    %122 = vector.extract_strided_slice %116 {offsets = [128, 0], sizes = [128, 128], strides = [1, 1]} : vector<1152x128xf32> to vector<128x128xf32>
    %cst_37 = arith.constant dense<0.000000e+00> : vector<16x128xf32>
    %123 = tpu.matmul %121, %122, %cst_37 {dimension_numbers = #tpu.dot_dimension_numbers<[1], [0], [0], [1], [0, 0, 1, 1], [], []>} : vector<16x128xf32>, vector<128x128xf32>, vector<16x128xf32> -> vector<16x128xf32>
    %124 = arith.addf %120, %123 : vector<16x128xf32>
    %125 = vector.extract_strided_slice %117 {offsets = [32, 0], sizes = [16, 128], strides = [1, 1]} : vector<144x128xf32> to vector<16x128xf32>
    %126 = vector.extract_strided_slice %116 {offsets = [256, 0], sizes = [128, 128], strides = [1, 1]} : vector<1152x128xf32> to vector<128x128xf32>
    %cst_38 = arith.constant dense<0.000000e+00> : vector<16x128xf32>
    %127 = tpu.matmul %125, %126, %cst_38 {dimension_numbers = #tpu.dot_dimension_numbers<[1], [0], [0], [1], [0, 0, 1, 1], [], []>} : vector<16x128xf32>, vector<128x128xf32>, vector<16x128xf32> -> vector<16x128xf32>
    %128 = arith.addf %124, %127 : vector<16x128xf32>
    %129 = vector.extract_strided_slice %117 {offsets = [48, 0], sizes = [16, 128], strides = [1, 1]} : vector<144x128xf32> to vector<16x128xf32>
    %130 = vector.extract_strided_slice %116 {offsets = [384, 0], sizes = [128, 128], strides = [1, 1]} : vector<1152x128xf32> to vector<128x128xf32>
    %cst_39 = arith.constant dense<0.000000e+00> : vector<16x128xf32>
    %131 = tpu.matmul %129, %130, %cst_39 {dimension_numbers = #tpu.dot_dimension_numbers<[1], [0], [0], [1], [0, 0, 1, 1], [], []>} : vector<16x128xf32>, vector<128x128xf32>, vector<16x128xf32> -> vector<16x128xf32>
    %132 = arith.addf %128, %131 : vector<16x128xf32>
    %133 = vector.extract_strided_slice %117 {offsets = [64, 0], sizes = [16, 128], strides = [1, 1]} : vector<144x128xf32> to vector<16x128xf32>
    %134 = vector.extract_strided_slice %116 {offsets = [512, 0], sizes = [128, 128], strides = [1, 1]} : vector<1152x128xf32> to vector<128x128xf32>
    %cst_40 = arith.constant dense<0.000000e+00> : vector<16x128xf32>
    %135 = tpu.matmul %133, %134, %cst_40 {dimension_numbers = #tpu.dot_dimension_numbers<[1], [0], [0], [1], [0, 0, 1, 1], [], []>} : vector<16x128xf32>, vector<128x128xf32>, vector<16x128xf32> -> vector<16x128xf32>
    %136 = arith.addf %132, %135 : vector<16x128xf32>
    %137 = vector.extract_strided_slice %117 {offsets = [80, 0], sizes = [16, 128], strides = [1, 1]} : vector<144x128xf32> to vector<16x128xf32>
    %138 = vector.extract_strided_slice %116 {offsets = [640, 0], sizes = [128, 128], strides = [1, 1]} : vector<1152x128xf32> to vector<128x128xf32>
    %cst_41 = arith.constant dense<0.000000e+00> : vector<16x128xf32>
    %139 = tpu.matmul %137, %138, %cst_41 {dimension_numbers = #tpu.dot_dimension_numbers<[1], [0], [0], [1], [0, 0, 1, 1], [], []>} : vector<16x128xf32>, vector<128x128xf32>, vector<16x128xf32> -> vector<16x128xf32>
    %140 = arith.addf %136, %139 : vector<16x128xf32>
    %141 = vector.extract_strided_slice %117 {offsets = [96, 0], sizes = [16, 128], strides = [1, 1]} : vector<144x128xf32> to vector<16x128xf32>
    %142 = vector.extract_strided_slice %116 {offsets = [768, 0], sizes = [128, 128], strides = [1, 1]} : vector<1152x128xf32> to vector<128x128xf32>
    %cst_42 = arith.constant dense<0.000000e+00> : vector<16x128xf32>
    %143 = tpu.matmul %141, %142, %cst_42 {dimension_numbers = #tpu.dot_dimension_numbers<[1], [0], [0], [1], [0, 0, 1, 1], [], []>} : vector<16x128xf32>, vector<128x128xf32>, vector<16x128xf32> -> vector<16x128xf32>
    %144 = arith.addf %140, %143 : vector<16x128xf32>
    %145 = vector.extract_strided_slice %117 {offsets = [112, 0], sizes = [16, 128], strides = [1, 1]} : vector<144x128xf32> to vector<16x128xf32>
    %146 = vector.extract_strided_slice %116 {offsets = [896, 0], sizes = [128, 128], strides = [1, 1]} : vector<1152x128xf32> to vector<128x128xf32>
    %cst_43 = arith.constant dense<0.000000e+00> : vector<16x128xf32>
    %147 = tpu.matmul %145, %146, %cst_43 {dimension_numbers = #tpu.dot_dimension_numbers<[1], [0], [0], [1], [0, 0, 1, 1], [], []>} : vector<16x128xf32>, vector<128x128xf32>, vector<16x128xf32> -> vector<16x128xf32>
    %148 = arith.addf %144, %147 : vector<16x128xf32>
    %149 = vector.extract_strided_slice %117 {offsets = [128, 0], sizes = [16, 128], strides = [1, 1]} : vector<144x128xf32> to vector<16x128xf32>
    %150 = vector.extract_strided_slice %116 {offsets = [1024, 0], sizes = [128, 128], strides = [1, 1]} : vector<1152x128xf32> to vector<128x128xf32>
    %cst_44 = arith.constant dense<0.000000e+00> : vector<16x128xf32>
    %151 = tpu.matmul %149, %150, %cst_44 {dimension_numbers = #tpu.dot_dimension_numbers<[1], [0], [0], [1], [0, 0, 1, 1], [], []>} : vector<16x128xf32>, vector<128x128xf32>, vector<16x128xf32> -> vector<16x128xf32>
    %152 = arith.addf %148, %151 : vector<16x128xf32>
    %c0_45 = arith.constant 0 : index
    %c0_46 = arith.constant 0 : index
    %153 = vector.load %arg8[%c0_45, %c0_46] : memref<8x128xf32, #tpu.memory_space<vmem>>, vector<8x128xf32>
    %154 = vector.extract_strided_slice %153 {offsets = [0, 0], sizes = [1, 128], strides = [1, 1]} : vector<8x128xf32> to vector<1x128xf32>
    %155 = vector.extract_strided_slice %153 {offsets = [1, 0], sizes = [1, 128], strides = [1, 1]} : vector<8x128xf32> to vector<1x128xf32>
    %156 = vector.extract_strided_slice %153 {offsets = [2, 0], sizes = [1, 128], strides = [1, 1]} : vector<8x128xf32> to vector<1x128xf32>
    %157 = vector.broadcast %154 : vector<1x128xf32> to vector<16x128xf32>
    %158 = arith.addf %152, %157 : vector<16x128xf32>
    %159 = math.tanh %158 : vector<16x128xf32>
    %cst_47 = arith.constant dense<0.000000e+00> : vector<128xf32>
    %160 = vector.multi_reduction <add>, %159, %cst_47 [0] : vector<16x128xf32> to vector<128xf32>
    %161 = vector.shape_cast %160 : vector<128xf32> to vector<1x128xf32>
    %162 = arith.mulf %159, %159 : vector<16x128xf32>
    %cst_48 = arith.constant dense<0.000000e+00> : vector<128xf32>
    %163 = vector.multi_reduction <add>, %162, %cst_48 [0] : vector<16x128xf32> to vector<128xf32>
    %164 = vector.shape_cast %163 : vector<128xf32> to vector<1x128xf32>
    %165 = vector.extract_strided_slice %161 {offsets = [0, 0], sizes = [1, 64], strides = [1, 1]} : vector<1x128xf32> to vector<1x64xf32>
    %166 = vector.extract_strided_slice %164 {offsets = [0, 0], sizes = [1, 64], strides = [1, 1]} : vector<1x128xf32> to vector<1x64xf32>
    %167 = vector.extract_strided_slice %161 {offsets = [0, 64], sizes = [1, 64], strides = [1, 1]} : vector<1x128xf32> to vector<1x64xf32>
    %168 = arith.addf %165, %167 : vector<1x64xf32>
    %169 = vector.extract_strided_slice %164 {offsets = [0, 64], sizes = [1, 64], strides = [1, 1]} : vector<1x128xf32> to vector<1x64xf32>
    %170 = arith.addf %166, %169 : vector<1x64xf32>
    %cst_49 = arith.constant 3.200000e+01 : f32
    %171 = vector.broadcast %cst_49 : f32 to vector<1x64xf32>
    %172 = arith.divf %168, %171 : vector<1x64xf32>
    %cst_50 = arith.constant 3.200000e+01 : f32
    %173 = vector.broadcast %cst_50 : f32 to vector<1x64xf32>
    %174 = arith.divf %170, %173 : vector<1x64xf32>
    %175 = arith.mulf %172, %172 : vector<1x64xf32>
    %176 = arith.subf %174, %175 : vector<1x64xf32>
    %177 = tpu.concatenate %172, %172 in 1 : vector<1x64xf32>, vector<1x64xf32> -> vector<1x128xf32>
    %178 = tpu.concatenate %176, %176 in 1 : vector<1x64xf32>, vector<1x64xf32> -> vector<1x128xf32>
    %cst_51 = arith.constant 9.99999974E-6 : f32
    %179 = vector.broadcast %cst_51 : f32 to vector<1x128xf32>
    %180 = arith.addf %178, %179 : vector<1x128xf32>
    %181 = math.rsqrt %180 : vector<1x128xf32>
    %182 = arith.mulf %155, %181 : vector<1x128xf32>
    %183 = arith.mulf %177, %182 : vector<1x128xf32>
    %184 = arith.subf %156, %183 : vector<1x128xf32>
    %185 = vector.broadcast %182 : vector<1x128xf32> to vector<16x128xf32>
    %186 = arith.mulf %159, %185 : vector<16x128xf32>
    %187 = vector.broadcast %184 : vector<1x128xf32> to vector<16x128xf32>
    %188 = arith.addf %186, %187 : vector<16x128xf32>
    %c0_52 = arith.constant 0 : index
    %c0_53 = arith.constant 0 : index
    %189 = vector.load %arg9[%c0_52, %c0_53] : memref<16x128xf32, #tpu.memory_space<vmem>>, vector<16x128xf32>
    tpu.vector_store %arg9[%c0_52, %c0_53], %188 {strides = array<i32>} : memref<16x128xf32, #tpu.memory_space<vmem>>, vector<16x128xf32>,
    return
  }
}

</mosaic_0001>

<llo_original>
// kernel: mul.4
$region0: #{mul.4}
  %s0 = inlined_call_operand.vmem [shape: f32[3,3,32], index: 0, kind: input, shape index: {}]
  %s1 = inlined_call_operand.vmem [shape: f32[9,32], index: 1, kind: output, shape index: {}]
  $region1: #{mul.4} parent=0
    #allocation0 [shape = 'u8[12288]{0}', space=vmem, size = 0x3000, scoped, tag = 'scoped mem for input reshape']
    %s3 = sshllo.u32 0, 4
    %s4 = smul.addr 4, 2
    %s5 = scalar_lea.vmem %s0, %s4
    %v6 = vld [vmem:[%s5] sm:%s3]
    %s7 = scalar_lea.vmem [#allocation0], 16
    %8 = vst [vmem:[%s7] sm:%s3] %v6
    %s9 = scalar_lea.vmem %s0, 4
    %v10 = vld [vmem:[%s9] sm:%s3]
    %s11 = scalar_lea.vmem [#allocation0], 8
    %12 = vst [vmem:[%s11] sm:%s3] %v10
    %v13 = vld [vmem:[%s0] sm:%s3]
    %14 = vst [vmem:[#allocation0] sm:%s3] %v13
    %v15 = vld [vmem:[#allocation0] sm:$0x7]
    %vm16 = vcmask 261120
    %17 = vst.msk [vmem:[%s1] sm:$0x7] %vm16, %v15
    %s18 = scalar_lea.vmem [#allocation0], 8
    %v19 = vld [vmem:[%s18] sm:$0x7]
    %vm20 = vcmask 261120
    %s21 = scalar_lea.vmem %s1, 3
    %22 = vst.msk [vmem:[%s21] sm:$0x7] %vm20, %v19
    %s23 = scalar_lea.vmem [#allocation0], 16
    %v24 = vld [vmem:[%s23] sm:$0x7]
    %vm25 = vcmask 261120
    %s26 = scalar_lea.vmem %s1, 6
    %27 = vst.msk [vmem:[%s26] sm:$0x7] %vm25, %v24

// kernel: tile.48
$region0: #{tile.48}
  #allocation0 [shape = 's32[1]{0}', space=sflag, size = 0x4, scoped, tag = 'scoped memory for tile.48']
  %s0 = inlined_call_operand.vmem [shape: f32[32], index: 0, kind: input, shape index: {}]
  %s1 = inlined_call_operand.vmem [shape: f32[2,32], index: 1, kind: output, shape index: {}]
  // Predicated region
  $region2: #{tile.48} parent=0 // pred_check
    _
  $region3: #{tile.48} parent=0 // pred_check_branch
    %3 = sbr.rel (0) target = $region5
  $region4: #{tile.48} parent=0 // pred_region
    _
  $region5: #{tile.48} parent=0 // pred_fallthru
    _
  %v4 = vld [vmem:[%s0] ss:$0 sm:$0xff]
  %5 = vst [vmem:[%s1] sm:$0x3] %v4

// kernel: tile.63
$region0: #{tile.63}
  #allocation0 [shape = 's32[1]{0}', space=sflag, size = 0x4, scoped, tag = 'scoped memory for tile.63']
  %s0 = inlined_call_operand.vmem [shape: f32[64], index: 0, kind: input, shape index: {}]
  %s1 = inlined_call_operand.vmem [shape: f32[2,64], index: 1, kind: output, shape index: {}]
  // Predicated region
  $region2: #{tile.63} parent=0 // pred_check
    _
  $region3: #{tile.63} parent=0 // pred_check_branch
    %3 = sbr.rel (0) target = $region5
  $region4: #{tile.63} parent=0 // pred_region
    _
  $region5: #{tile.63} parent=0 // pred_fallthru
    _
  %v4 = vld [vmem:[%s0] ss:$0 sm:$0xff]
  %5 = vst [vmem:[%s1] sm:$0x3] %v4

// kernel: cnn_encoder_forward.1
$region0: #{cnn_encoder_forward.1}
  #allocation0 [shape = 'u32[]', space=smem, size = 0x4, offset = 0x4, fixed_abs, tag = 'smem constant byte address 0x4 - core index']
  #allocation1 [shape = 'u32[144,128]{1,0:T(1,128)}', space=vmem, size = 0x12000, scoped, tag = 'internal scratch']
  %s0 = inlined_call_operand.vmem [shape: f32[256,128], index: 0, kind: input, shape index: {}]
  %s1 = inlined_call_operand.vmem [shape: f32[128,64], index: 1, kind: input, shape index: {}]
  %s2 = inlined_call_operand.vmem [shape: f32[8,64], index: 2, kind: input, shape index: {}]
  %s3 = inlined_call_operand.vmem [shape: bf16[576,256], index: 3, kind: input, shape index: {}]
  %s4 = inlined_call_operand.vmem [shape: f32[576,128], index: 4, kind: input, shape index: {}]
  %s5 = inlined_call_operand.vmem [shape: f32[8,128], index: 5, kind: input, shape index: {}]
  %s6 = inlined_call_operand.vmem [shape: bf16[144,64], index: 6, kind: input, shape index: {}]
  %s7 = inlined_call_operand.vmem [shape: f32[1152,128], index: 7, kind: input, shape index: {}]
  %s8 = inlined_call_operand.vmem [shape: f32[8,128], index: 8, kind: input, shape index: {}]
  %s9 = inlined_call_operand.vmem [shape: f32[16,128], index: 9, kind: output, shape index: {}]
  %s10 = sld [smem:[#allocation0]]
  $region46: #{cnn_encoder_forward.1} parent=0
    _
  %s12 = ssub.s32 1, %s10
  %s13 = scalar_select 0, %s12, %s10
  // Predicated region
  $region2: #{cnn_encoder_forward.1} parent=0 // pred_check
    _
  $region3: #{cnn_encoder_forward.1} parent=0 // pred_check_branch
    %15 = sbr.rel (0) target = $region5
  $region4: #{cnn_encoder_forward.1} parent=0 // pred_region
    _
  $region5: #{cnn_encoder_forward.1} parent=0 // pred_fallthru
    _
  // Predicated region
  $region6: #{cnn_encoder_forward.1} parent=0 // pred_check
    _
  $region7: #{cnn_encoder_forward.1} parent=0 // pred_check_branch
    %17 = sbr.rel (0) target = $region9
  $region8: #{cnn_encoder_forward.1} parent=0 // pred_region
    _
  $region9: #{cnn_encoder_forward.1} parent=0 // pred_fallthru
    _
  // Predicated region
  $region10: #{cnn_encoder_forward.1} parent=0 // pred_check
    _
  $region11: #{cnn_encoder_forward.1} parent=0 // pred_check_branch
    %19 = sbr.rel (0) target = $region13
  $region12: #{cnn_encoder_forward.1} parent=0 // pred_region
    _
  $region13: #{cnn_encoder_forward.1} parent=0 // pred_fallthru
    _
  // Predicated region
  $region14: #{cnn_encoder_forward.1} parent=0 // pred_check
    _
  $region15: #{cnn_encoder_forward.1} parent=0 // pred_check_branch
    %21 = sbr.rel (0) target = $region17
  $region16: #{cnn_encoder_forward.1} parent=0 // pred_region
    _
  $region17: #{cnn_encoder_forward.1} parent=0 // pred_fallthru
    _
  // Predicated region
  $region18: #{cnn_encoder_forward.1} parent=0 // pred_check
    _
  $region19: #{cnn_encoder_forward.1} parent=0 // pred_check_branch
    %23 = sbr.rel (0) target = $region21
  $region20: #{cnn_encoder_forward.1} parent=0 // pred_region
    _
  $region21: #{cnn_encoder_forward.1} parent=0 // pred_fallthru
    _
  // Predicated region
  $region22: #{cnn_encoder_forward.1} parent=0 // pred_check
    _
  $region23: #{cnn_encoder_forward.1} parent=0 // pred_check_branch
    %25 = sbr.rel (0) target = $region25
  $region24: #{cnn_encoder_forward.1} parent=0 // pred_region
    _
  $region25: #{cnn_encoder_forward.1} parent=0 // pred_fallthru
    _
  // Predicated region
  $region26: #{cnn_encoder_forward.1} parent=0 // pred_check
    _
  $region27: #{cnn_encoder_forward.1} parent=0 // pred_check_branch
    %27 = sbr.rel (0) target = $region29
  $region28: #{cnn_encoder_forward.1} parent=0 // pred_region
    _
  $region29: #{cnn_encoder_forward.1} parent=0 // pred_fallthru
    _
  // Predicated region
  $region30: #{cnn_encoder_forward.1} parent=0 // pred_check
    _
  $region31: #{cnn_encoder_forward.1} parent=0 // pred_check_branch
    %29 = sbr.rel (0) target = $region33
  $region32: #{cnn_encoder_forward.1} parent=0 // pred_region
    _
  $region33: #{cnn_encoder_forward.1} parent=0 // pred_fallthru
    _
  // Predicated region
  $region34: #{cnn_encoder_forward.1} parent=0 // pred_check
    _
  $region35: #{cnn_encoder_forward.1} parent=0 // pred_check_branch
    %31 = sbr.rel (0) target = $region37
  $region36: #{cnn_encoder_forward.1} parent=0 // pred_region
    _
  $region37: #{cnn_encoder_forward.1} parent=0 // pred_fallthru
    _
  %v32 = vld [vmem:[%s0] sm:$0xff]
  %v33 = vld [vmem:[%s0 + $0x8] sm:$0xff]
  %v34 = vld [vmem:[%s0 + $0x10] sm:$0xff]
  %v35 = vld [vmem:[%s0 + $0x18] sm:$0xff]
  %v36 = vld [vmem:[%s0 + $0x20] sm:$0xff]
  %v37 = vld [vmem:[%s0 + $0x28] sm:$0xff]
  %v38 = vld [vmem:[%s0 + $0x30] sm:$0xff]
  %v39 = vld [vmem:[%s0 + $0x38] sm:$0xff]
  %v40 = vld [vmem:[%s0 + $0x40] sm:$0xff]
  %v41 = vld [vmem:[%s0 + $0x48] sm:$0xff]
  %v42 = vld [vmem:[%s0 + $0x50] sm:$0xff]
  %v43 = vld [vmem:[%s0 + $0x58] sm:$0xff]
  %v44 = vld [vmem:[%s0 + $0x60] sm:$0xff]
  %v45 = vld [vmem:[%s0 + $0x68] sm:$0xff]
  %v46 = vld [vmem:[%s0 + $0x70] sm:$0xff]
  %v47 = vld [vmem:[%s0 + $0x78] sm:$0xff]
  %v48 = vld [vmem:[%s0 + $0x80] sm:$0xff]
  %v49 = vld [vmem:[%s0 + $0x88] sm:$0xff]
  %v50 = vld [vmem:[%s0 + $0x90] sm:$0xff]
  %v51 = vld [vmem:[%s0 + $0x98] sm:$0xff]
  %v52 = vld [vmem:[%s0 + $0xa0] sm:$0xff]
  %v53 = vld [vmem:[%s0 + $0xa8] sm:$0xff]
  %v54 = vld [vmem:[%s0 + $0xb0] sm:$0xff]
  %v55 = vld [vmem:[%s0 + $0xb8] sm:$0xff]
  %v56 = vld [vmem:[%s0 + $0xc0] sm:$0xff]
  %v57 = vld [vmem:[%s0 + $0xc8] sm:$0xff]
  %v58 = vld [vmem:[%s0 + $0xd0] sm:$0xff]
  %v59 = vld [vmem:[%s0 + $0xd8] sm:$0xff]
  %v60 = vld [vmem:[%s0 + $0xe0] sm:$0xff]
  %v61 = vld [vmem:[%s0 + $0xe8] sm:$0xff]
  %v62 = vld [vmem:[%s0 + $0xf0] sm:$0xff]
  %v63 = vld [vmem:[%s0 + $0xf8] sm:$0xff]
  %v64 = vld [vmem:[%s1] sm:$0xff]
  %v65 = vld [vmem:[%s1 + $0x8] sm:$0xff]
  %v66 = vld [vmem:[%s1 + $0x10] sm:$0xff]
  %v67 = vld [vmem:[%s1 + $0x18] sm:$0xff]
  %v68 = vld [vmem:[%s1 + $0x20] sm:$0xff]
  %v69 = vld [vmem:[%s1 + $0x28] sm:$0xff]
  %v70 = vld [vmem:[%s1 + $0x30] sm:$0xff]
  %v71 = vld [vmem:[%s1 + $0x38] sm:$0xff]
  %v72 = vld [vmem:[%s1 + $0x40] sm:$0xff]
  %v73 = vld [vmem:[%s1 + $0x48] sm:$0xff]
  %v74 = vld [vmem:[%s1 + $0x50] sm:$0xff]
  %v75 = vld [vmem:[%s1 + $0x58] sm:$0xff]
  %v76 = vld [vmem:[%s1 + $0x60] sm:$0xff]
  %v77 = vld [vmem:[%s1 + $0x68] sm:$0xff]
  %v78 = vld [vmem:[%s1 + $0x70] sm:$0xff]
  %v79 = vld [vmem:[%s1 + $0x78] sm:$0xff]
  %v80 = vld [vmem:[%s2] sm:$0xff]
  %v81 = vlaneseq
  %v82 = vshrl.u32 %v81, 7
  %v83 = vsub.s32 0, %v82
  %v84 = vrot.slane %v80, %v83
  %85 = vmatprep.subr.mxu0 0.0
  %86 = vmatpush1.msra.mxu0 %v64
  %87 = vmatprep.subr.mxu0 0.0
  %88 = vmatpush1.msra.mxu0 %v65
  %89 = vmatprep.subr.mxu0 0.0
  %90 = vmatpush1.msra.mxu0 %v66
  %91 = vmatprep.subr.mxu0 0.0
  %92 = vmatpush1.msra.mxu0 %v67
  %93 = vmatprep.subr.mxu0 0.0
  %94 = vmatpush1.msra.mxu0 %v68
  %95 = vmatprep.subr.mxu0 0.0
  %96 = vmatpush1.msra.mxu0 %v69
  %97 = vmatprep.subr.mxu0 0.0
  %98 = vmatpush1.msra.mxu0 %v70
  %99 = vmatprep.subr.mxu0 0.0
  %100 = vmatpush1.msra.mxu0 %v71
  %101 = vmatprep.subr.mxu0 0.0
  %102 = vmatpush1.msra.mxu0 %v72
  %103 = vmatprep.subr.mxu0 0.0
  %104 = vmatpush1.msra.mxu0 %v73
  %105 = vmatprep.subr.mxu0 0.0
  %106 = vmatpush1.msra.mxu0 %v74
  %107 = vmatprep.subr.mxu0 0.0
  %108 = vmatpush1.msra.mxu0 %v75
  %109 = vmatprep.subr.mxu0 0.0
  %110 = vmatpush1.msra.mxu0 %v76
  %111 = vmatprep.subr.mxu0 0.0
  %112 = vmatpush1.msra.mxu0 %v77
  %113 = vmatprep.subr.mxu0 0.0
  %114 = vmatpush1.msra.mxu0 %v78
  %115 = vmatprep.subr.mxu0 0.0
  %116 = vmatpush1.msra.mxu0 %v79
  %117 = vmatprep.subr.mxu0 0.0
  %118 = vmatpush1.msra.mxu0 0.0
  %119 = vmatprep.subr.mxu0 0.0
  %120 = vmatpush1.msra.mxu0 0.0
  %121 = vmatprep.subr.mxu0 0.0
  %122 = vmatpush1.msra.mxu0 0.0
  %123 = vmatprep.subr.mxu0 0.0
  %124 = vmatpush1.msra.mxu0 0.0
  %125 = vmatprep.subr.mxu0 0.0
  %126 = vmatpush1.msra.mxu0 0.0
  %127 = vmatprep.subr.mxu0 0.0
  %128 = vmatpush1.msra.mxu0 0.0
  %129 = vmatprep.subr.mxu0 0.0
  %130 = vmatpush1.msra.mxu0 0.0
  %131 = vmatprep.subr.mxu0 0.0
  %132 = vmatpush1.msra.mxu0 0.0
  %133 = vmatprep.subr.mxu0 0.0
  %134 = vmatpush1.msra.mxu0 0.0
  %135 = vmatprep.subr.mxu0 0.0
  %136 = vmatpush1.msra.mxu0 0.0
  %137 = vmatprep.subr.mxu0 0.0
  %138 = vmatpush1.msra.mxu0 0.0
  %139 = vmatprep.subr.mxu0 0.0
  %140 = vmatpush1.msra.mxu0 0.0
  %141 = vmatprep.subr.mxu0 0.0
  %142 = vmatpush1.msra.mxu0 0.0
  %143 = vmatprep.subr.mxu0 0.0
  %144 = vmatpush1.msra.mxu0 0.0
  %145 = vmatprep.subr.mxu0 0.0
  %146 = vmatpush1.msra.mxu0 0.0
  %147 = vmatprep.subr.mxu0 0.0
  %148 = vmatpush1.msra.mxu0 0.0
  %149 = vmatprep.mubr.f32.mxu0 0.0
  %150 = vmatmul.mubr.f32.gmra.mrb[0].mxu0 %v32
  %v151 = vpop.f32.mrb[0].mxu0
  %v152 = vadd.f32 %v84, %v151
  %v153 = vpop.f32.mrb[0].mxu0
  %154 = vmatprep.mubr.f32.mxu0 0.0
  %155 = vmatmul.mubr.f32.gmra.mrb[0].mxu0 %v33
  %v156 = vpop.f32.mrb[0].mxu0
  %v157 = vadd.f32 %v84, %v156
  %v158 = vpop.f32.mrb[0].mxu0
  %159 = vmatprep.mubr.f32.mxu0 0.0
  %160 = vmatmul.mubr.f32.gmra.mrb[0].mxu0 %v34
  %v161 = vpop.f32.mrb[0].mxu0
  %v162 = vadd.f32 %v84, %v161
  %v163 = vpop.f32.mrb[0].mxu0
  %164 = vmatprep.mubr.f32.mxu0 0.0
  %165 = vmatmul.mubr.f32.gmra.mrb[0].mxu0 %v35
  %v166 = vpop.f32.mrb[0].mxu0
  %v167 = vadd.f32 %v84, %v166
  %v168 = vpop.f32.mrb[0].mxu0
  %169 = vmatprep.mubr.f32.mxu0 0.0
  %170 = vmatmul.mubr.f32.gmra.mrb[0].mxu0 %v36
  %v171 = vpop.f32.mrb[0].mxu0
  %v172 = vadd.f32 %v84, %v171
  %v173 = vpop.f32.mrb[0].mxu0
  %174 = vmatprep.mubr.f32.mxu0 0.0
  %175 = vmatmul.mubr.f32.gmra.mrb[0].mxu0 %v37
  %v176 = vpop.f32.mrb[0].mxu0
  %v177 = vadd.f32 %v84, %v176
  %v178 = vpop.f32.mrb[0].mxu0
  %179 = vmatprep.mubr.f32.mxu0 0.0
  %180 = vmatmul.mubr.f32.gmra.mrb[0].mxu0 %v38
  %v181 = vpop.f32.mrb[0].mxu0
  %v182 = vadd.f32 %v84, %v181
  %v183 = vpop.f32.mrb[0].mxu0
  %184 = vmatprep.mubr.f32.mxu0 0.0
  %185 = vmatmul.mubr.f32.gmra.mrb[0].mxu0 %v39
  %v186 = vpop.f32.mrb[0].mxu0
  %v187 = vadd.f32 %v84, %v186
  %v188 = vpop.f32.mrb[0].mxu0
  %189 = vmatprep.mubr.f32.mxu0 0.0
  %190 = vmatmul.mubr.f32.gmra.mrb[0].mxu0 %v40
  %v191 = vpop.f32.mrb[0].mxu0
  %v192 = vadd.f32 %v84, %v191
  %v193 = vpop.f32.mrb[0].mxu0
  %194 = vmatprep.mubr.f32.mxu0 0.0
  %195 = vmatmul.mubr.f32.gmra.mrb[0].mxu0 %v41
  %v196 = vpop.f32.mrb[0].mxu0
  %v197 = vadd.f32 %v84, %v196
  %v198 = vpop.f32.mrb[0].mxu0
  %199 = vmatprep.mubr.f32.mxu0 0.0
  %200 = vmatmul.mubr.f32.gmra.mrb[0].mxu0 %v42
  %v201 = vpop.f32.mrb[0].mxu0
  %v202 = vadd.f32 %v84, %v201
  %v203 = vpop.f32.mrb[0].mxu0
  %204 = vmatprep.mubr.f32.mxu0 0.0
  %205 = vmatmul.mubr.f32.gmra.mrb[0].mxu0 %v43
  %v206 = vpop.f32.mrb[0].mxu0
  %v207 = vadd.f32 %v84, %v206
  %v208 = vpop.f32.mrb[0].mxu0
  %209 = vmatprep.mubr.f32.mxu0 0.0
  %210 = vmatmul.mubr.f32.gmra.mrb[0].mxu0 %v44
  %v211 = vpop.f32.mrb[0].mxu0
  %v212 = vadd.f32 %v84, %v211
  %v213 = vpop.f32.mrb[0].mxu0
  %214 = vmatprep.mubr.f32.mxu0 0.0
  %215 = vmatmul.mubr.f32.gmra.mrb[0].mxu0 %v45
  %v216 = vpop.f32.mrb[0].mxu0
  %v217 = vadd.f32 %v84, %v216
  %v218 = vpop.f32.mrb[0].mxu0
  %219 = vmatprep.mubr.f32.mxu0 0.0
  %220 = vmatmul.mubr.f32.gmra.mrb[0].mxu0 %v46
  %v221 = vpop.f32.mrb[0].mxu0
  %v222 = vadd.f32 %v84, %v221
  %v223 = vpop.f32.mrb[0].mxu0
  %224 = vmatprep.mubr.f32.mxu0 0.0
  %225 = vmatmul.mubr.f32.gmra.mrb[0].mxu0 %v47
  %v226 = vpop.f32.mrb[0].mxu0
  %v227 = vadd.f32 %v84, %v226
  %v228 = vpop.f32.mrb[0].mxu0
  %229 = vmatprep.mubr.f32.mxu0 0.0
  %230 = vmatmul.mubr.f32.gmra.mrb[0].mxu0 %v48
  %v231 = vpop.f32.mrb[0].mxu0
  %v232 = vadd.f32 %v84, %v231
  %v233 = vpop.f32.mrb[0].mxu0
  %234 = vmatprep.mubr.f32.mxu0 0.0
  %235 = vmatmul.mubr.f32.gmra.mrb[0].mxu0 %v49
  %v236 = vpop.f32.mrb[0].mxu0
  %v237 = vadd.f32 %v84, %v236
  %v238 = vpop.f32.mrb[0].mxu0
  %239 = vmatprep.mubr.f32.mxu0 0.0
  %240 = vmatmul.mubr.f32.gmra.mrb[0].mxu0 %v50
  %v241 = vpop.f32.mrb[0].mxu0
  %v242 = vadd.f32 %v84, %v241
  %v243 = vpop.f32.mrb[0].mxu0
  %244 = vmatprep.mubr.f32.mxu0 0.0
  %245 = vmatmul.mubr.f32.gmra.mrb[0].mxu0 %v51
  %v246 = vpop.f32.mrb[0].mxu0
  %v247 = vadd.f32 %v84, %v246
  %v248 = vpop.f32.mrb[0].mxu0
  %249 = vmatprep.mubr.f32.mxu0 0.0
  %250 = vmatmul.mubr.f32.gmra.mrb[0].mxu0 %v52
  %v251 = vpop.f32.mrb[0].mxu0
  %v252 = vadd.f32 %v84, %v251
  %v253 = vpop.f32.mrb[0].mxu0
  %254 = vmatprep.mubr.f32.mxu0 0.0
  %255 = vmatmul.mubr.f32.gmra.mrb[0].mxu0 %v53
  %v256 = vpop.f32.mrb[0].mxu0
  %v257 = vadd.f32 %v84, %v256
  %v258 = vpop.f32.mrb[0].mxu0
  %259 = vmatprep.mubr.f32.mxu0 0.0
  %260 = vmatmul.mubr.f32.gmra.mrb[0].mxu0 %v54
  %v261 = vpop.f32.mrb[0].mxu0
  %v262 = vadd.f32 %v84, %v261
  %v263 = vpop.f32.mrb[0].mxu0
  %264 = vmatprep.mubr.f32.mxu0 0.0
  %265 = vmatmul.mubr.f32.gmra.mrb[0].mxu0 %v55
  %v266 = vpop.f32.mrb[0].mxu0
  %v267 = vadd.f32 %v84, %v266
  %v268 = vpop.f32.mrb[0].mxu0
  %269 = vmatprep.mubr.f32.mxu0 0.0
  %270 = vmatmul.mubr.f32.gmra.mrb[0].mxu0 %v56
  %v271 = vpop.f32.mrb[0].mxu0
  %v272 = vadd.f32 %v84, %v271
  %v273 = vpop.f32.mrb[0].mxu0
  %274 = vmatprep.mubr.f32.mxu0 0.0
  %275 = vmatmul.mubr.f32.gmra.mrb[0].mxu0 %v57
  %v276 = vpop.f32.mrb[0].mxu0
  %v277 = vadd.f32 %v84, %v276
  %v278 = vpop.f32.mrb[0].mxu0
  %279 = vmatprep.mubr.f32.mxu0 0.0
  %280 = vmatmul.mubr.f32.gmra.mrb[0].mxu0 %v58
  %v281 = vpop.f32.mrb[0].mxu0
  %v282 = vadd.f32 %v84, %v281
  %v283 = vpop.f32.mrb[0].mxu0
  %284 = vmatprep.mubr.f32.mxu0 0.0
  %285 = vmatmul.mubr.f32.gmra.mrb[0].mxu0 %v59
  %v286 = vpop.f32.mrb[0].mxu0
  %v287 = vadd.f32 %v84, %v286
  %v288 = vpop.f32.mrb[0].mxu0
  %289 = vmatprep.mubr.f32.mxu0 0.0
  %290 = vmatmul.mubr.f32.gmra.mrb[0].mxu0 %v60
  %v291 = vpop.f32.mrb[0].mxu0
  %v292 = vadd.f32 %v84, %v291
  %v293 = vpop.f32.mrb[0].mxu0
  %294 = vmatprep.mubr.f32.mxu0 0.0
  %295 = vmatmul.mubr.f32.gmra.mrb[0].mxu0 %v61
  %v296 = vpop.f32.mrb[0].mxu0
  %v297 = vadd.f32 %v84, %v296
  %v298 = vpop.f32.mrb[0].mxu0
  %299 = vmatprep.mubr.f32.mxu0 0.0
  %300 = vmatmul.mubr.f32.gmra.mrb[0].mxu0 %v62
  %v301 = vpop.f32.mrb[0].mxu0
  %v302 = vadd.f32 %v84, %v301
  %v303 = vpop.f32.mrb[0].mxu0
  %304 = vmatprep.mubr.f32.mxu0 0.0
  %305 = vmatmul.mubr.f32.gmra.mrb[0].mxu0 %v63
  %v306 = vpop.f32.mrb[0].mxu0
  %v307 = vadd.f32 %v84, %v306
  %v308 = vpop.f32.mrb[0].mxu0
  %309 = vdwg.mxu0
  %v310 = vtanh.pop %v152
  %v311 = vtanh.pop %v157
  %v312 = vtanh.pop %v162
  %v313 = vtanh.pop %v167
  %v314 = vtanh.pop %v172
  %v315 = vtanh.pop %v177
  %v316 = vtanh.pop %v182
  %v317 = vtanh.pop %v187
  %v318 = vtanh.pop %v192
  %v319 = vtanh.pop %v197
  %v320 = vtanh.pop %v202
  %v321 = vtanh.pop %v207
  %v322 = vtanh.pop %v212
  %v323 = vtanh.pop %v217
  %v324 = vtanh.pop %v222
  %v325 = vtanh.pop %v227
  %v326 = vtanh.pop %v232
  %v327 = vtanh.pop %v237
  %v328 = vtanh.pop %v242
  %v329 = vtanh.pop %v247
  %v330 = vtanh.pop %v252
  %v331 = vtanh.pop %v257
  %v332 = vtanh.pop %v262
  %v333 = vtanh.pop %v267
  %v334 = vtanh.pop %v272
  %v335 = vtanh.pop %v277
  %v336 = vtanh.pop %v282
  %v337 = vtanh.pop %v287
  %v338 = vtanh.pop %v292
  %v339 = vtanh.pop %v297
  %v340 = vtanh.pop %v302
  %v341 = vtanh.pop %v307
  %vm342 = vcmask 523264
  %v343 = vsel %vm342, %v310, 0.0
  %v344 = vsel %vm342, %v311, 0.0
  %v345 = vadd.f32 %v343, %v344
  %v346 = vsel %vm342, %v312, 0.0
  %v347 = vadd.f32 %v345, %v346
  %v348 = vsel %vm342, %v313, 0.0
  %v349 = vadd.f32 %v347, %v348
  %v350 = vsel %vm342, %v314, 0.0
  %v351 = vadd.f32 %v349, %v350
  %v352 = vsel %vm342, %v315, 0.0
  %v353 = vadd.f32 %v351, %v352
  %v354 = vsel %vm342, %v316, 0.0
  %v355 = vadd.f32 %v353, %v354
  %v356 = vsel %vm342, %v317, 0.0
  %v357 = vadd.f32 %v355, %v356
  %v358 = vsel %vm342, %v318, 0.0
  %v359 = vadd.f32 %v357, %v358
  %v360 = vsel %vm342, %v319, 0.0
  %v361 = vadd.f32 %v359, %v360
  %v362 = vsel %vm342, %v320, 0.0
  %v363 = vadd.f32 %v361, %v362
  %v364 = vsel %vm342, %v321, 0.0
  %v365 = vadd.f32 %v363, %v364
  %v366 = vsel %vm342, %v322, 0.0
  %v367 = vadd.f32 %v365, %v366
  %v368 = vsel %vm342, %v323, 0.0
  %v369 = vadd.f32 %v367, %v368
  %v370 = vsel %vm342, %v324, 0.0
  %v371 = vadd.f32 %v369, %v370
  %v372 = vsel %vm342, %v325, 0.0
  %v373 = vadd.f32 %v371, %v372
  %v374 = vsel %vm342, %v326, 0.0
  %v375 = vadd.f32 %v373, %v374
  %v376 = vsel %vm342, %v327, 0.0
  %v377 = vadd.f32 %v375, %v376
  %v378 = vsel %vm342, %v328, 0.0
  %v379 = vadd.f32 %v377, %v378
  %v380 = vsel %vm342, %v329, 0.0
  %v381 = vadd.f32 %v379, %v380
  %v382 = vsel %vm342, %v330, 0.0
  %v383 = vadd.f32 %v381, %v382
  %v384 = vsel %vm342, %v331, 0.0
  %v385 = vadd.f32 %v383, %v384
  %v386 = vsel %vm342, %v332, 0.0
  %v387 = vadd.f32 %v385, %v386
  %v388 = vsel %vm342, %v333, 0.0
  %v389 = vadd.f32 %v387, %v388
  %v390 = vsel %vm342, %v334, 0.0
  %v391 = vadd.f32 %v389, %v390
  %v392 = vsel %vm342, %v335, 0.0
  %v393 = vadd.f32 %v391, %v392
  %v394 = vsel %vm342, %v336, 0.0
  %v395 = vadd.f32 %v393, %v394
  %v396 = vsel %vm342, %v337, 0.0
  %v397 = vadd.f32 %v395, %v396
  %v398 = vsel %vm342, %v338, 0.0
  %v399 = vadd.f32 %v397, %v398
  %v400 = vsel %vm342, %v339, 0.0
  %v401 = vadd.f32 %v399, %v400
  %v402 = vsel %vm342, %v340, 0.0
  %v403 = vadd.f32 %v401, %v402
  %v404 = vsel %vm342, %v341, 0.0
  %v405 = vadd.f32 %v403, %v404
  %v406 = vrot.slane %v405, 4
  %v407 = vadd.f32 %v405, %v406
  %v408 = vrot.slane %v407, 2
  %v409 = vadd.f32 %v407, %v408
  %v410 = vrot.slane %v409, 1
  %v411 = vadd.f32 %v409, %v410
  %v412 = vmul.f32 %v310, %v310
  %v413 = vmul.f32 %v311, %v311
  %v414 = vmul.f32 %v312, %v312
  %v415 = vmul.f32 %v313, %v313
  %v416 = vmul.f32 %v314, %v314
  %v417 = vmul.f32 %v315, %v315
  %v418 = vmul.f32 %v316, %v316
  %v419 = vmul.f32 %v317, %v317
  %v420 = vmul.f32 %v318, %v318
  %v421 = vmul.f32 %v319, %v319
  %v422 = vmul.f32 %v320, %v320
  %v423 = vmul.f32 %v321, %v321
  %v424 = vmul.f32 %v322, %v322
  %v425 = vmul.f32 %v323, %v323
  %v426 = vmul.f32 %v324, %v324
  %v427 = vmul.f32 %v325, %v325
  %v428 = vmul.f32 %v326, %v326
  %v429 = vmul.f32 %v327, %v327
  %v430 = vmul.f32 %v328, %v328
  %v431 = vmul.f32 %v329, %v329
  %v432 = vmul.f32 %v330, %v330
  %v433 = vmul.f32 %v331, %v331
  %v434 = vmul.f32 %v332, %v332
  %v435 = vmul.f32 %v333, %v333
  %v436 = vmul.f32 %v334, %v334
  %v437 = vmul.f32 %v335, %v335
  %v438 = vmul.f32 %v336, %v336
  %v439 = vmul.f32 %v337, %v337
  %v440 = vmul.f32 %v338, %v338
  %v441 = vmul.f32 %v339, %v339
  %v442 = vmul.f32 %v340, %v340
  %v443 = vmul.f32 %v341, %v341
  %v444 = vsel %vm342, %v412, 0.0
  %v445 = vsel %vm342, %v413, 0.0
  %v446 = vadd.f32 %v444, %v445
  %v447 = vsel %vm342, %v414, 0.0
  %v448 = vadd.f32 %v446, %v447
  %v449 = vsel %vm342, %v415, 0.0
  %v450 = vadd.f32 %v448, %v449
  %v451 = vsel %vm342, %v416, 0.0
  %v452 = vadd.f32 %v450, %v451
  %v453 = vsel %vm342, %v417, 0.0
  %v454 = vadd.f32 %v452, %v453
  %v455 = vsel %vm342, %v418, 0.0
  %v456 = vadd.f32 %v454, %v455
  %v457 = vsel %vm342, %v419, 0.0
  %v458 = vadd.f32 %v456, %v457
  %v459 = vsel %vm342, %v420, 0.0
  %v460 = vadd.f32 %v458, %v459
  %v461 = vsel %vm342, %v421, 0.0
  %v462 = vadd.f32 %v460, %v461
  %v463 = vsel %vm342, %v422, 0.0
  %v464 = vadd.f32 %v462, %v463
  %v465 = vsel %vm342, %v423, 0.0
  %v466 = vadd.f32 %v464, %v465
  %v467 = vsel %vm342, %v424, 0.0
  %v468 = vadd.f32 %v466, %v467
  %v469 = vsel %vm342, %v425, 0.0
  %v470 = vadd.f32 %v468, %v469
  %v471 = vsel %vm342, %v426, 0.0
  %v472 = vadd.f32 %v470, %v471
  %v473 = vsel %vm342, %v427, 0.0
  %v474 = vadd.f32 %v472, %v473
  %v475 = vsel %vm342, %v428, 0.0
  %v476 = vadd.f32 %v474, %v475
  %v477 = vsel %vm342, %v429, 0.0
  %v478 = vadd.f32 %v476, %v477
  %v479 = vsel %vm342, %v430, 0.0
  %v480 = vadd.f32 %v478, %v479
  %v481 = vsel %vm342, %v431, 0.0
  %v482 = vadd.f32 %v480, %v481
  %v483 = vsel %vm342, %v432, 0.0
  %v484 = vadd.f32 %v482, %v483
  %v485 = vsel %vm342, %v433, 0.0
  %v486 = vadd.f32 %v484, %v485
  %v487 = vsel %vm342, %v434, 0.0
  %v488 = vadd.f32 %v486, %v487
  %v489 = vsel %vm342, %v435, 0.0
  %v490 = vadd.f32 %v488, %v489
  %v491 = vsel %vm342, %v436, 0.0
  %v492 = vadd.f32 %v490, %v491
  %v493 = vsel %vm342, %v437, 0.0
  %v494 = vadd.f32 %v492, %v493
  %v495 = vsel %vm342, %v438, 0.0
  %v496 = vadd.f32 %v494, %v495
  %v497 = vsel %vm342, %v439, 0.0
  %v498 = vadd.f32 %v496, %v497
  %v499 = vsel %vm342, %v440, 0.0
  %v500 = vadd.f32 %v498, %v499
  %v501 = vsel %vm342, %v441, 0.0
  %v502 = vadd.f32 %v500, %v501
  %v503 = vsel %vm342, %v442, 0.0
  %v504 = vadd.f32 %v502, %v503
  %v505 = vsel %vm342, %v443, 0.0
  %v506 = vadd.f32 %v504, %v505
  %v507 = vrot.slane %v506, 4
  %v508 = vadd.f32 %v506, %v507
  %v509 = vrot.slane %v508, 2
  %v510 = vadd.f32 %v508, %v509
  %v511 = vrot.slane %v510, 1
  %v512 = vadd.f32 %v510, %v511
  %514 = vrot.lane.b32.xlu0 %v411, 96
  %v515 = vpop.permute.xlu0 %514
  %v517 = vadd.f32 %v411, %v515
  %519 = vrot.lane.b32.xlu0 %v512, 96
  %v520 = vpop.permute.xlu0 %519
  %v522 = vadd.f32 %v512, %v520
  %v523 = vrcp.pop 512.0
  %v524 = vmul.f32 %v517, %v523
  %v525 = vmul.f32 %v522, %v523
  %v526 = vmul.f32 %v524, %v524
  %v527 = vsub.f32 %v525, %v526
  %529 = vrot.lane.b32.xlu0 %v524, 32
  %v530 = vpop.permute.xlu0 %529
  %vm532 = vcmask 261120
  %v533 = vsel %vm532, %v524, %v530
  %535 = vrot.lane.b32.xlu0 %v527, 32
  %v536 = vpop.permute.xlu0 %535
  %v538 = vsel %vm532, %v527, %v536
  %v539 = vadd.f32 %v538, 1e-05
  %v540 = vrsqrt.pop %v539
  %v542 = vrot.slane %v540, 7
  %v544 = vmul.f32 %v80, %v542
  %v546 = vrot.slane %v544, 1
  %v548 = vmul.f32 %v533, %v546
  %v550 = vrot.slane %v548, 6
  %v552 = vsub.f32 %v80, %v550
  %v553 = vlaneseq
  %v554 = vshrl.u32 %v553, 7
  %v555 = vsub.s32 1, %v554
  %v556 = vrot.slane %v544, %v555
  %v557 = vmul.f32 %v310, %v556
  %v558 = vmul.f32 %v311, %v556
  %v559 = vmul.f32 %v312, %v556
  %v560 = vmul.f32 %v313, %v556
  %v561 = vmul.f32 %v314, %v556
  %v562 = vmul.f32 %v315, %v556
  %v563 = vmul.f32 %v316, %v556
  %v564 = vmul.f32 %v317, %v556
  %v565 = vmul.f32 %v318, %v556
  %v566 = vmul.f32 %v319, %v556
  %v567 = vmul.f32 %v320, %v556
  %v568 = vmul.f32 %v321, %v556
  %v569 = vmul.f32 %v322, %v556
  %v570 = vmul.f32 %v323, %v556
  %v571 = vmul.f32 %v324, %v556
  %v572 = vmul.f32 %v325, %v556
  %v573 = vmul.f32 %v326, %v556
  %v574 = vmul.f32 %v327, %v556
  %v575 = vmul.f32 %v328, %v556
  %v576 = vmul.f32 %v329, %v556
  %v577 = vmul.f32 %v330, %v556
  %v578 = vmul.f32 %v331, %v556
  %v579 = vmul.f32 %v332, %v556
  %v580 = vmul.f32 %v333, %v556
  %v581 = vmul.f32 %v334, %v556
  %v582 = vmul.f32 %v335, %v556
  %v583 = vmul.f32 %v336, %v556
  %v584 = vmul.f32 %v337, %v556
  %v585 = vmul.f32 %v338, %v556
  %v586 = vmul.f32 %v339, %v556
  %v587 = vmul.f32 %v340, %v556
  %v588 = vmul.f32 %v341, %v556
  %v589 = vlaneseq
  %v590 = vshrl.u32 %v589, 7
  %v591 = vsub.s32 2, %v590
  %v592 = vrot.slane %v552, %v591
  %v593 = vadd.f32 %v557, %v592
  %v594 = vadd.f32 %v558, %v592
  %v595 = vadd.f32 %v559, %v592
  %v596 = vadd.f32 %v560, %v592
  %v597 = vadd.f32 %v561, %v592
  %v598 = vadd.f32 %v562, %v592
  %v599 = vadd.f32 %v563, %v592
  %v600 = vadd.f32 %v564, %v592
  %v601 = vadd.f32 %v565, %v592
  %v602 = vadd.f32 %v566, %v592
  %v603 = vadd.f32 %v567, %v592
  %v604 = vadd.f32 %v568, %v592
  %v605 = vadd.f32 %v569, %v592
  %v606 = vadd.f32 %v570, %v592
  %v607 = vadd.f32 %v571, %v592
  %v608 = vadd.f32 %v572, %v592
  %v609 = vadd.f32 %v573, %v592
  %v610 = vadd.f32 %v574, %v592
  %v611 = vadd.f32 %v575, %v592
  %v612 = vadd.f32 %v576, %v592
  %v613 = vadd.f32 %v577, %v592
  %v614 = vadd.f32 %v578, %v592
  %v615 = vadd.f32 %v579, %v592
  %v616 = vadd.f32 %v580, %v592
  %v617 = vadd.f32 %v581, %v592
  %v618 = vadd.f32 %v582, %v592
  %v619 = vadd.f32 %v583, %v592
  %v620 = vadd.f32 %v584, %v592
  %v621 = vadd.f32 %v585, %v592
  %v622 = vadd.f32 %v586, %v592
  %v623 = vadd.f32 %v587, %v592
  %v624 = vadd.f32 %v588, %v592
  %v625 = vld [vmem:[%s3] sm:$0xff]
  %v626 = vld [vmem:[%s3 + $0x8] sm:$0xff]
  %v627 = vld [vmem:[%s3 + $0x10] sm:$0xff]
  %v628 = vld [vmem:[%s3 + $0x18] sm:$0xff]
  %v629 = vld [vmem:[%s3 + $0x20] sm:$0xff]
  %v630 = vld [vmem:[%s3 + $0x28] sm:$0xff]
  %v631 = vld [vmem:[%s3 + $0x30] sm:$0xff]
  %v632 = vld [vmem:[%s3 + $0x38] sm:$0xff]
  %v633 = vld [vmem:[%s3 + $0x40] sm:$0xff]
  %v634 = vld [vmem:[%s3 + $0x48] sm:$0xff]
  %v635 = vld [vmem:[%s3 + $0x50] sm:$0xff]
  %v636 = vld [vmem:[%s3 + $0x58] sm:$0xff]
  %v637 = vld [vmem:[%s3 + $0x60] sm:$0xff]
  %v638 = vld [vmem:[%s3 + $0x68] sm:$0xff]
  %v639 = vld [vmem:[%s3 + $0x70] sm:$0xff]
  %v640 = vld [vmem:[%s3 + $0x78] sm:$0xff]
  %v641 = vld [vmem:[%s3 + $0x80] sm:$0xff]
  %v642 = vld [vmem:[%s3 + $0x88] sm:$0xff]
  %v643 = vld [vmem:[%s3 + $0x90] sm:$0xff]
  %v644 = vld [vmem:[%s3 + $0x98] sm:$0xff]
  %v645 = vld [vmem:[%s3 + $0xa0] sm:$0xff]
  %v646 = vld [vmem:[%s3 + $0xa8] sm:$0xff]
  %v647 = vld [vmem:[%s3 + $0xb0] sm:$0xff]
  %v648 = vld [vmem:[%s3 + $0xb8] sm:$0xff]
  %v649 = vld [vmem:[%s3 + $0xc0] sm:$0xff]
  %v650 = vld [vmem:[%s3 + $0xc8] sm:$0xff]
  %v651 = vld [vmem:[%s3 + $0xd0] sm:$0xff]
  %v652 = vld [vmem:[%s3 + $0xd8] sm:$0xff]
  %v653 = vld [vmem:[%s3 + $0xe0] sm:$0xff]
  %v654 = vld [vmem:[%s3 + $0xe8] sm:$0xff]
  %v655 = vld [vmem:[%s3 + $0xf0] sm:$0xff]
  %v656 = vld [vmem:[%s3 + $0xf8] sm:$0xff]
  %v657 = vld [vmem:[%s3 + $0x100] sm:$0xff]
  %v658 = vld [vmem:[%s3 + $0x108] sm:$0xff]
  %v659 = vld [vmem:[%s3 + $0x110] sm:$0xff]
  %v660 = vld [vmem:[%s3 + $0x118] sm:$0xff]
  %v661 = vld [vmem:[%s3 + $0x120] sm:$0xff]
  %v662 = vld [vmem:[%s3 + $0x128] sm:$0xff]
  %v663 = vld [vmem:[%s3 + $0x130] sm:$0xff]
  %v664 = vld [vmem:[%s3 + $0x138] sm:$0xff]
  %v665 = vld [vmem:[%s3 + $0x140] sm:$0xff]
  %v666 = vld [vmem:[%s3 + $0x148] sm:$0xff]
  %v667 = vld [vmem:[%s3 + $0x150] sm:$0xff]
  %v668 = vld [vmem:[%s3 + $0x158] sm:$0xff]
  %v669 = vld [vmem:[%s3 + $0x160] sm:$0xff]
  %v670 = vld [vmem:[%s3 + $0x168] sm:$0xff]
  %v671 = vld [vmem:[%s3 + $0x170] sm:$0xff]
  %v672 = vld [vmem:[%s3 + $0x178] sm:$0xff]
  %v673 = vld [vmem:[%s3 + $0x180] sm:$0xff]
  %v674 = vld [vmem:[%s3 + $0x188] sm:$0xff]
  %v675 = vld [vmem:[%s3 + $0x190] sm:$0xff]
  %v676 = vld [vmem:[%s3 + $0x198] sm:$0xff]
  %v677 = vld [vmem:[%s3 + $0x1a0] sm:$0xff]
  %v678 = vld [vmem:[%s3 + $0x1a8] sm:$0xff]
  %v679 = vld [vmem:[%s3 + $0x1b0] sm:$0xff]
  %v680 = vld [vmem:[%s3 + $0x1b8] sm:$0xff]
  %v681 = vld [vmem:[%s3 + $0x1c0] sm:$0xff]
  %v682 = vld [vmem:[%s3 + $0x1c8] sm:$0xff]
  %v683 = vld [vmem:[%s3 + $0x1d0] sm:$0xff]
  %v684 = vld [vmem:[%s3 + $0x1d8] sm:$0xff]
  %v685 = vld [vmem:[%s3 + $0x1e0] sm:$0xff]
  %v686 = vld [vmem:[%s3 + $0x1e8] sm:$0xff]
  %v687 = vld [vmem:[%s3 + $0x1f0] sm:$0xff]
  %v688 = vld [vmem:[%s3 + $0x1f8] sm:$0xff]
  %v689 = vld [vmem:[%s3 + $0x200] sm:$0xff]
  %v690 = vld [vmem:[%s3 + $0x208] sm:$0xff]
  %v691 = vld [vmem:[%s3 + $0x210] sm:$0xff]
  %v692 = vld [vmem:[%s3 + $0x218] sm:$0xff]
  %v693 = vld [vmem:[%s3 + $0x220] sm:$0xff]
  %v694 = vld [vmem:[%s3 + $0x228] sm:$0xff]
  %v695 = vld [vmem:[%s3 + $0x230] sm:$0xff]
  %v696 = vld [vmem:[%s3 + $0x238] sm:$0xff]
  %v697 = vunpack.c.l.bf16 %v625
  %v698 = vunpack.c.h.bf16 %v625
  %v699 = vunpack.c.l.bf16 %v626
  %v700 = vunpack.c.h.bf16 %v626
  %v701 = vunpack.c.l.bf16 %v627
  %v702 = vunpack.c.h.bf16 %v627
  %v703 = vunpack.c.l.bf16 %v628
  %v704 = vunpack.c.h.bf16 %v628
  %v705 = vunpack.c.l.bf16 %v629
  %v706 = vunpack.c.h.bf16 %v629
  %v707 = vunpack.c.l.bf16 %v630
  %v708 = vunpack.c.h.bf16 %v630
  %v709 = vunpack.c.l.bf16 %v631
  %v710 = vunpack.c.h.bf16 %v631
  %v711 = vunpack.c.l.bf16 %v632
  %v712 = vunpack.c.h.bf16 %v632
  %v713 = vunpack.c.l.bf16 %v633
  %v714 = vunpack.c.h.bf16 %v633
  %v715 = vunpack.c.l.bf16 %v634
  %v716 = vunpack.c.h.bf16 %v634
  %v717 = vunpack.c.l.bf16 %v635
  %v718 = vunpack.c.h.bf16 %v635
  %v719 = vunpack.c.l.bf16 %v636
  %v720 = vunpack.c.h.bf16 %v636
  %v721 = vunpack.c.l.bf16 %v637
  %v722 = vunpack.c.h.bf16 %v637
  %v723 = vunpack.c.l.bf16 %v638
  %v724 = vunpack.c.h.bf16 %v638
  %v725 = vunpack.c.l.bf16 %v639
  %v726 = vunpack.c.h.bf16 %v639
  %v727 = vunpack.c.l.bf16 %v640
  %v728 = vunpack.c.h.bf16 %v640
  %v729 = vunpack.c.l.bf16 %v641
  %v730 = vunpack.c.h.bf16 %v641
  %v731 = vunpack.c.l.bf16 %v642
  %v732 = vunpack.c.h.bf16 %v642
  %v733 = vunpack.c.l.bf16 %v643
  %v734 = vunpack.c.h.bf16 %v643
  %v735 = vunpack.c.l.bf16 %v644
  %v736 = vunpack.c.h.bf16 %v644
  %v737 = vunpack.c.l.bf16 %v645
  %v738 = vunpack.c.h.bf16 %v645
  %v739 = vunpack.c.l.bf16 %v646
  %v740 = vunpack.c.h.bf16 %v646
  %v741 = vunpack.c.l.bf16 %v647
  %v742 = vunpack.c.h.bf16 %v647
  %v743 = vunpack.c.l.bf16 %v648
  %v744 = vunpack.c.h.bf16 %v648
  %v745 = vunpack.c.l.bf16 %v649
  %v746 = vunpack.c.h.bf16 %v649
  %v747 = vunpack.c.l.bf16 %v650
  %v748 = vunpack.c.h.bf16 %v650
  %v749 = vunpack.c.l.bf16 %v651
  %v750 = vunpack.c.h.bf16 %v651
  %v751 = vunpack.c.l.bf16 %v652
  %v752 = vunpack.c.h.bf16 %v652
  %v753 = vunpack.c.l.bf16 %v653
  %v754 = vunpack.c.h.bf16 %v653
  %v755 = vunpack.c.l.bf16 %v654
  %v756 = vunpack.c.h.bf16 %v654
  %v757 = vunpack.c.l.bf16 %v655
  %v758 = vunpack.c.h.bf16 %v655
  %v759 = vunpack.c.l.bf16 %v656
  %v760 = vunpack.c.h.bf16 %v656
  %v761 = vunpack.c.l.bf16 %v657
  %v762 = vunpack.c.h.bf16 %v657
  %v763 = vunpack.c.l.bf16 %v658
  %v764 = vunpack.c.h.bf16 %v658
  %v765 = vunpack.c.l.bf16 %v659
  %v766 = vunpack.c.h.bf16 %v659
  %v767 = vunpack.c.l.bf16 %v660
  %v768 = vunpack.c.h.bf16 %v660
  %v769 = vunpack.c.l.bf16 %v661
  %v770 = vunpack.c.h.bf16 %v661
  %v771 = vunpack.c.l.bf16 %v662
  %v772 = vunpack.c.h.bf16 %v662
  %v773 = vunpack.c.l.bf16 %v663
  %v774 = vunpack.c.h.bf16 %v663
  %v775 = vunpack.c.l.bf16 %v664
  %v776 = vunpack.c.h.bf16 %v664
  %v777 = vunpack.c.l.bf16 %v665
  %v778 = vunpack.c.h.bf16 %v665
  %v779 = vunpack.c.l.bf16 %v666
  %v780 = vunpack.c.h.bf16 %v666
  %v781 = vunpack.c.l.bf16 %v667
  %v782 = vunpack.c.h.bf16 %v667
  %v783 = vunpack.c.l.bf16 %v668
  %v784 = vunpack.c.h.bf16 %v668
  %v785 = vunpack.c.l.bf16 %v669
  %v786 = vunpack.c.h.bf16 %v669
  %v787 = vunpack.c.l.bf16 %v670
  %v788 = vunpack.c.h.bf16 %v670
  %v789 = vunpack.c.l.bf16 %v671
  %v790 = vunpack.c.h.bf16 %v671
  %v791 = vunpack.c.l.bf16 %v672
  %v792 = vunpack.c.h.bf16 %v672
  %v793 = vunpack.c.l.bf16 %v673
  %v794 = vunpack.c.h.bf16 %v673
  %v795 = vunpack.c.l.bf16 %v674
  %v796 = vunpack.c.h.bf16 %v674
  %v797 = vunpack.c.l.bf16 %v675
  %v798 = vunpack.c.h.bf16 %v675
  %v799 = vunpack.c.l.bf16 %v676
  %v800 = vunpack.c.h.bf16 %v676
  %v801 = vunpack.c.l.bf16 %v677
  %v802 = vunpack.c.h.bf16 %v677
  %v803 = vunpack.c.l.bf16 %v678
  %v804 = vunpack.c.h.bf16 %v678
  %v805 = vunpack.c.l.bf16 %v679
  %v806 = vunpack.c.h.bf16 %v679
  %v807 = vunpack.c.l.bf16 %v680
  %v808 = vunpack.c.h.bf16 %v680
  %v809 = vunpack.c.l.bf16 %v681
  %v810 = vunpack.c.h.bf16 %v681
  %v811 = vunpack.c.l.bf16 %v682
  %v812 = vunpack.c.h.bf16 %v682
  %v813 = vunpack.c.l.bf16 %v683
  %v814 = vunpack.c.h.bf16 %v683
  %v815 = vunpack.c.l.bf16 %v684
  %v816 = vunpack.c.h.bf16 %v684
  %v817 = vunpack.c.l.bf16 %v685
  %v818 = vunpack.c.h.bf16 %v685
  %v819 = vunpack.c.l.bf16 %v686
  %v820 = vunpack.c.h.bf16 %v686
  %v821 = vunpack.c.l.bf16 %v687
  %v822 = vunpack.c.h.bf16 %v687
  %v823 = vunpack.c.l.bf16 %v688
  %v824 = vunpack.c.h.bf16 %v688
  %v825 = vunpack.c.l.bf16 %v689
  %v826 = vunpack.c.h.bf16 %v689
  %v827 = vunpack.c.l.bf16 %v690
  %v828 = vunpack.c.h.bf16 %v690
  %v829 = vunpack.c.l.bf16 %v691
  %v830 = vunpack.c.h.bf16 %v691
  %v831 = vunpack.c.l.bf16 %v692
  %v832 = vunpack.c.h.bf16 %v692
  %v833 = vunpack.c.l.bf16 %v693
  %v834 = vunpack.c.h.bf16 %v693
  %v835 = vunpack.c.l.bf16 %v694
  %v836 = vunpack.c.h.bf16 %v694
  %v837 = vunpack.c.l.bf16 %v695
  %v838 = vunpack.c.h.bf16 %v695
  %v839 = vunpack.c.l.bf16 %v696
  %v840 = vunpack.c.h.bf16 %v696
  %v841 = vld [vmem:[%s4] sm:$0xff]
  %v842 = vld [vmem:[%s4 + $0x8] sm:$0xff]
  %v843 = vld [vmem:[%s4 + $0x10] sm:$0xff]
  %v844 = vld [vmem:[%s4 + $0x18] sm:$0xff]
  %v845 = vld [vmem:[%s4 + $0x20] sm:$0xff]
  %v846 = vld [vmem:[%s4 + $0x28] sm:$0xff]
  %v847 = vld [vmem:[%s4 + $0x30] sm:$0xff]
  %v848 = vld [vmem:[%s4 + $0x38] sm:$0xff]
  %v849 = vld [vmem:[%s4 + $0x40] sm:$0xff]
  %v850 = vld [vmem:[%s4 + $0x48] sm:$0xff]
  %v851 = vld [vmem:[%s4 + $0x50] sm:$0xff]
  %v852 = vld [vmem:[%s4 + $0x58] sm:$0xff]
  %v853 = vld [vmem:[%s4 + $0x60] sm:$0xff]
  %v854 = vld [vmem:[%s4 + $0x68] sm:$0xff]
  %v855 = vld [vmem:[%s4 + $0x70] sm:$0xff]
  %v856 = vld [vmem:[%s4 + $0x78] sm:$0xff]
  %v857 = vld [vmem:[%s4 + $0x80] sm:$0xff]
  %v858 = vld [vmem:[%s4 + $0x88] sm:$0xff]
  %v859 = vld [vmem:[%s4 + $0x90] sm:$0xff]
  %v860 = vld [vmem:[%s4 + $0x98] sm:$0xff]
  %v861 = vld [vmem:[%s4 + $0xa0] sm:$0xff]
  %v862 = vld [vmem:[%s4 + $0xa8] sm:$0xff]
  %v863 = vld [vmem:[%s4 + $0xb0] sm:$0xff]
  %v864 = vld [vmem:[%s4 + $0xb8] sm:$0xff]
  %v865 = vld [vmem:[%s4 + $0xc0] sm:$0xff]
  %v866 = vld [vmem:[%s4 + $0xc8] sm:$0xff]
  %v867 = vld [vmem:[%s4 + $0xd0] sm:$0xff]
  %v868 = vld [vmem:[%s4 + $0xd8] sm:$0xff]
  %v869 = vld [vmem:[%s4 + $0xe0] sm:$0xff]
  %v870 = vld [vmem:[%s4 + $0xe8] sm:$0xff]
  %v871 = vld [vmem:[%s4 + $0xf0] sm:$0xff]
  %v872 = vld [vmem:[%s4 + $0xf8] sm:$0xff]
  %v873 = vld [vmem:[%s4 + $0x100] sm:$0xff]
  %v874 = vld [vmem:[%s4 + $0x108] sm:$0xff]
  %v875 = vld [vmem:[%s4 + $0x110] sm:$0xff]
  %v876 = vld [vmem:[%s4 + $0x118] sm:$0xff]
  %v877 = vld [vmem:[%s4 + $0x120] sm:$0xff]
  %v878 = vld [vmem:[%s4 + $0x128] sm:$0xff]
  %v879 = vld [vmem:[%s4 + $0x130] sm:$0xff]
  %v880 = vld [vmem:[%s4 + $0x138] sm:$0xff]
  %v881 = vld [vmem:[%s4 + $0x140] sm:$0xff]
  %v882 = vld [vmem:[%s4 + $0x148] sm:$0xff]
  %v883 = vld [vmem:[%s4 + $0x150] sm:$0xff]
  %v884 = vld [vmem:[%s4 + $0x158] sm:$0xff]
  %v885 = vld [vmem:[%s4 + $0x160] sm:$0xff]
  %v886 = vld [vmem:[%s4 + $0x168] sm:$0xff]
  %v887 = vld [vmem:[%s4 + $0x170] sm:$0xff]
  %v888 = vld [vmem:[%s4 + $0x178] sm:$0xff]
  %v889 = vld [vmem:[%s4 + $0x180] sm:$0xff]
  %v890 = vld [vmem:[%s4 + $0x188] sm:$0xff]
  %v891 = vld [vmem:[%s4 + $0x190] sm:$0xff]
  %v892 = vld [vmem:[%s4 + $0x198] sm:$0xff]
  %v893 = vld [vmem:[%s4 + $0x1a0] sm:$0xff]
  %v894 = vld [vmem:[%s4 + $0x1a8] sm:$0xff]
  %v895 = vld [vmem:[%s4 + $0x1b0] sm:$0xff]
  %v896 = vld [vmem:[%s4 + $0x1b8] sm:$0xff]
  %v897 = vld [vmem:[%s4 + $0x1c0] sm:$0xff]
  %v898 = vld [vmem:[%s4 + $0x1c8] sm:$0xff]
  %v899 = vld [vmem:[%s4 + $0x1d0] sm:$0xff]
  %v900 = vld [vmem:[%s4 + $0x1d8] sm:$0xff]
  %v901 = vld [vmem:[%s4 + $0x1e0] sm:$0xff]
  %v902 = vld [vmem:[%s4 + $0x1e8] sm:$0xff]
  %v903 = vld [vmem:[%s4 + $0x1f0] sm:$0xff]
  %v904 = vld [vmem:[%s4 + $0x1f8] sm:$0xff]
  %v905 = vld [vmem:[%s4 + $0x200] sm:$0xff]
  %v906 = vld [vmem:[%s4 + $0x208] sm:$0xff]
  %v907 = vld [vmem:[%s4 + $0x210] sm:$0xff]
  %v908 = vld [vmem:[%s4 + $0x218] sm:$0xff]
  %v909 = vld [vmem:[%s4 + $0x220] sm:$0xff]
  %v910 = vld [vmem:[%s4 + $0x228] sm:$0xff]
  %v911 = vld [vmem:[%s4 + $0x230] sm:$0xff]
  %v912 = vld [vmem:[%s4 + $0x238] sm:$0xff]
  %913 = vmatprep.subr.mxu0 0.0
  %914 = vmatpush1.msra.mxu0 %v593
  %915 = vmatprep.subr.mxu0 0.0
  %916 = vmatpush1.msra.mxu0 %v594
  %917 = vmatprep.subr.mxu0 0.0
  %918 = vmatpush1.msra.mxu0 %v595
  %919 = vmatprep.subr.mxu0 0.0
  %920 = vmatpush1.msra.mxu0 %v596
  %921 = vmatprep.subr.mxu0 0.0
  %922 = vmatpush1.msra.mxu0 %v597
  %923 = vmatprep.subr.mxu0 0.0
  %924 = vmatpush1.msra.mxu0 %v598
  %925 = vmatprep.subr.mxu0 0.0
  %926 = vmatpush1.msra.mxu0 %v599
  %927 = vmatprep.subr.mxu0 0.0
  %928 = vmatpush1.msra.mxu0 %v600
  %929 = vmatprep.subr.mxu0 0.0
  %930 = vmatpush1.msra.mxu0 %v601
  %931 = vmatprep.subr.mxu0 0.0
  %932 = vmatpush1.msra.mxu0 %v602
  %933 = vmatprep.subr.mxu0 0.0
  %934 = vmatpush1.msra.mxu0 %v603
  %935 = vmatprep.subr.mxu0 0.0
  %936 = vmatpush1.msra.mxu0 %v604
  %937 = vmatprep.subr.mxu0 0.0
  %938 = vmatpush1.msra.mxu0 %v605
  %939 = vmatprep.subr.mxu0 0.0
  %940 = vmatpush1.msra.mxu0 %v606
  %941 = vmatprep.subr.mxu0 0.0
  %942 = vmatpush1.msra.mxu0 %v607
  %943 = vmatprep.subr.mxu0 0.0
  %944 = vmatpush1.msra.mxu0 %v608
  %945 = vmatprep.subr.mxu0 0.0
  %946 = vmatpush1.msra.mxu0 %v609
  %947 = vmatprep.subr.mxu0 0.0
  %948 = vmatpush1.msra.mxu0 %v610
  %949 = vmatprep.subr.mxu0 0.0
  %950 = vmatpush1.msra.mxu0 %v611
  %951 = vmatprep.subr.mxu0 0.0
  %952 = vmatpush1.msra.mxu0 %v612
  %953 = vmatprep.subr.mxu0 0.0
  %954 = vmatpush1.msra.mxu0 %v613
  %955 = vmatprep.subr.mxu0 0.0
  %956 = vmatpush1.msra.mxu0 %v614
  %957 = vmatprep.subr.mxu0 0.0
  %958 = vmatpush1.msra.mxu0 %v615
  %959 = vmatprep.subr.mxu0 0.0
  %960 = vmatpush1.msra.mxu0 %v616
  %961 = vmatprep.subr.mxu0 0.0
  %962 = vmatpush1.msra.mxu0 %v617
  %963 = vmatprep.subr.mxu0 0.0
  %964 = vmatpush1.msra.mxu0 %v618
  %965 = vmatprep.subr.mxu0 0.0
  %966 = vmatpush1.msra.mxu0 %v619
  %967 = vmatprep.subr.mxu0 0.0
  %968 = vmatpush1.msra.mxu0 %v620
  %969 = vmatprep.subr.mxu0 0.0
  %970 = vmatpush1.msra.mxu0 %v621
  %971 = vmatprep.subr.mxu0 0.0
  %972 = vmatpush1.msra.mxu0 %v622
  %973 = vmatprep.subr.mxu0 0.0
  %974 = vmatpush1.msra.mxu0 %v623
  %975 = vmatprep.subr.mxu0 0.0
  %976 = vmatpush1.msra.mxu0 %v624
  %977 = vmatprep.mubr.f32.mxu0 %v698
  %978 = vmatmul.mubr.f32.gmra.mrb[0].mxu0 %v697
  %v979 = vpop.f32.mrb[0].mxu0
  %v980 = vadd.f32 0.0, %v979
  %v981 = vpop.f32.mrb[0].mxu0
  %982 = vmatprep.mubr.f32.mxu0 %v700
  %983 = vmatmul.mubr.f32.gmra.mrb[0].mxu0 %v699
  %v984 = vpop.f32.mrb[0].mxu0
  %v985 = vadd.f32 0.0, %v984
  %v986 = vpop.f32.mrb[0].mxu0
  %987 = vmatprep.mubr.f32.mxu0 %v702
  %988 = vmatmul.mubr.f32.gmra.mrb[0].mxu0 %v701
  %v989 = vpop.f32.mrb[0].mxu0
  %v990 = vadd.f32 0.0, %v989
  %v991 = vpop.f32.mrb[0].mxu0
  %992 = vmatprep.mubr.f32.mxu0 %v704
  %993 = vmatmul.mubr.f32.gmra.mrb[0].mxu0 %v703
  %v994 = vpop.f32.mrb[0].mxu0
  %v995 = vadd.f32 0.0, %v994
  %v996 = vpop.f32.mrb[0].mxu0
  %997 = vmatprep.mubr.f32.mxu0 %v706
  %998 = vmatmul.mubr.f32.gmra.mrb[0].mxu0 %v705
  %v999 = vpop.f32.mrb[0].mxu0
  %v1000 = vadd.f32 0.0, %v999
  %v1001 = vpop.f32.mrb[0].mxu0
  %1002 = vmatprep.mubr.f32.mxu0 %v708
  %1003 = vmatmul.mubr.f32.gmra.mrb[0].mxu0 %v707
  %v1004 = vpop.f32.mrb[0].mxu0
  %v1005 = vadd.f32 0.0, %v1004
  %v1006 = vpop.f32.mrb[0].mxu0
  %1007 = vmatprep.mubr.f32.mxu0 %v710
  %1008 = vmatmul.mubr.f32.gmra.mrb[0].mxu0 %v709
  %v1009 = vpop.f32.mrb[0].mxu0
  %v1010 = vadd.f32 0.0, %v1009
  %v1011 = vpop.f32.mrb[0].mxu0
  %1012 = vmatprep.mubr.f32.mxu0 %v712
  %1013 = vmatmul.mubr.f32.gmra.mrb[0].mxu0 %v711
  %v1014 = vpop.f32.mrb[0].mxu0
  %v1015 = vadd.f32 0.0, %v1014
  %v1016 = vpop.f32.mrb[0].mxu0
  %1017 = vmatprep.mubr.f32.mxu0 %v714
  %1018 = vmatmul.mubr.f32.gmra.mrb[0].mxu0 %v713
  %v1019 = vpop.f32.mrb[0].mxu0
  %v1020 = vadd.f32 0.0, %v1019
  %v1021 = vpop.f32.mrb[0].mxu0
  %1022 = vmatprep.mubr.f32.mxu0 %v716
  %1023 = vmatmul.mubr.f32.gmra.mrb[0].mxu0 %v715
  %v1024 = vpop.f32.mrb[0].mxu0
  %v1025 = vadd.f32 0.0, %v1024
  %v1026 = vpop.f32.mrb[0].mxu0
  %1027 = vmatprep.mubr.f32.mxu0 %v718
  %1028 = vmatmul.mubr.f32.gmra.mrb[0].mxu0 %v717
  %v1029 = vpop.f32.mrb[0].mxu0
  %v1030 = vadd.f32 0.0, %v1029
  %v1031 = vpop.f32.mrb[0].mxu0
  %1032 = vmatprep.mubr.f32.mxu0 %v720
  %1033 = vmatmul.mubr.f32.gmra.mrb[0].mxu0 %v719
  %v1034 = vpop.f32.mrb[0].mxu0
  %v1035 = vadd.f32 0.0, %v1034
  %v1036 = vpop.f32.mrb[0].mxu0
  %1037 = vmatprep.mubr.f32.mxu0 %v722
  %1038 = vmatmul.mubr.f32.gmra.mrb[0].mxu0 %v721
  %v1039 = vpop.f32.mrb[0].mxu0
  %v1040 = vadd.f32 0.0, %v1039
  %v1041 = vpop.f32.mrb[0].mxu0
  %1042 = vmatprep.mubr.f32.mxu0 %v724
  %1043 = vmatmul.mubr.f32.gmra.mrb[0].mxu0 %v723
  %v1044 = vpop.f32.mrb[0].mxu0
  %v1045 = vadd.f32 0.0, %v1044
  %v1046 = vpop.f32.mrb[0].mxu0
  %1047 = vmatprep.mubr.f32.mxu0 %v726
  %1048 = vmatmul.mubr.f32.gmra.mrb[0].mxu0 %v725
  %v1049 = vpop.f32.mrb[0].mxu0
  %v1050 = vadd.f32 0.0, %v1049
  %v1051 = vpop.f32.mrb[0].mxu0
  %1052 = vmatprep.mubr.f32.mxu0 %v728
  %1053 = vmatmul.mubr.f32.gmra.mrb[0].mxu0 %v727
  %v1054 = vpop.f32.mrb[0].mxu0
  %v1055 = vadd.f32 0.0, %v1054
  %v1056 = vpop.f32.mrb[0].mxu0
  %1057 = vmatprep.mubr.f32.mxu0 %v730
  %1058 = vmatmul.mubr.f32.gmra.mrb[0].mxu0 %v729
  %v1059 = vpop.f32.mrb[0].mxu0
  %v1060 = vadd.f32 0.0, %v1059
  %v1061 = vpop.f32.mrb[0].mxu0
  %1062 = vmatprep.mubr.f32.mxu0 %v732
  %1063 = vmatmul.mubr.f32.gmra.mrb[0].mxu0 %v731
  %v1064 = vpop.f32.mrb[0].mxu0
  %v1065 = vadd.f32 0.0, %v1064
  %v1066 = vpop.f32.mrb[0].mxu0
  %1067 = vmatprep.mubr.f32.mxu0 %v734
  %1068 = vmatmul.mubr.f32.gmra.mrb[0].mxu0 %v733
  %v1069 = vpop.f32.mrb[0].mxu0
  %v1070 = vadd.f32 0.0, %v1069
  %v1071 = vpop.f32.mrb[0].mxu0
  %1072 = vmatprep.mubr.f32.mxu0 %v736
  %1073 = vmatmul.mubr.f32.gmra.mrb[0].mxu0 %v735
  %v1074 = vpop.f32.mrb[0].mxu0
  %v1075 = vadd.f32 0.0, %v1074
  %v1076 = vpop.f32.mrb[0].mxu0
  %1077 = vmatprep.mubr.f32.mxu0 %v738
  %1078 = vmatmul.mubr.f32.gmra.mrb[0].mxu0 %v737
  %v1079 = vpop.f32.mrb[0].mxu0
  %v1080 = vadd.f32 0.0, %v1079
  %v1081 = vpop.f32.mrb[0].mxu0
  %1082 = vmatprep.mubr.f32.mxu0 %v740
  %1083 = vmatmul.mubr.f32.gmra.mrb[0].mxu0 %v739
  %v1084 = vpop.f32.mrb[0].mxu0
  %v1085 = vadd.f32 0.0, %v1084
  %v1086 = vpop.f32.mrb[0].mxu0
  %1087 = vmatprep.mubr.f32.mxu0 %v742
  %1088 = vmatmul.mubr.f32.gmra.mrb[0].mxu0 %v741
  %v1089 = vpop.f32.mrb[0].mxu0
  %v1090 = vadd.f32 0.0, %v1089
  %v1091 = vpop.f32.mrb[0].mxu0
  %1092 = vmatprep.mubr.f32.mxu0 %v744
  %1093 = vmatmul.mubr.f32.gmra.mrb[0].mxu0 %v743
  %v1094 = vpop.f32.mrb[0].mxu0
  %v1095 = vadd.f32 0.0, %v1094
  %v1096 = vpop.f32.mrb[0].mxu0
  %1097 = vmatprep.mubr.f32.mxu0 %v746
  %1098 = vmatmul.mubr.f32.gmra.mrb[0].mxu0 %v745
  %v1099 = vpop.f32.mrb[0].mxu0
  %v1100 = vadd.f32 0.0, %v1099
  %v1101 = vpop.f32.mrb[0].mxu0
  %1102 = vmatprep.mubr.f32.mxu0 %v748
  %1103 = vmatmul.mubr.f32.gmra.mrb[0].mxu0 %v747
  %v1104 = vpop.f32.mrb[0].mxu0
  %v1105 = vadd.f32 0.0, %v1104
  %v1106 = vpop.f32.mrb[0].mxu0
  %1107 = vmatprep.mubr.f32.mxu0 %v750
  %1108 = vmatmul.mubr.f32.gmra.mrb[0].mxu0 %v749
  %v1109 = vpop.f32.mrb[0].mxu0
  %v1110 = vadd.f32 0.0, %v1109
  %v1111 = vpop.f32.mrb[0].mxu0
  %1112 = vmatprep.mubr.f32.mxu0 %v752
  %1113 = vmatmul.mubr.f32.gmra.mrb[0].mxu0 %v751
  %v1114 = vpop.f32.mrb[0].mxu0
  %v1115 = vadd.f32 0.0, %v1114
  %v1116 = vpop.f32.mrb[0].mxu0
  %1117 = vmatprep.mubr.f32.mxu0 %v754
  %1118 = vmatmul.mubr.f32.gmra.mrb[0].mxu0 %v753
  %v1119 = vpop.f32.mrb[0].mxu0
  %v1120 = vadd.f32 0.0, %v1119
  %v1121 = vpop.f32.mrb[0].mxu0
  %1122 = vmatprep.mubr.f32.mxu0 %v756
  %1123 = vmatmul.mubr.f32.gmra.mrb[0].mxu0 %v755
  %v1124 = vpop.f32.mrb[0].mxu0
  %v1125 = vadd.f32 0.0, %v1124
  %v1126 = vpop.f32.mrb[0].mxu0
  %1127 = vmatprep.mubr.f32.mxu0 %v758
  %1128 = vmatmul.mubr.f32.gmra.mrb[0].mxu0 %v757
  %v1129 = vpop.f32.mrb[0].mxu0
  %v1130 = vadd.f32 0.0, %v1129
  %v1131 = vpop.f32.mrb[0].mxu0
  %1132 = vmatprep.mubr.f32.mxu0 %v760
  %1133 = vmatmul.mubr.f32.gmra.mrb[0].mxu0 %v759
  %v1134 = vpop.f32.mrb[0].mxu0
  %v1135 = vadd.f32 0.0, %v1134
  %v1136 = vpop.f32.mrb[0].mxu0
  %1137 = vmatprep.mubr.f32.mxu0 %v762
  %1138 = vmatmul.mubr.f32.gmra.mrb[0].mxu0 %v761
  %v1139 = vpop.f32.mrb[0].mxu0
  %v1140 = vadd.f32 0.0, %v1139
  %v1141 = vpop.f32.mrb[0].mxu0
  %1142 = vmatprep.mubr.f32.mxu0 %v764
  %1143 = vmatmul.mubr.f32.gmra.mrb[0].mxu0 %v763
  %v1144 = vpop.f32.mrb[0].mxu0
  %v1145 = vadd.f32 0.0, %v1144
  %v1146 = vpop.f32.mrb[0].mxu0
  %1147 = vmatprep.mubr.f32.mxu0 %v766
  %1148 = vmatmul.mubr.f32.gmra.mrb[0].mxu0 %v765
  %v1149 = vpop.f32.mrb[0].mxu0
  %v1150 = vadd.f32 0.0, %v1149
  %v1151 = vpop.f32.mrb[0].mxu0
  %1152 = vmatprep.mubr.f32.mxu0 %v768
  %1153 = vmatmul.mubr.f32.gmra.mrb[0].mxu0 %v767
  %v1154 = vpop.f32.mrb[0].mxu0
  %v1155 = vadd.f32 0.0, %v1154
  %v1156 = vpop.f32.mrb[0].mxu0
  %1157 = vmatprep.mubr.f32.mxu0 %v770
  %1158 = vmatmul.mubr.f32.gmra.mrb[0].mxu0 %v769
  %v1159 = vpop.f32.mrb[0].mxu0
  %v1160 = vadd.f32 0.0, %v1159
  %v1161 = vpop.f32.mrb[0].mxu0
  %1162 = vmatprep.mubr.f32.mxu0 %v772
  %1163 = vmatmul.mubr.f32.gmra.mrb[0].mxu0 %v771
  %v1164 = vpop.f32.mrb[0].mxu0
  %v1165 = vadd.f32 0.0, %v1164
  %v1166 = vpop.f32.mrb[0].mxu0
  %1167 = vmatprep.mubr.f32.mxu0 %v774
  %1168 = vmatmul.mubr.f32.gmra.mrb[0].mxu0 %v773
  %v1169 = vpop.f32.mrb[0].mxu0
  %v1170 = vadd.f32 0.0, %v1169
  %v1171 = vpop.f32.mrb[0].mxu0
  %1172 = vmatprep.mubr.f32.mxu0 %v776
  %1173 = vmatmul.mubr.f32.gmra.mrb[0].mxu0 %v775
  %v1174 = vpop.f32.mrb[0].mxu0
  %v1175 = vadd.f32 0.0, %v1174
  %v1176 = vpop.f32.mrb[0].mxu0
  %1177 = vmatprep.mubr.f32.mxu0 %v778
  %1178 = vmatmul.mubr.f32.gmra.mrb[0].mxu0 %v777
  %v1179 = vpop.f32.mrb[0].mxu0
  %v1180 = vadd.f32 0.0, %v1179
  %v1181 = vpop.f32.mrb[0].mxu0
  %1182 = vmatprep.mubr.f32.mxu0 %v780
  %1183 = vmatmul.mubr.f32.gmra.mrb[0].mxu0 %v779
  %v1184 = vpop.f32.mrb[0].mxu0
  %v1185 = vadd.f32 0.0, %v1184
  %v1186 = vpop.f32.mrb[0].mxu0
  %1187 = vmatprep.mubr.f32.mxu0 %v782
  %1188 = vmatmul.mubr.f32.gmra.mrb[0].mxu0 %v781
  %v1189 = vpop.f32.mrb[0].mxu0
  %v1190 = vadd.f32 0.0, %v1189
  %v1191 = vpop.f32.mrb[0].mxu0
  %1192 = vmatprep.mubr.f32.mxu0 %v784
  %1193 = vmatmul.mubr.f32.gmra.mrb[0].mxu0 %v783
  %v1194 = vpop.f32.mrb[0].mxu0
  %v1195 = vadd.f32 0.0, %v1194
  %v1196 = vpop.f32.mrb[0].mxu0
  %1197 = vmatprep.mubr.f32.mxu0 %v786
  %1198 = vmatmul.mubr.f32.gmra.mrb[0].mxu0 %v785
  %v1199 = vpop.f32.mrb[0].mxu0
  %v1200 = vadd.f32 0.0, %v1199
  %v1201 = vpop.f32.mrb[0].mxu0
  %1202 = vmatprep.mubr.f32.mxu0 %v788
  %1203 = vmatmul.mubr.f32.gmra.mrb[0].mxu0 %v787
  %v1204 = vpop.f32.mrb[0].mxu0
  %v1205 = vadd.f32 0.0, %v1204
  %v1206 = vpop.f32.mrb[0].mxu0
  %1207 = vmatprep.mubr.f32.mxu0 %v790
  %1208 = vmatmul.mubr.f32.gmra.mrb[0].mxu0 %v789
  %v1209 = vpop.f32.mrb[0].mxu0
  %v1210 = vadd.f32 0.0, %v1209
  %v1211 = vpop.f32.mrb[0].mxu0
  %1212 = vmatprep.mubr.f32.mxu0 %v792
  %1213 = vmatmul.mubr.f32.gmra.mrb[0].mxu0 %v791
  %v1214 = vpop.f32.mrb[0].mxu0
  %v1215 = vadd.f32 0.0, %v1214
  %v1216 = vpop.f32.mrb[0].mxu0
  %1217 = vmatprep.mubr.f32.mxu0 %v794
  %1218 = vmatmul.mubr.f32.gmra.mrb[0].mxu0 %v793
  %v1219 = vpop.f32.mrb[0].mxu0
  %v1220 = vadd.f32 0.0, %v1219
  %v1221 = vpop.f32.mrb[0].mxu0
  %1222 = vmatprep.mubr.f32.mxu0 %v796
  %1223 = vmatmul.mubr.f32.gmra.mrb[0].mxu0 %v795
  %v1224 = vpop.f32.mrb[0].mxu0
  %v1225 = vadd.f32 0.0, %v1224
  %v1226 = vpop.f32.mrb[0].mxu0
  %1227 = vmatprep.mubr.f32.mxu0 %v798
  %1228 = vmatmul.mubr.f32.gmra.mrb[0].mxu0 %v797
  %v1229 = vpop.f32.mrb[0].mxu0
  %v1230 = vadd.f32 0.0, %v1229
  %v1231 = vpop.f32.mrb[0].mxu0
  %1232 = vmatprep.mubr.f32.mxu0 %v800
  %1233 = vmatmul.mubr.f32.gmra.mrb[0].mxu0 %v799
  %v1234 = vpop.f32.mrb[0].mxu0
  %v1235 = vadd.f32 0.0, %v1234
  %v1236 = vpop.f32.mrb[0].mxu0
  %1237 = vmatprep.mubr.f32.mxu0 %v802
  %1238 = vmatmul.mubr.f32.gmra.mrb[0].mxu0 %v801
  %v1239 = vpop.f32.mrb[0].mxu0
  %v1240 = vadd.f32 0.0, %v1239
  %v1241 = vpop.f32.mrb[0].mxu0
  %1242 = vmatprep.mubr.f32.mxu0 %v804
  %1243 = vmatmul.mubr.f32.gmra.mrb[0].mxu0 %v803
  %v1244 = vpop.f32.mrb[0].mxu0
  %v1245 = vadd.f32 0.0, %v1244
  %v1246 = vpop.f32.mrb[0].mxu0
  %1247 = vmatprep.mubr.f32.mxu0 %v806
  %1248 = vmatmul.mubr.f32.gmra.mrb[0].mxu0 %v805
  %v1249 = vpop.f32.mrb[0].mxu0
  %v1250 = vadd.f32 0.0, %v1249
  %v1251 = vpop.f32.mrb[0].mxu0
  %1252 = vmatprep.mubr.f32.mxu0 %v808
  %1253 = vmatmul.mubr.f32.gmra.mrb[0].mxu0 %v807
  %v1254 = vpop.f32.mrb[0].mxu0
  %v1255 = vadd.f32 0.0, %v1254
  %v1256 = vpop.f32.mrb[0].mxu0
  %1257 = vmatprep.mubr.f32.mxu0 %v810
  %1258 = vmatmul.mubr.f32.gmra.mrb[0].mxu0 %v809
  %v1259 = vpop.f32.mrb[0].mxu0
  %v1260 = vadd.f32 0.0, %v1259
  %v1261 = vpop.f32.mrb[0].mxu0
  %1262 = vmatprep.mubr.f32.mxu0 %v812
  %1263 = vmatmul.mubr.f32.gmra.mrb[0].mxu0 %v811
  %v1264 = vpop.f32.mrb[0].mxu0
  %v1265 = vadd.f32 0.0, %v1264
  %v1266 = vpop.f32.mrb[0].mxu0
  %1267 = vmatprep.mubr.f32.mxu0 %v814
  %1268 = vmatmul.mubr.f32.gmra.mrb[0].mxu0 %v813
  %v1269 = vpop.f32.mrb[0].mxu0
  %v1270 = vadd.f32 0.0, %v1269
  %v1271 = vpop.f32.mrb[0].mxu0
  %1272 = vmatprep.mubr.f32.mxu0 %v816
  %1273 = vmatmul.mubr.f32.gmra.mrb[0].mxu0 %v815
  %v1274 = vpop.f32.mrb[0].mxu0
  %v1275 = vadd.f32 0.0, %v1274
  %v1276 = vpop.f32.mrb[0].mxu0
  %1277 = vmatprep.mubr.f32.mxu0 %v818
  %1278 = vmatmul.mubr.f32.gmra.mrb[0].mxu0 %v817
  %v1279 = vpop.f32.mrb[0].mxu0
  %v1280 = vadd.f32 0.0, %v1279
  %v1281 = vpop.f32.mrb[0].mxu0
  %1282 = vmatprep.mubr.f32.mxu0 %v820
  %1283 = vmatmul.mubr.f32.gmra.mrb[0].mxu0 %v819
  %v1284 = vpop.f32.mrb[0].mxu0
  %v1285 = vadd.f32 0.0, %v1284
  %v1286 = vpop.f32.mrb[0].mxu0
  %1287 = vmatprep.mubr.f32.mxu0 %v822
  %1288 = vmatmul.mubr.f32.gmra.mrb[0].mxu0 %v821
  %v1289 = vpop.f32.mrb[0].mxu0
  %v1290 = vadd.f32 0.0, %v1289
  %v1291 = vpop.f32.mrb[0].mxu0
  %1292 = vmatprep.mubr.f32.mxu0 %v824
  %1293 = vmatmul.mubr.f32.gmra.mrb[0].mxu0 %v823
  %v1294 = vpop.f32.mrb[0].mxu0
  %v1295 = vadd.f32 0.0, %v1294
  %v1296 = vpop.f32.mrb[0].mxu0
  %1297 = vmatprep.mubr.f32.mxu0 %v826
  %1298 = vmatmul.mubr.f32.gmra.mrb[0].mxu0 %v825
  %v1299 = vpop.f32.mrb[0].mxu0
  %v1300 = vadd.f32 0.0, %v1299
  %v1301 = vpop.f32.mrb[0].mxu0
  %1302 = vmatprep.mubr.f32.mxu0 %v828
  %1303 = vmatmul.mubr.f32.gmra.mrb[0].mxu0 %v827
  %v1304 = vpop.f32.mrb[0].mxu0
  %v1305 = vadd.f32 0.0, %v1304
  %v1306 = vpop.f32.mrb[0].mxu0
  %1307 = vmatprep.mubr.f32.mxu0 %v830
  %1308 = vmatmul.mubr.f32.gmra.mrb[0].mxu0 %v829
  %v1309 = vpop.f32.mrb[0].mxu0
  %v1310 = vadd.f32 0.0, %v1309
  %v1311 = vpop.f32.mrb[0].mxu0
  %1312 = vmatprep.mubr.f32.mxu0 %v832
  %1313 = vmatmul.mubr.f32.gmra.mrb[0].mxu0 %v831
  %v1314 = vpop.f32.mrb[0].mxu0
  %v1315 = vadd.f32 0.0, %v1314
  %v1316 = vpop.f32.mrb[0].mxu0
  %1317 = vmatprep.mubr.f32.mxu0 %v834
  %1318 = vmatmul.mubr.f32.gmra.mrb[0].mxu0 %v833
  %v1319 = vpop.f32.mrb[0].mxu0
  %v1320 = vadd.f32 0.0, %v1319
  %v1321 = vpop.f32.mrb[0].mxu0
  %1322 = vmatprep.mubr.f32.mxu0 %v836
  %1323 = vmatmul.mubr.f32.gmra.mrb[0].mxu0 %v835
  %v1324 = vpop.f32.mrb[0].mxu0
  %v1325 = vadd.f32 0.0, %v1324
  %v1326 = vpop.f32.mrb[0].mxu0
  %1327 = vmatprep.mubr.f32.mxu0 %v838
  %1328 = vmatmul.mubr.f32.gmra.mrb[0].mxu0 %v837
  %v1329 = vpop.f32.mrb[0].mxu0
  %v1330 = vadd.f32 0.0, %v1329
  %v1331 = vpop.f32.mrb[0].mxu0
  %1332 = vmatprep.mubr.f32.mxu0 %v840
  %1333 = vmatmul.mubr.f32.gmra.mrb[0].mxu0 %v839
  %v1334 = vpop.f32.mrb[0].mxu0
  %v1335 = vadd.f32 0.0, %v1334
  %v1336 = vpop.f32.mrb[0].mxu0
  %1337 = vdwg.mxu0
  %v1339 = vsel %vm342, %v1020, 0
  %v1342 = vsel %vm342, %v1025, 0
  %v1345 = vsel %vm342, %v1030, 0
  %v1348 = vsel %vm342, %v1035, 0
  %v1351 = vsel %vm342, %v1040, 0
  %v1354 = vsel %vm342, %v1045, 0
  %v1357 = vsel %vm342, %v1050, 0
  %v1360 = vsel %vm342, %v1055, 0
  %1362 = vmatprep.subr.mxu0 0.0
  %1363 = vmatpush1.msra.mxu0 %v849
  %1364 = vmatprep.subr.mxu0 0.0
  %1365 = vmatpush1.msra.mxu0 %v850
  %1366 = vmatprep.subr.mxu0 0.0
  %1367 = vmatpush1.msra.mxu0 %v851
  %1368 = vmatprep.subr.mxu0 0.0
  %1369 = vmatpush1.msra.mxu0 %v852
  %1370 = vmatprep.subr.mxu0 0.0
  %1371 = vmatpush1.msra.mxu0 %v853
  %1372 = vmatprep.subr.mxu0 0.0
  %1373 = vmatpush1.msra.mxu0 %v854
  %1374 = vmatprep.subr.mxu0 0.0
  %1375 = vmatpush1.msra.mxu0 %v855
  %1376 = vmatprep.subr.mxu0 0.0
  %1377 = vmatpush1.msra.mxu0 %v856
  %1378 = vmatprep.subr.mxu0 0.0
  %1379 = vmatpush1.msra.mxu0 0.0
  %1380 = vmatprep.subr.mxu0 0.0
  %1381 = vmatpush1.msra.mxu0 0.0
  %1382 = vmatprep.subr.mxu0 0.0
  %1383 = vmatpush1.msra.mxu0 0.0
  %1384 = vmatprep.subr.mxu0 0.0
  %1385 = vmatpush1.msra.mxu0 0.0
  %1386 = vmatprep.subr.mxu0 0.0
  %1387 = vmatpush1.msra.mxu0 0.0
  %1388 = vmatprep.subr.mxu0 0.0
  %1389 = vmatpush1.msra.mxu0 0.0
  %1390 = vmatprep.subr.mxu0 0.0
  %1391 = vmatpush1.msra.mxu0 0.0
  %1392 = vmatprep.subr.mxu0 0.0
  %1393 = vmatpush1.msra.mxu0 0.0
  %1394 = vmatprep.subr.mxu0 0.0
  %1395 = vmatpush1.msra.mxu0 0.0
  %1396 = vmatprep.subr.mxu0 0.0
  %1397 = vmatpush1.msra.mxu0 0.0
  %1398 = vmatprep.subr.mxu0 0.0
  %1399 = vmatpush1.msra.mxu0 0.0
  %1400 = vmatprep.subr.mxu0 0.0
  %1401 = vmatpush1.msra.mxu0 0.0
  %1402 = vmatprep.subr.mxu0 0.0
  %1403 = vmatpush1.msra.mxu0 0.0
  %1404 = vmatprep.subr.mxu0 0.0
  %1405 = vmatpush1.msra.mxu0 0.0
  %1406 = vmatprep.subr.mxu0 0.0
  %1407 = vmatpush1.msra.mxu0 0.0
  %1408 = vmatprep.subr.mxu0 0.0
  %1409 = vmatpush1.msra.mxu0 0.0
  %1410 = vmatprep.subr.mxu0 0.0
  %1411 = vmatpush1.msra.mxu0 0.0
  %1412 = vmatprep.subr.mxu0 0.0
  %1413 = vmatpush1.msra.mxu0 0.0
  %1414 = vmatprep.subr.mxu0 0.0
  %1415 = vmatpush1.msra.mxu0 0.0
  %1416 = vmatprep.subr.mxu0 0.0
  %1417 = vmatpush1.msra.mxu0 0.0
  %1418 = vmatprep.subr.mxu0 0.0
  %1419 = vmatpush1.msra.mxu0 0.0
  %1420 = vmatprep.subr.mxu0 0.0
  %1421 = vmatpush1.msra.mxu0 0.0
  %1422 = vmatprep.subr.mxu0 0.0
  %1423 = vmatpush1.msra.mxu0 0.0
  %1424 = vmatprep.subr.mxu0 0.0
  %1425 = vmatpush1.msra.mxu0 0.0
  %1426 = vmatprep.mubr.f32.mxu0 0.0
  %1427 = vmatmul.mubr.f32.gmra.mrb[0].mxu0 %v1339
  %v1428 = vpop.f32.mrb[0].mxu0
  %v1429 = vadd.f32 0.0, %v1428
  %v1430 = vpop.f32.mrb[0].mxu0
  %1431 = vmatprep.mubr.f32.mxu0 0.0
  %1432 = vmatmul.mubr.f32.gmra.mrb[0].mxu0 %v1342
  %v1433 = vpop.f32.mrb[0].mxu0
  %v1434 = vadd.f32 0.0, %v1433
  %v1435 = vpop.f32.mrb[0].mxu0
  %1436 = vmatprep.mubr.f32.mxu0 0.0
  %1437 = vmatmul.mubr.f32.gmra.mrb[0].mxu0 %v1345
  %v1438 = vpop.f32.mrb[0].mxu0
  %v1439 = vadd.f32 0.0, %v1438
  %v1440 = vpop.f32.mrb[0].mxu0
  %1441 = vmatprep.mubr.f32.mxu0 0.0
  %1442 = vmatmul.mubr.f32.gmra.mrb[0].mxu0 %v1348
  %v1443 = vpop.f32.mrb[0].mxu0
  %v1444 = vadd.f32 0.0, %v1443
  %v1445 = vpop.f32.mrb[0].mxu0
  %1446 = vmatprep.mubr.f32.mxu0 0.0
  %1447 = vmatmul.mubr.f32.gmra.mrb[0].mxu0 %v1351
  %v1448 = vpop.f32.mrb[0].mxu0
  %v1449 = vadd.f32 0.0, %v1448
  %v1450 = vpop.f32.mrb[0].mxu0
  %1451 = vmatprep.mubr.f32.mxu0 0.0
  %1452 = vmatmul.mubr.f32.gmra.mrb[0].mxu0 %v1354
  %v1453 = vpop.f32.mrb[0].mxu0
  %v1454 = vadd.f32 0.0, %v1453
  %v1455 = vpop.f32.mrb[0].mxu0
  %1456 = vmatprep.mubr.f32.mxu0 0.0
  %1457 = vmatmul.mubr.f32.gmra.mrb[0].mxu0 %v1357
  %v1458 = vpop.f32.mrb[0].mxu0
  %v1459 = vadd.f32 0.0, %v1458
  %v1460 = vpop.f32.mrb[0].mxu0
  %1461 = vmatprep.mubr.f32.mxu0 0.0
  %1462 = vmatmul.mubr.f32.gmra.mrb[0].mxu0 %v1360
  %v1463 = vpop.f32.mrb[0].mxu0
  %v1464 = vadd.f32 0.0, %v1463
  %v1465 = vpop.f32.mrb[0].mxu0
  %1466 = vdwg.mxu0
  %v1468 = vsel %vm342, %v980, 0
  %v1471 = vsel %vm342, %v985, 0
  %v1474 = vsel %vm342, %v990, 0
  %v1477 = vsel %vm342, %v995, 0
  %v1480 = vsel %vm342, %v1000, 0
  %v1483 = vsel %vm342, %v1005, 0
  %v1486 = vsel %vm342, %v1010, 0
  %v1489 = vsel %vm342, %v1015, 0
  %1491 = vmatprep.subr.mxu0 0.0
  %1492 = vmatpush1.msra.mxu0 %v841
  %1493 = vmatprep.subr.mxu0 0.0
  %1494 = vmatpush1.msra.mxu0 %v842
  %1495 = vmatprep.subr.mxu0 0.0
  %1496 = vmatpush1.msra.mxu0 %v843
  %1497 = vmatprep.subr.mxu0 0.0
  %1498 = vmatpush1.msra.mxu0 %v844
  %1499 = vmatprep.subr.mxu0 0.0
  %1500 = vmatpush1.msra.mxu0 %v845
  %1501 = vmatprep.subr.mxu0 0.0
  %1502 = vmatpush1.msra.mxu0 %v846
  %1503 = vmatprep.subr.mxu0 0.0
  %1504 = vmatpush1.msra.mxu0 %v847
  %1505 = vmatprep.subr.mxu0 0.0
  %1506 = vmatpush1.msra.mxu0 %v848
  %1507 = vmatprep.subr.mxu0 0.0
  %1508 = vmatpush1.msra.mxu0 0.0
  %1509 = vmatprep.subr.mxu0 0.0
  %1510 = vmatpush1.msra.mxu0 0.0
  %1511 = vmatprep.subr.mxu0 0.0
  %1512 = vmatpush1.msra.mxu0 0.0
  %1513 = vmatprep.subr.mxu0 0.0
  %1514 = vmatpush1.msra.mxu0 0.0
  %1515 = vmatprep.subr.mxu0 0.0
  %1516 = vmatpush1.msra.mxu0 0.0
  %1517 = vmatprep.subr.mxu0 0.0
  %1518 = vmatpush1.msra.mxu0 0.0
  %1519 = vmatprep.subr.mxu0 0.0
  %1520 = vmatpush1.msra.mxu0 0.0
  %1521 = vmatprep.subr.mxu0 0.0
  %1522 = vmatpush1.msra.mxu0 0.0
  %1523 = vmatprep.subr.mxu0 0.0
  %1524 = vmatpush1.msra.mxu0 0.0
  %1525 = vmatprep.subr.mxu0 0.0
  %1526 = vmatpush1.msra.mxu0 0.0
  %1527 = vmatprep.subr.mxu0 0.0
  %1528 = vmatpush1.msra.mxu0 0.0
  %1529 = vmatprep.subr.mxu0 0.0
  %1530 = vmatpush1.msra.mxu0 0.0
  %1531 = vmatprep.subr.mxu0 0.0
  %1532 = vmatpush1.msra.mxu0 0.0
  %1533 = vmatprep.subr.mxu0 0.0
  %1534 = vmatpush1.msra.mxu0 0.0
  %1535 = vmatprep.subr.mxu0 0.0
  %1536 = vmatpush1.msra.mxu0 0.0
  %1537 = vmatprep.subr.mxu0 0.0
  %1538 = vmatpush1.msra.mxu0 0.0
  %1539 = vmatprep.subr.mxu0 0.0
  %1540 = vmatpush1.msra.mxu0 0.0
  %1541 = vmatprep.subr.mxu0 0.0
  %1542 = vmatpush1.msra.mxu0 0.0
  %1543 = vmatprep.subr.mxu0 0.0
  %1544 = vmatpush1.msra.mxu0 0.0
  %1545 = vmatprep.subr.mxu0 0.0
  %1546 = vmatpush1.msra.mxu0 0.0
  %1547 = vmatprep.subr.mxu0 0.0
  %1548 = vmatpush1.msra.mxu0 0.0
  %1549 = vmatprep.subr.mxu0 0.0
  %1550 = vmatpush1.msra.mxu0 0.0
  %1551 = vmatprep.subr.mxu0 0.0
  %1552 = vmatpush1.msra.mxu0 0.0
  %1553 = vmatprep.subr.mxu0 0.0
  %1554 = vmatpush1.msra.mxu0 0.0
  %1555 = vmatprep.mubr.f32.mxu0 0.0
  %1556 = vmatmul.mubr.f32.gmra.mrb[0].mxu0 %v1468
  %v1557 = vpop.f32.mrb[0].mxu0
  %v1558 = vadd.f32 %v1429, %v1557
  %v1559 = vpop.f32.mrb[0].mxu0
  %1560 = vmatprep.mubr.f32.mxu0 0.0
  %1561 = vmatmul.mubr.f32.gmra.mrb[0].mxu0 %v1471
  %v1562 = vpop.f32.mrb[0].mxu0
  %v1563 = vadd.f32 %v1434, %v1562
  %v1564 = vpop.f32.mrb[0].mxu0
  %1565 = vmatprep.mubr.f32.mxu0 0.0
  %1566 = vmatmul.mubr.f32.gmra.mrb[0].mxu0 %v1474
  %v1567 = vpop.f32.mrb[0].mxu0
  %v1568 = vadd.f32 %v1439, %v1567
  %v1569 = vpop.f32.mrb[0].mxu0
  %1570 = vmatprep.mubr.f32.mxu0 0.0
  %1571 = vmatmul.mubr.f32.gmra.mrb[0].mxu0 %v1477
  %v1572 = vpop.f32.mrb[0].mxu0
  %v1573 = vadd.f32 %v1444, %v1572
  %v1574 = vpop.f32.mrb[0].mxu0
  %1575 = vmatprep.mubr.f32.mxu0 0.0
  %1576 = vmatmul.mubr.f32.gmra.mrb[0].mxu0 %v1480
  %v1577 = vpop.f32.mrb[0].mxu0
  %v1578 = vadd.f32 %v1449, %v1577
  %v1579 = vpop.f32.mrb[0].mxu0
  %1580 = vmatprep.mubr.f32.mxu0 0.0
  %1581 = vmatmul.mubr.f32.gmra.mrb[0].mxu0 %v1483
  %v1582 = vpop.f32.mrb[0].mxu0
  %v1583 = vadd.f32 %v1454, %v1582
  %v1584 = vpop.f32.mrb[0].mxu0
  %1585 = vmatprep.mubr.f32.mxu0 0.0
  %1586 = vmatmul.mubr.f32.gmra.mrb[0].mxu0 %v1486
  %v1587 = vpop.f32.mrb[0].mxu0
  %v1588 = vadd.f32 %v1459, %v1587
  %v1589 = vpop.f32.mrb[0].mxu0
  %1590 = vmatprep.mubr.f32.mxu0 0.0
  %1591 = vmatmul.mubr.f32.gmra.mrb[0].mxu0 %v1489
  %v1592 = vpop.f32.mrb[0].mxu0
  %v1593 = vadd.f32 %v1464, %v1592
  %v1594 = vpop.f32.mrb[0].mxu0
  %1595 = vdwg.mxu0
  %v1597 = vsel %vm342, %v1060, 0
  %v1600 = vsel %vm342, %v1065, 0
  %v1603 = vsel %vm342, %v1070, 0
  %v1606 = vsel %vm342, %v1075, 0
  %v1609 = vsel %vm342, %v1080, 0
  %v1612 = vsel %vm342, %v1085, 0
  %v1615 = vsel %vm342, %v1090, 0
  %v1618 = vsel %vm342, %v1095, 0
  %1620 = vmatprep.subr.mxu0 0.0
  %1621 = vmatpush1.msra.mxu0 %v857
  %1622 = vmatprep.subr.mxu0 0.0
  %1623 = vmatpush1.msra.mxu0 %v858
  %1624 = vmatprep.subr.mxu0 0.0
  %1625 = vmatpush1.msra.mxu0 %v859
  %1626 = vmatprep.subr.mxu0 0.0
  %1627 = vmatpush1.msra.mxu0 %v860
  %1628 = vmatprep.subr.mxu0 0.0
  %1629 = vmatpush1.msra.mxu0 %v861
  %1630 = vmatprep.subr.mxu0 0.0
  %1631 = vmatpush1.msra.mxu0 %v862
  %1632 = vmatprep.subr.mxu0 0.0
  %1633 = vmatpush1.msra.mxu0 %v863
  %1634 = vmatprep.subr.mxu0 0.0
  %1635 = vmatpush1.msra.mxu0 %v864
  %1636 = vmatprep.subr.mxu0 0.0
  %1637 = vmatpush1.msra.mxu0 0.0
  %1638 = vmatprep.subr.mxu0 0.0
  %1639 = vmatpush1.msra.mxu0 0.0
  %1640 = vmatprep.subr.mxu0 0.0
  %1641 = vmatpush1.msra.mxu0 0.0
  %1642 = vmatprep.subr.mxu0 0.0
  %1643 = vmatpush1.msra.mxu0 0.0
  %1644 = vmatprep.subr.mxu0 0.0
  %1645 = vmatpush1.msra.mxu0 0.0
  %1646 = vmatprep.subr.mxu0 0.0
  %1647 = vmatpush1.msra.mxu0 0.0
  %1648 = vmatprep.subr.mxu0 0.0
  %1649 = vmatpush1.msra.mxu0 0.0
  %1650 = vmatprep.subr.mxu0 0.0
  %1651 = vmatpush1.msra.mxu0 0.0
  %1652 = vmatprep.subr.mxu0 0.0
  %1653 = vmatpush1.msra.mxu0 0.0
  %1654 = vmatprep.subr.mxu0 0.0
  %1655 = vmatpush1.msra.mxu0 0.0
  %1656 = vmatprep.subr.mxu0 0.0
  %1657 = vmatpush1.msra.mxu0 0.0
  %1658 = vmatprep.subr.mxu0 0.0
  %1659 = vmatpush1.msra.mxu0 0.0
  %1660 = vmatprep.subr.mxu0 0.0
  %1661 = vmatpush1.msra.mxu0 0.0
  %1662 = vmatprep.subr.mxu0 0.0
  %1663 = vmatpush1.msra.mxu0 0.0
  %1664 = vmatprep.subr.mxu0 0.0
  %1665 = vmatpush1.msra.mxu0 0.0
  %1666 = vmatprep.subr.mxu0 0.0
  %1667 = vmatpush1.msra.mxu0 0.0
  %1668 = vmatprep.subr.mxu0 0.0
  %1669 = vmatpush1.msra.mxu0 0.0
  %1670 = vmatprep.subr.mxu0 0.0
  %1671 = vmatpush1.msra.mxu0 0.0
  %1672 = vmatprep.subr.mxu0 0.0
  %1673 = vmatpush1.msra.mxu0 0.0
  %1674 = vmatprep.subr.mxu0 0.0
  %1675 = vmatpush1.msra.mxu0 0.0
  %1676 = vmatprep.subr.mxu0 0.0
  %1677 = vmatpush1.msra.mxu0 0.0
  %1678 = vmatprep.subr.mxu0 0.0
  %1679 = vmatpush1.msra.mxu0 0.0
  %1680 = vmatprep.subr.mxu0 0.0
  %1681 = vmatpush1.msra.mxu0 0.0
  %1682 = vmatprep.subr.mxu0 0.0
  %1683 = vmatpush1.msra.mxu0 0.0
  %1684 = vmatprep.mubr.f32.mxu0 0.0
  %1685 = vmatmul.mubr.f32.gmra.mrb[0].mxu0 %v1597
  %v1686 = vpop.f32.mrb[0].mxu0
  %v1687 = vadd.f32 0.0, %v1686
  %v1688 = vpop.f32.mrb[0].mxu0
  %1689 = vmatprep.mubr.f32.mxu0 0.0
  %1690 = vmatmul.mubr.f32.gmra.mrb[0].mxu0 %v1600
  %v1691 = vpop.f32.mrb[0].mxu0
  %v1692 = vadd.f32 0.0, %v1691
  %v1693 = vpop.f32.mrb[0].mxu0
  %1694 = vmatprep.mubr.f32.mxu0 0.0
  %1695 = vmatmul.mubr.f32.gmra.mrb[0].mxu0 %v1603
  %v1696 = vpop.f32.mrb[0].mxu0
  %v1697 = vadd.f32 0.0, %v1696
  %v1698 = vpop.f32.mrb[0].mxu0
  %1699 = vmatprep.mubr.f32.mxu0 0.0
  %1700 = vmatmul.mubr.f32.gmra.mrb[0].mxu0 %v1606
  %v1701 = vpop.f32.mrb[0].mxu0
  %v1702 = vadd.f32 0.0, %v1701
  %v1703 = vpop.f32.mrb[0].mxu0
  %1704 = vmatprep.mubr.f32.mxu0 0.0
  %1705 = vmatmul.mubr.f32.gmra.mrb[0].mxu0 %v1609
  %v1706 = vpop.f32.mrb[0].mxu0
  %v1707 = vadd.f32 0.0, %v1706
  %v1708 = vpop.f32.mrb[0].mxu0
  %1709 = vmatprep.mubr.f32.mxu0 0.0
  %1710 = vmatmul.mubr.f32.gmra.mrb[0].mxu0 %v1612
  %v1711 = vpop.f32.mrb[0].mxu0
  %v1712 = vadd.f32 0.0, %v1711
  %v1713 = vpop.f32.mrb[0].mxu0
  %1714 = vmatprep.mubr.f32.mxu0 0.0
  %1715 = vmatmul.mubr.f32.gmra.mrb[0].mxu0 %v1615
  %v1716 = vpop.f32.mrb[0].mxu0
  %v1717 = vadd.f32 0.0, %v1716
  %v1718 = vpop.f32.mrb[0].mxu0
  %1719 = vmatprep.mubr.f32.mxu0 0.0
  %1720 = vmatmul.mubr.f32.gmra.mrb[0].mxu0 %v1618
  %v1721 = vpop.f32.mrb[0].mxu0
  %v1722 = vadd.f32 0.0, %v1721
  %v1723 = vpop.f32.mrb[0].mxu0
  %1724 = vdwg.mxu0
  %v1725 = vadd.f32 %v1558, %v1687
  %v1726 = vadd.f32 %v1563, %v1692
  %v1727 = vadd.f32 %v1568, %v1697
  %v1728 = vadd.f32 %v1573, %v1702
  %v1729 = vadd.f32 %v1578, %v1707
  %v1730 = vadd.f32 %v1583, %v1712
  %v1731 = vadd.f32 %v1588, %v1717
  %v1732 = vadd.f32 %v1593, %v1722
  %v1734 = vsel %vm342, %v1100, 0
  %v1737 = vsel %vm342, %v1105, 0
  %v1740 = vsel %vm342, %v1110, 0
  %v1743 = vsel %vm342, %v1115, 0
  %v1746 = vsel %vm342, %v1120, 0
  %v1749 = vsel %vm342, %v1125, 0
  %v1752 = vsel %vm342, %v1130, 0
  %v1755 = vsel %vm342, %v1135, 0
  %1757 = vmatprep.subr.mxu0 0.0
  %1758 = vmatpush1.msra.mxu0 %v865
  %1759 = vmatprep.subr.mxu0 0.0
  %1760 = vmatpush1.msra.mxu0 %v866
  %1761 = vmatprep.subr.mxu0 0.0
  %1762 = vmatpush1.msra.mxu0 %v867
  %1763 = vmatprep.subr.mxu0 0.0
  %1764 = vmatpush1.msra.mxu0 %v868
  %1765 = vmatprep.subr.mxu0 0.0
  %1766 = vmatpush1.msra.mxu0 %v869
  %1767 = vmatprep.subr.mxu0 0.0
  %1768 = vmatpush1.msra.mxu0 %v870
  %1769 = vmatprep.subr.mxu0 0.0
  %1770 = vmatpush1.msra.mxu0 %v871
  %1771 = vmatprep.subr.mxu0 0.0
  %1772 = vmatpush1.msra.mxu0 %v872
  %1773 = vmatprep.subr.mxu0 0.0
  %1774 = vmatpush1.msra.mxu0 0.0
  %1775 = vmatprep.subr.mxu0 0.0
  %1776 = vmatpush1.msra.mxu0 0.0
  %1777 = vmatprep.subr.mxu0 0.0
  %1778 = vmatpush1.msra.mxu0 0.0
  %1779 = vmatprep.subr.mxu0 0.0
  %1780 = vmatpush1.msra.mxu0 0.0
  %1781 = vmatprep.subr.mxu0 0.0
  %1782 = vmatpush1.msra.mxu0 0.0
  %1783 = vmatprep.subr.mxu0 0.0
  %1784 = vmatpush1.msra.mxu0 0.0
  %1785 = vmatprep.subr.mxu0 0.0
  %1786 = vmatpush1.msra.mxu0 0.0
  %1787 = vmatprep.subr.mxu0 0.0
  %1788 = vmatpush1.msra.mxu0 0.0
  %1789 = vmatprep.subr.mxu0 0.0
  %1790 = vmatpush1.msra.mxu0 0.0
  %1791 = vmatprep.subr.mxu0 0.0
  %1792 = vmatpush1.msra.mxu0 0.0
  %1793 = vmatprep.subr.mxu0 0.0
  %1794 = vmatpush1.msra.mxu0 0.0
  %1795 = vmatprep.subr.mxu0 0.0
  %1796 = vmatpush1.msra.mxu0 0.0
  %1797 = vmatprep.subr.mxu0 0.0
  %1798 = vmatpush1.msra.mxu0 0.0
  %1799 = vmatprep.subr.mxu0 0.0
  %1800 = vmatpush1.msra.mxu0 0.0
  %1801 = vmatprep.subr.mxu0 0.0
  %1802 = vmatpush1.msra.mxu0 0.0
  %1803 = vmatprep.subr.mxu0 0.0
  %1804 = vmatpush1.msra.mxu0 0.0
  %1805 = vmatprep.subr.mxu0 0.0
  %1806 = vmatpush1.msra.mxu0 0.0
  %1807 = vmatprep.subr.mxu0 0.0
  %1808 = vmatpush1.msra.mxu0 0.0
  %1809 = vmatprep.subr.mxu0 0.0
  %1810 = vmatpush1.msra.mxu0 0.0
  %1811 = vmatprep.subr.mxu0 0.0
  %1812 = vmatpush1.msra.mxu0 0.0
  %1813 = vmatprep.subr.mxu0 0.0
  %1814 = vmatpush1.msra.mxu0 0.0
  %1815 = vmatprep.subr.mxu0 0.0
  %1816 = vmatpush1.msra.mxu0 0.0
  %1817 = vmatprep.subr.mxu0 0.0
  %1818 = vmatpush1.msra.mxu0 0.0
  %1819 = vmatprep.subr.mxu0 0.0
  %1820 = vmatpush1.msra.mxu0 0.0
  %1821 = vmatprep.mubr.f32.mxu0 0.0
  %1822 = vmatmul.mubr.f32.gmra.mrb[0].mxu0 %v1734
  %v1823 = vpop.f32.mrb[0].mxu0
  %v1824 = vadd.f32 0.0, %v1823
  %v1825 = vpop.f32.mrb[0].mxu0
  %1826 = vmatprep.mubr.f32.mxu0 0.0
  %1827 = vmatmul.mubr.f32.gmra.mrb[0].mxu0 %v1737
  %v1828 = vpop.f32.mrb[0].mxu0
  %v1829 = vadd.f32 0.0, %v1828
  %v1830 = vpop.f32.mrb[0].mxu0
  %1831 = vmatprep.mubr.f32.mxu0 0.0
  %1832 = vmatmul.mubr.f32.gmra.mrb[0].mxu0 %v1740
  %v1833 = vpop.f32.mrb[0].mxu0
  %v1834 = vadd.f32 0.0, %v1833
  %v1835 = vpop.f32.mrb[0].mxu0
  %1836 = vmatprep.mubr.f32.mxu0 0.0
  %1837 = vmatmul.mubr.f32.gmra.mrb[0].mxu0 %v1743
  %v1838 = vpop.f32.mrb[0].mxu0
  %v1839 = vadd.f32 0.0, %v1838
  %v1840 = vpop.f32.mrb[0].mxu0
  %1841 = vmatprep.mubr.f32.mxu0 0.0
  %1842 = vmatmul.mubr.f32.gmra.mrb[0].mxu0 %v1746
  %v1843 = vpop.f32.mrb[0].mxu0
  %v1844 = vadd.f32 0.0, %v1843
  %v1845 = vpop.f32.mrb[0].mxu0
  %1846 = vmatprep.mubr.f32.mxu0 0.0
  %1847 = vmatmul.mubr.f32.gmra.mrb[0].mxu0 %v1749
  %v1848 = vpop.f32.mrb[0].mxu0
  %v1849 = vadd.f32 0.0, %v1848
  %v1850 = vpop.f32.mrb[0].mxu0
  %1851 = vmatprep.mubr.f32.mxu0 0.0
  %1852 = vmatmul.mubr.f32.gmra.mrb[0].mxu0 %v1752
  %v1853 = vpop.f32.mrb[0].mxu0
  %v1854 = vadd.f32 0.0, %v1853
  %v1855 = vpop.f32.mrb[0].mxu0
  %1856 = vmatprep.mubr.f32.mxu0 0.0
  %1857 = vmatmul.mubr.f32.gmra.mrb[0].mxu0 %v1755
  %v1858 = vpop.f32.mrb[0].mxu0
  %v1859 = vadd.f32 0.0, %v1858
  %v1860 = vpop.f32.mrb[0].mxu0
  %1861 = vdwg.mxu0
  %v1862 = vadd.f32 %v1725, %v1824
  %v1863 = vadd.f32 %v1726, %v1829
  %v1864 = vadd.f32 %v1727, %v1834
  %v1865 = vadd.f32 %v1728, %v1839
  %v1866 = vadd.f32 %v1729, %v1844
  %v1867 = vadd.f32 %v1730, %v1849
  %v1868 = vadd.f32 %v1731, %v1854
  %v1869 = vadd.f32 %v1732, %v1859
  %v1871 = vsel %vm342, %v1140, 0
  %v1874 = vsel %vm342, %v1145, 0
  %v1877 = vsel %vm342, %v1150, 0
  %v1880 = vsel %vm342, %v1155, 0
  %v1883 = vsel %vm342, %v1160, 0
  %v1886 = vsel %vm342, %v1165, 0
  %v1889 = vsel %vm342, %v1170, 0
  %v1892 = vsel %vm342, %v1175, 0
  %1894 = vmatprep.subr.mxu0 0.0
  %1895 = vmatpush1.msra.mxu0 %v873
  %1896 = vmatprep.subr.mxu0 0.0
  %1897 = vmatpush1.msra.mxu0 %v874
  %1898 = vmatprep.subr.mxu0 0.0
  %1899 = vmatpush1.msra.mxu0 %v875
  %1900 = vmatprep.subr.mxu0 0.0
  %1901 = vmatpush1.msra.mxu0 %v876
  %1902 = vmatprep.subr.mxu0 0.0
  %1903 = vmatpush1.msra.mxu0 %v877
  %1904 = vmatprep.subr.mxu0 0.0
  %1905 = vmatpush1.msra.mxu0 %v878
  %1906 = vmatprep.subr.mxu0 0.0
  %1907 = vmatpush1.msra.mxu0 %v879
  %1908 = vmatprep.subr.mxu0 0.0
  %1909 = vmatpush1.msra.mxu0 %v880
  %1910 = vmatprep.subr.mxu0 0.0
  %1911 = vmatpush1.msra.mxu0 0.0
  %1912 = vmatprep.subr.mxu0 0.0
  %1913 = vmatpush1.msra.mxu0 0.0
  %1914 = vmatprep.subr.mxu0 0.0
  %1915 = vmatpush1.msra.mxu0 0.0
  %1916 = vmatprep.subr.mxu0 0.0
  %1917 = vmatpush1.msra.mxu0 0.0
  %1918 = vmatprep.subr.mxu0 0.0
  %1919 = vmatpush1.msra.mxu0 0.0
  %1920 = vmatprep.subr.mxu0 0.0
  %1921 = vmatpush1.msra.mxu0 0.0
  %1922 = vmatprep.subr.mxu0 0.0
  %1923 = vmatpush1.msra.mxu0 0.0
  %1924 = vmatprep.subr.mxu0 0.0
  %1925 = vmatpush1.msra.mxu0 0.0
  %1926 = vmatprep.subr.mxu0 0.0
  %1927 = vmatpush1.msra.mxu0 0.0
  %1928 = vmatprep.subr.mxu0 0.0
  %1929 = vmatpush1.msra.mxu0 0.0
  %1930 = vmatprep.subr.mxu0 0.0
  %1931 = vmatpush1.msra.mxu0 0.0
  %1932 = vmatprep.subr.mxu0 0.0
  %1933 = vmatpush1.msra.mxu0 0.0
  %1934 = vmatprep.subr.mxu0 0.0
  %1935 = vmatpush1.msra.mxu0 0.0
  %1936 = vmatprep.subr.mxu0 0.0
  %1937 = vmatpush1.msra.mxu0 0.0
  %1938 = vmatprep.subr.mxu0 0.0
  %1939 = vmatpush1.msra.mxu0 0.0
  %1940 = vmatprep.subr.mxu0 0.0
  %1941 = vmatpush1.msra.mxu0 0.0
  %1942 = vmatprep.subr.mxu0 0.0
  %1943 = vmatpush1.msra.mxu0 0.0
  %1944 = vmatprep.subr.mxu0 0.0
  %1945 = vmatpush1.msra.mxu0 0.0
  %1946 = vmatprep.subr.mxu0 0.0
  %1947 = vmatpush1.msra.mxu0 0.0
  %1948 = vmatprep.subr.mxu0 0.0
  %1949 = vmatpush1.msra.mxu0 0.0
  %1950 = vmatprep.subr.mxu0 0.0
  %1951 = vmatpush1.msra.mxu0 0.0
  %1952 = vmatprep.subr.mxu0 0.0
  %1953 = vmatpush1.msra.mxu0 0.0
  %1954 = vmatprep.subr.mxu0 0.0
  %1955 = vmatpush1.msra.mxu0 0.0
  %1956 = vmatprep.subr.mxu0 0.0
  %1957 = vmatpush1.msra.mxu0 0.0
  %1958 = vmatprep.mubr.f32.mxu0 0.0
  %1959 = vmatmul.mubr.f32.gmra.mrb[0].mxu0 %v1871
  %v1960 = vpop.f32.mrb[0].mxu0
  %v1961 = vadd.f32 0.0, %v1960
  %v1962 = vpop.f32.mrb[0].mxu0
  %1963 = vmatprep.mubr.f32.mxu0 0.0
  %1964 = vmatmul.mubr.f32.gmra.mrb[0].mxu0 %v1874
  %v1965 = vpop.f32.mrb[0].mxu0
  %v1966 = vadd.f32 0.0, %v1965
  %v1967 = vpop.f32.mrb[0].mxu0
  %1968 = vmatprep.mubr.f32.mxu0 0.0
  %1969 = vmatmul.mubr.f32.gmra.mrb[0].mxu0 %v1877
  %v1970 = vpop.f32.mrb[0].mxu0
  %v1971 = vadd.f32 0.0, %v1970
  %v1972 = vpop.f32.mrb[0].mxu0
  %1973 = vmatprep.mubr.f32.mxu0 0.0
  %1974 = vmatmul.mubr.f32.gmra.mrb[0].mxu0 %v1880
  %v1975 = vpop.f32.mrb[0].mxu0
  %v1976 = vadd.f32 0.0, %v1975
  %v1977 = vpop.f32.mrb[0].mxu0
  %1978 = vmatprep.mubr.f32.mxu0 0.0
  %1979 = vmatmul.mubr.f32.gmra.mrb[0].mxu0 %v1883
  %v1980 = vpop.f32.mrb[0].mxu0
  %v1981 = vadd.f32 0.0, %v1980
  %v1982 = vpop.f32.mrb[0].mxu0
  %1983 = vmatprep.mubr.f32.mxu0 0.0
  %1984 = vmatmul.mubr.f32.gmra.mrb[0].mxu0 %v1886
  %v1985 = vpop.f32.mrb[0].mxu0
  %v1986 = vadd.f32 0.0, %v1985
  %v1987 = vpop.f32.mrb[0].mxu0
  %1988 = vmatprep.mubr.f32.mxu0 0.0
  %1989 = vmatmul.mubr.f32.gmra.mrb[0].mxu0 %v1889
  %v1990 = vpop.f32.mrb[0].mxu0
  %v1991 = vadd.f32 0.0, %v1990
  %v1992 = vpop.f32.mrb[0].mxu0
  %1993 = vmatprep.mubr.f32.mxu0 0.0
  %1994 = vmatmul.mubr.f32.gmra.mrb[0].mxu0 %v1892
  %v1995 = vpop.f32.mrb[0].mxu0
  %v1996 = vadd.f32 0.0, %v1995
  %v1997 = vpop.f32.mrb[0].mxu0
  %1998 = vdwg.mxu0
  %v1999 = vadd.f32 %v1862, %v1961
  %v2000 = vadd.f32 %v1863, %v1966
  %v2001 = vadd.f32 %v1864, %v1971
  %v2002 = vadd.f32 %v1865, %v1976
  %v2003 = vadd.f32 %v1866, %v1981
  %v2004 = vadd.f32 %v1867, %v1986
  %v2005 = vadd.f32 %v1868, %v1991
  %v2006 = vadd.f32 %v1869, %v1996
  %v2008 = vsel %vm342, %v1180, 0
  %v2011 = vsel %vm342, %v1185, 0
  %v2014 = vsel %vm342, %v1190, 0
  %v2017 = vsel %vm342, %v1195, 0
  %v2020 = vsel %vm342, %v1200, 0
  %v2023 = vsel %vm342, %v1205, 0
  %v2026 = vsel %vm342, %v1210, 0
  %v2029 = vsel %vm342, %v1215, 0
  %2031 = vmatprep.subr.mxu0 0.0
  %2032 = vmatpush1.msra.mxu0 %v881
  %2033 = vmatprep.subr.mxu0 0.0
  %2034 = vmatpush1.msra.mxu0 %v882
  %2035 = vmatprep.subr.mxu0 0.0
  %2036 = vmatpush1.msra.mxu0 %v883
  %2037 = vmatprep.subr.mxu0 0.0
  %2038 = vmatpush1.msra.mxu0 %v884
  %2039 = vmatprep.subr.mxu0 0.0
  %2040 = vmatpush1.msra.mxu0 %v885
  %2041 = vmatprep.subr.mxu0 0.0
  %2042 = vmatpush1.msra.mxu0 %v886
  %2043 = vmatprep.subr.mxu0 0.0
  %2044 = vmatpush1.msra.mxu0 %v887
  %2045 = vmatprep.subr.mxu0 0.0
  %2046 = vmatpush1.msra.mxu0 %v888
  %2047 = vmatprep.subr.mxu0 0.0
  %2048 = vmatpush1.msra.mxu0 0.0
  %2049 = vmatprep.subr.mxu0 0.0
  %2050 = vmatpush1.msra.mxu0 0.0
  %2051 = vmatprep.subr.mxu0 0.0
  %2052 = vmatpush1.msra.mxu0 0.0
  %2053 = vmatprep.subr.mxu0 0.0
  %2054 = vmatpush1.msra.mxu0 0.0
  %2055 = vmatprep.subr.mxu0 0.0
  %2056 = vmatpush1.msra.mxu0 0.0
  %2057 = vmatprep.subr.mxu0 0.0
  %2058 = vmatpush1.msra.mxu0 0.0
  %2059 = vmatprep.subr.mxu0 0.0
  %2060 = vmatpush1.msra.mxu0 0.0
  %2061 = vmatprep.subr.mxu0 0.0
  %2062 = vmatpush1.msra.mxu0 0.0
  %2063 = vmatprep.subr.mxu0 0.0
  %2064 = vmatpush1.msra.mxu0 0.0
  %2065 = vmatprep.subr.mxu0 0.0
  %2066 = vmatpush1.msra.mxu0 0.0
  %2067 = vmatprep.subr.mxu0 0.0
  %2068 = vmatpush1.msra.mxu0 0.0
  %2069 = vmatprep.subr.mxu0 0.0
  %2070 = vmatpush1.msra.mxu0 0.0
  %2071 = vmatprep.subr.mxu0 0.0
  %2072 = vmatpush1.msra.mxu0 0.0
  %2073 = vmatprep.subr.mxu0 0.0
  %2074 = vmatpush1.msra.mxu0 0.0
  %2075 = vmatprep.subr.mxu0 0.0
  %2076 = vmatpush1.msra.mxu0 0.0
  %2077 = vmatprep.subr.mxu0 0.0
  %2078 = vmatpush1.msra.mxu0 0.0
  %2079 = vmatprep.subr.mxu0 0.0
  %2080 = vmatpush1.msra.mxu0 0.0
  %2081 = vmatprep.subr.mxu0 0.0
  %2082 = vmatpush1.msra.mxu0 0.0
  %2083 = vmatprep.subr.mxu0 0.0
  %2084 = vmatpush1.msra.mxu0 0.0
  %2085 = vmatprep.subr.mxu0 0.0
  %2086 = vmatpush1.msra.mxu0 0.0
  %2087 = vmatprep.subr.mxu0 0.0
  %2088 = vmatpush1.msra.mxu0 0.0
  %2089 = vmatprep.subr.mxu0 0.0
  %2090 = vmatpush1.msra.mxu0 0.0
  %2091 = vmatprep.subr.mxu0 0.0
  %2092 = vmatpush1.msra.mxu0 0.0
  %2093 = vmatprep.subr.mxu0 0.0
  %2094 = vmatpush1.msra.mxu0 0.0
  %2095 = vmatprep.mubr.f32.mxu0 0.0
  %2096 = vmatmul.mubr.f32.gmra.mrb[0].mxu0 %v2008
  %v2097 = vpop.f32.mrb[0].mxu0
  %v2098 = vadd.f32 0.0, %v2097
  %v2099 = vpop.f32.mrb[0].mxu0
  %2100 = vmatprep.mubr.f32.mxu0 0.0
  %2101 = vmatmul.mubr.f32.gmra.mrb[0].mxu0 %v2011
  %v2102 = vpop.f32.mrb[0].mxu0
  %v2103 = vadd.f32 0.0, %v2102
  %v2104 = vpop.f32.mrb[0].mxu0
  %2105 = vmatprep.mubr.f32.mxu0 0.0
  %2106 = vmatmul.mubr.f32.gmra.mrb[0].mxu0 %v2014
  %v2107 = vpop.f32.mrb[0].mxu0
  %v2108 = vadd.f32 0.0, %v2107
  %v2109 = vpop.f32.mrb[0].mxu0
  %2110 = vmatprep.mubr.f32.mxu0 0.0
  %2111 = vmatmul.mubr.f32.gmra.mrb[0].mxu0 %v2017
  %v2112 = vpop.f32.mrb[0].mxu0
  %v2113 = vadd.f32 0.0, %v2112
  %v2114 = vpop.f32.mrb[0].mxu0
  %2115 = vmatprep.mubr.f32.mxu0 0.0
  %2116 = vmatmul.mubr.f32.gmra.mrb[0].mxu0 %v2020
  %v2117 = vpop.f32.mrb[0].mxu0
  %v2118 = vadd.f32 0.0, %v2117
  %v2119 = vpop.f32.mrb[0].mxu0
  %2120 = vmatprep.mubr.f32.mxu0 0.0
  %2121 = vmatmul.mubr.f32.gmra.mrb[0].mxu0 %v2023
  %v2122 = vpop.f32.mrb[0].mxu0
  %v2123 = vadd.f32 0.0, %v2122
  %v2124 = vpop.f32.mrb[0].mxu0
  %2125 = vmatprep.mubr.f32.mxu0 0.0
  %2126 = vmatmul.mubr.f32.gmra.mrb[0].mxu0 %v2026
  %v2127 = vpop.f32.mrb[0].mxu0
  %v2128 = vadd.f32 0.0, %v2127
  %v2129 = vpop.f32.mrb[0].mxu0
  %2130 = vmatprep.mubr.f32.mxu0 0.0
  %2131 = vmatmul.mubr.f32.gmra.mrb[0].mxu0 %v2029
  %v2132 = vpop.f32.mrb[0].mxu0
  %v2133 = vadd.f32 0.0, %v2132
  %v2134 = vpop.f32.mrb[0].mxu0
  %2135 = vdwg.mxu0
  %v2136 = vadd.f32 %v1999, %v2098
  %v2137 = vadd.f32 %v2000, %v2103
  %v2138 = vadd.f32 %v2001, %v2108
  %v2139 = vadd.f32 %v2002, %v2113
  %v2140 = vadd.f32 %v2003, %v2118
  %v2141 = vadd.f32 %v2004, %v2123
  %v2142 = vadd.f32 %v2005, %v2128
  %v2143 = vadd.f32 %v2006, %v2133
  %v2145 = vsel %vm342, %v1220, 0
  %v2148 = vsel %vm342, %v1225, 0
  %v2151 = vsel %vm342, %v1230, 0
  %v2154 = vsel %vm342, %v1235, 0
  %v2157 = vsel %vm342, %v1240, 0
  %v2160 = vsel %vm342, %v1245, 0
  %v2163 = vsel %vm342, %v1250, 0
  %v2166 = vsel %vm342, %v1255, 0
  %2168 = vmatprep.subr.mxu0 0.0
  %2169 = vmatpush1.msra.mxu0 %v889
  %2170 = vmatprep.subr.mxu0 0.0
  %2171 = vmatpush1.msra.mxu0 %v890
  %2172 = vmatprep.subr.mxu0 0.0
  %2173 = vmatpush1.msra.mxu0 %v891
  %2174 = vmatprep.subr.mxu0 0.0
  %2175 = vmatpush1.msra.mxu0 %v892
  %2176 = vmatprep.subr.mxu0 0.0
  %2177 = vmatpush1.msra.mxu0 %v893
  %2178 = vmatprep.subr.mxu0 0.0
  %2179 = vmatpush1.msra.mxu0 %v894
  %2180 = vmatprep.subr.mxu0 0.0
  %2181 = vmatpush1.msra.mxu0 %v895
  %2182 = vmatprep.subr.mxu0 0.0
  %2183 = vmatpush1.msra.mxu0 %v896
  %2184 = vmatprep.subr.mxu0 0.0
  %2185 = vmatpush1.msra.mxu0 0.0
  %2186 = vmatprep.subr.mxu0 0.0
  %2187 = vmatpush1.msra.mxu0 0.0
  %2188 = vmatprep.subr.mxu0 0.0
  %2189 = vmatpush1.msra.mxu0 0.0
  %2190 = vmatprep.subr.mxu0 0.0
  %2191 = vmatpush1.msra.mxu0 0.0
  %2192 = vmatprep.subr.mxu0 0.0
  %2193 = vmatpush1.msra.mxu0 0.0
  %2194 = vmatprep.subr.mxu0 0.0
  %2195 = vmatpush1.msra.mxu0 0.0
  %2196 = vmatprep.subr.mxu0 0.0
  %2197 = vmatpush1.msra.mxu0 0.0
  %2198 = vmatprep.subr.mxu0 0.0
  %2199 = vmatpush1.msra.mxu0 0.0
  %2200 = vmatprep.subr.mxu0 0.0
  %2201 = vmatpush1.msra.mxu0 0.0
  %2202 = vmatprep.subr.mxu0 0.0
  %2203 = vmatpush1.msra.mxu0 0.0
  %2204 = vmatprep.subr.mxu0 0.0
  %2205 = vmatpush1.msra.mxu0 0.0
  %2206 = vmatprep.subr.mxu0 0.0
  %2207 = vmatpush1.msra.mxu0 0.0
  %2208 = vmatprep.subr.mxu0 0.0
  %2209 = vmatpush1.msra.mxu0 0.0
  %2210 = vmatprep.subr.mxu0 0.0
  %2211 = vmatpush1.msra.mxu0 0.0
  %2212 = vmatprep.subr.mxu0 0.0
  %2213 = vmatpush1.msra.mxu0 0.0
  %2214 = vmatprep.subr.mxu0 0.0
  %2215 = vmatpush1.msra.mxu0 0.0
  %2216 = vmatprep.subr.mxu0 0.0
  %2217 = vmatpush1.msra.mxu0 0.0
  %2218 = vmatprep.subr.mxu0 0.0
  %2219 = vmatpush1.msra.mxu0 0.0
  %2220 = vmatprep.subr.mxu0 0.0
  %2221 = vmatpush1.msra.mxu0 0.0
  %2222 = vmatprep.subr.mxu0 0.0
  %2223 = vmatpush1.msra.mxu0 0.0
  %2224 = vmatprep.subr.mxu0 0.0
  %2225 = vmatpush1.msra.mxu0 0.0
  %2226 = vmatprep.subr.mxu0 0.0
  %2227 = vmatpush1.msra.mxu0 0.0
  %2228 = vmatprep.subr.mxu0 0.0
  %2229 = vmatpush1.msra.mxu0 0.0
  %2230 = vmatprep.subr.mxu0 0.0
  %2231 = vmatpush1.msra.mxu0 0.0
  %2232 = vmatprep.mubr.f32.mxu0 0.0
  %2233 = vmatmul.mubr.f32.gmra.mrb[0].mxu0 %v2145
  %v2234 = vpop.f32.mrb[0].mxu0
  %v2235 = vadd.f32 0.0, %v2234
  %v2236 = vpop.f32.mrb[0].mxu0
  %2237 = vmatprep.mubr.f32.mxu0 0.0
  %2238 = vmatmul.mubr.f32.gmra.mrb[0].mxu0 %v2148
  %v2239 = vpop.f32.mrb[0].mxu0
  %v2240 = vadd.f32 0.0, %v2239
  %v2241 = vpop.f32.mrb[0].mxu0
  %2242 = vmatprep.mubr.f32.mxu0 0.0
  %2243 = vmatmul.mubr.f32.gmra.mrb[0].mxu0 %v2151
  %v2244 = vpop.f32.mrb[0].mxu0
  %v2245 = vadd.f32 0.0, %v2244
  %v2246 = vpop.f32.mrb[0].mxu0
  %2247 = vmatprep.mubr.f32.mxu0 0.0
  %2248 = vmatmul.mubr.f32.gmra.mrb[0].mxu0 %v2154
  %v2249 = vpop.f32.mrb[0].mxu0
  %v2250 = vadd.f32 0.0, %v2249
  %v2251 = vpop.f32.mrb[0].mxu0
  %2252 = vmatprep.mubr.f32.mxu0 0.0
  %2253 = vmatmul.mubr.f32.gmra.mrb[0].mxu0 %v2157
  %v2254 = vpop.f32.mrb[0].mxu0
  %v2255 = vadd.f32 0.0, %v2254
  %v2256 = vpop.f32.mrb[0].mxu0
  %2257 = vmatprep.mubr.f32.mxu0 0.0
  %2258 = vmatmul.mubr.f32.gmra.mrb[0].mxu0 %v2160
  %v2259 = vpop.f32.mrb[0].mxu0
  %v2260 = vadd.f32 0.0, %v2259
  %v2261 = vpop.f32.mrb[0].mxu0
  %2262 = vmatprep.mubr.f32.mxu0 0.0
  %2263 = vmatmul.mubr.f32.gmra.mrb[0].mxu0 %v2163
  %v2264 = vpop.f32.mrb[0].mxu0
  %v2265 = vadd.f32 0.0, %v2264
  %v2266 = vpop.f32.mrb[0].mxu0
  %2267 = vmatprep.mubr.f32.mxu0 0.0
  %2268 = vmatmul.mubr.f32.gmra.mrb[0].mxu0 %v2166
  %v2269 = vpop.f32.mrb[0].mxu0
  %v2270 = vadd.f32 0.0, %v2269
  %v2271 = vpop.f32.mrb[0].mxu0
  %2272 = vdwg.mxu0
  %v2273 = vadd.f32 %v2136, %v2235
  %v2274 = vadd.f32 %v2137, %v2240
  %v2275 = vadd.f32 %v2138, %v2245
  %v2276 = vadd.f32 %v2139, %v2250
  %v2277 = vadd.f32 %v2140, %v2255
  %v2278 = vadd.f32 %v2141, %v2260
  %v2279 = vadd.f32 %v2142, %v2265
  %v2280 = vadd.f32 %v2143, %v2270
  %v2282 = vsel %vm342, %v1260, 0
  %v2285 = vsel %vm342, %v1265, 0
  %v2288 = vsel %vm342, %v1270, 0
  %v2291 = vsel %vm342, %v1275, 0
  %v2294 = vsel %vm342, %v1280, 0
  %v2297 = vsel %vm342, %v1285, 0
  %v2300 = vsel %vm342, %v1290, 0
  %v2303 = vsel %vm342, %v1295, 0
  %2305 = vmatprep.subr.mxu0 0.0
  %2306 = vmatpush1.msra.mxu0 %v897
  %2307 = vmatprep.subr.mxu0 0.0
  %2308 = vmatpush1.msra.mxu0 %v898
  %2309 = vmatprep.subr.mxu0 0.0
  %2310 = vmatpush1.msra.mxu0 %v899
  %2311 = vmatprep.subr.mxu0 0.0
  %2312 = vmatpush1.msra.mxu0 %v900
  %2313 = vmatprep.subr.mxu0 0.0
  %2314 = vmatpush1.msra.mxu0 %v901
  %2315 = vmatprep.subr.mxu0 0.0
  %2316 = vmatpush1.msra.mxu0 %v902
  %2317 = vmatprep.subr.mxu0 0.0
  %2318 = vmatpush1.msra.mxu0 %v903
  %2319 = vmatprep.subr.mxu0 0.0
  %2320 = vmatpush1.msra.mxu0 %v904
  %2321 = vmatprep.subr.mxu0 0.0
  %2322 = vmatpush1.msra.mxu0 0.0
  %2323 = vmatprep.subr.mxu0 0.0
  %2324 = vmatpush1.msra.mxu0 0.0
  %2325 = vmatprep.subr.mxu0 0.0
  %2326 = vmatpush1.msra.mxu0 0.0
  %2327 = vmatprep.subr.mxu0 0.0
  %2328 = vmatpush1.msra.mxu0 0.0
  %2329 = vmatprep.subr.mxu0 0.0
  %2330 = vmatpush1.msra.mxu0 0.0
  %2331 = vmatprep.subr.mxu0 0.0
  %2332 = vmatpush1.msra.mxu0 0.0
  %2333 = vmatprep.subr.mxu0 0.0
  %2334 = vmatpush1.msra.mxu0 0.0
  %2335 = vmatprep.subr.mxu0 0.0
  %2336 = vmatpush1.msra.mxu0 0.0
  %2337 = vmatprep.subr.mxu0 0.0
  %2338 = vmatpush1.msra.mxu0 0.0
  %2339 = vmatprep.subr.mxu0 0.0
  %2340 = vmatpush1.msra.mxu0 0.0
  %2341 = vmatprep.subr.mxu0 0.0
  %2342 = vmatpush1.msra.mxu0 0.0
  %2343 = vmatprep.subr.mxu0 0.0
  %2344 = vmatpush1.msra.mxu0 0.0
  %2345 = vmatprep.subr.mxu0 0.0
  %2346 = vmatpush1.msra.mxu0 0.0
  %2347 = vmatprep.subr.mxu0 0.0
  %2348 = vmatpush1.msra.mxu0 0.0
  %2349 = vmatprep.subr.mxu0 0.0
  %2350 = vmatpush1.msra.mxu0 0.0
  %2351 = vmatprep.subr.mxu0 0.0
  %2352 = vmatpush1.msra.mxu0 0.0
  %2353 = vmatprep.subr.mxu0 0.0
  %2354 = vmatpush1.msra.mxu0 0.0
  %2355 = vmatprep.subr.mxu0 0.0
  %2356 = vmatpush1.msra.mxu0 0.0
  %2357 = vmatprep.subr.mxu0 0.0
  %2358 = vmatpush1.msra.mxu0 0.0
  %2359 = vmatprep.subr.mxu0 0.0
  %2360 = vmatpush1.msra.mxu0 0.0
  %2361 = vmatprep.subr.mxu0 0.0
  %2362 = vmatpush1.msra.mxu0 0.0
  %2363 = vmatprep.subr.mxu0 0.0
  %2364 = vmatpush1.msra.mxu0 0.0
  %2365 = vmatprep.subr.mxu0 0.0
  %2366 = vmatpush1.msra.mxu0 0.0
  %2367 = vmatprep.subr.mxu0 0.0
  %2368 = vmatpush1.msra.mxu0 0.0
  %2369 = vmatprep.mubr.f32.mxu0 0.0
  %2370 = vmatmul.mubr.f32.gmra.mrb[0].mxu0 %v2282
  %v2371 = vpop.f32.mrb[0].mxu0
  %v2372 = vadd.f32 0.0, %v2371
  %v2373 = vpop.f32.mrb[0].mxu0
  %2374 = vmatprep.mubr.f32.mxu0 0.0
  %2375 = vmatmul.mubr.f32.gmra.mrb[0].mxu0 %v2285
  %v2376 = vpop.f32.mrb[0].mxu0
  %v2377 = vadd.f32 0.0, %v2376
  %v2378 = vpop.f32.mrb[0].mxu0
  %2379 = vmatprep.mubr.f32.mxu0 0.0
  %2380 = vmatmul.mubr.f32.gmra.mrb[0].mxu0 %v2288
  %v2381 = vpop.f32.mrb[0].mxu0
  %v2382 = vadd.f32 0.0, %v2381
  %v2383 = vpop.f32.mrb[0].mxu0
  %2384 = vmatprep.mubr.f32.mxu0 0.0
  %2385 = vmatmul.mubr.f32.gmra.mrb[0].mxu0 %v2291
  %v2386 = vpop.f32.mrb[0].mxu0
  %v2387 = vadd.f32 0.0, %v2386
  %v2388 = vpop.f32.mrb[0].mxu0
  %2389 = vmatprep.mubr.f32.mxu0 0.0
  %2390 = vmatmul.mubr.f32.gmra.mrb[0].mxu0 %v2294
  %v2391 = vpop.f32.mrb[0].mxu0
  %v2392 = vadd.f32 0.0, %v2391
  %v2393 = vpop.f32.mrb[0].mxu0
  %2394 = vmatprep.mubr.f32.mxu0 0.0
  %2395 = vmatmul.mubr.f32.gmra.mrb[0].mxu0 %v2297
  %v2396 = vpop.f32.mrb[0].mxu0
  %v2397 = vadd.f32 0.0, %v2396
  %v2398 = vpop.f32.mrb[0].mxu0
  %2399 = vmatprep.mubr.f32.mxu0 0.0
  %2400 = vmatmul.mubr.f32.gmra.mrb[0].mxu0 %v2300
  %v2401 = vpop.f32.mrb[0].mxu0
  %v2402 = vadd.f32 0.0, %v2401
  %v2403 = vpop.f32.mrb[0].mxu0
  %2404 = vmatprep.mubr.f32.mxu0 0.0
  %2405 = vmatmul.mubr.f32.gmra.mrb[0].mxu0 %v2303
  %v2406 = vpop.f32.mrb[0].mxu0
  %v2407 = vadd.f32 0.0, %v2406
  %v2408 = vpop.f32.mrb[0].mxu0
  %2409 = vdwg.mxu0
  %v2410 = vadd.f32 %v2273, %v2372
  %v2411 = vadd.f32 %v2274, %v2377
  %v2412 = vadd.f32 %v2275, %v2382
  %v2413 = vadd.f32 %v2276, %v2387
  %v2414 = vadd.f32 %v2277, %v2392
  %v2415 = vadd.f32 %v2278, %v2397
  %v2416 = vadd.f32 %v2279, %v2402
  %v2417 = vadd.f32 %v2280, %v2407
  %v2419 = vsel %vm342, %v1300, 0
  %v2422 = vsel %vm342, %v1305, 0
  %v2425 = vsel %vm342, %v1310, 0
  %v2428 = vsel %vm342, %v1315, 0
  %v2431 = vsel %vm342, %v1320, 0
  %v2434 = vsel %vm342, %v1325, 0
  %v2437 = vsel %vm342, %v1330, 0
  %v2440 = vsel %vm342, %v1335, 0
  %2442 = vmatprep.subr.mxu0 0.0
  %2443 = vmatpush1.msra.mxu0 %v905
  %2444 = vmatprep.subr.mxu0 0.0
  %2445 = vmatpush1.msra.mxu0 %v906
  %2446 = vmatprep.subr.mxu0 0.0
  %2447 = vmatpush1.msra.mxu0 %v907
  %2448 = vmatprep.subr.mxu0 0.0
  %2449 = vmatpush1.msra.mxu0 %v908
  %2450 = vmatprep.subr.mxu0 0.0
  %2451 = vmatpush1.msra.mxu0 %v909
  %2452 = vmatprep.subr.mxu0 0.0
  %2453 = vmatpush1.msra.mxu0 %v910
  %2454 = vmatprep.subr.mxu0 0.0
  %2455 = vmatpush1.msra.mxu0 %v911
  %2456 = vmatprep.subr.mxu0 0.0
  %2457 = vmatpush1.msra.mxu0 %v912
  %2458 = vmatprep.subr.mxu0 0.0
  %2459 = vmatpush1.msra.mxu0 0.0
  %2460 = vmatprep.subr.mxu0 0.0
  %2461 = vmatpush1.msra.mxu0 0.0
  %2462 = vmatprep.subr.mxu0 0.0
  %2463 = vmatpush1.msra.mxu0 0.0
  %2464 = vmatprep.subr.mxu0 0.0
  %2465 = vmatpush1.msra.mxu0 0.0
  %2466 = vmatprep.subr.mxu0 0.0
  %2467 = vmatpush1.msra.mxu0 0.0
  %2468 = vmatprep.subr.mxu0 0.0
  %2469 = vmatpush1.msra.mxu0 0.0
  %2470 = vmatprep.subr.mxu0 0.0
  %2471 = vmatpush1.msra.mxu0 0.0
  %2472 = vmatprep.subr.mxu0 0.0
  %2473 = vmatpush1.msra.mxu0 0.0
  %2474 = vmatprep.subr.mxu0 0.0
  %2475 = vmatpush1.msra.mxu0 0.0
  %2476 = vmatprep.subr.mxu0 0.0
  %2477 = vmatpush1.msra.mxu0 0.0
  %2478 = vmatprep.subr.mxu0 0.0
  %2479 = vmatpush1.msra.mxu0 0.0
  %2480 = vmatprep.subr.mxu0 0.0
  %2481 = vmatpush1.msra.mxu0 0.0
  %2482 = vmatprep.subr.mxu0 0.0
  %2483 = vmatpush1.msra.mxu0 0.0
  %2484 = vmatprep.subr.mxu0 0.0
  %2485 = vmatpush1.msra.mxu0 0.0
  %2486 = vmatprep.subr.mxu0 0.0
  %2487 = vmatpush1.msra.mxu0 0.0
  %2488 = vmatprep.subr.mxu0 0.0
  %2489 = vmatpush1.msra.mxu0 0.0
  %2490 = vmatprep.subr.mxu0 0.0
  %2491 = vmatpush1.msra.mxu0 0.0
  %2492 = vmatprep.subr.mxu0 0.0
  %2493 = vmatpush1.msra.mxu0 0.0
  %2494 = vmatprep.subr.mxu0 0.0
  %2495 = vmatpush1.msra.mxu0 0.0
  %2496 = vmatprep.subr.mxu0 0.0
  %2497 = vmatpush1.msra.mxu0 0.0
  %2498 = vmatprep.subr.mxu0 0.0
  %2499 = vmatpush1.msra.mxu0 0.0
  %2500 = vmatprep.subr.mxu0 0.0
  %2501 = vmatpush1.msra.mxu0 0.0
  %2502 = vmatprep.subr.mxu0 0.0
  %2503 = vmatpush1.msra.mxu0 0.0
  %2504 = vmatprep.subr.mxu0 0.0
  %2505 = vmatpush1.msra.mxu0 0.0
  %2506 = vmatprep.mubr.f32.mxu0 0.0
  %2507 = vmatmul.mubr.f32.gmra.mrb[0].mxu0 %v2419
  %v2508 = vpop.f32.mrb[0].mxu0
  %v2509 = vadd.f32 0.0, %v2508
  %v2510 = vpop.f32.mrb[0].mxu0
  %2511 = vmatprep.mubr.f32.mxu0 0.0
  %2512 = vmatmul.mubr.f32.gmra.mrb[0].mxu0 %v2422
  %v2513 = vpop.f32.mrb[0].mxu0
  %v2514 = vadd.f32 0.0, %v2513
  %v2515 = vpop.f32.mrb[0].mxu0
  %2516 = vmatprep.mubr.f32.mxu0 0.0
  %2517 = vmatmul.mubr.f32.gmra.mrb[0].mxu0 %v2425
  %v2518 = vpop.f32.mrb[0].mxu0
  %v2519 = vadd.f32 0.0, %v2518
  %v2520 = vpop.f32.mrb[0].mxu0
  %2521 = vmatprep.mubr.f32.mxu0 0.0
  %2522 = vmatmul.mubr.f32.gmra.mrb[0].mxu0 %v2428
  %v2523 = vpop.f32.mrb[0].mxu0
  %v2524 = vadd.f32 0.0, %v2523
  %v2525 = vpop.f32.mrb[0].mxu0
  %2526 = vmatprep.mubr.f32.mxu0 0.0
  %2527 = vmatmul.mubr.f32.gmra.mrb[0].mxu0 %v2431
  %v2528 = vpop.f32.mrb[0].mxu0
  %v2529 = vadd.f32 0.0, %v2528
  %v2530 = vpop.f32.mrb[0].mxu0
  %2531 = vmatprep.mubr.f32.mxu0 0.0
  %2532 = vmatmul.mubr.f32.gmra.mrb[0].mxu0 %v2434
  %v2533 = vpop.f32.mrb[0].mxu0
  %v2534 = vadd.f32 0.0, %v2533
  %v2535 = vpop.f32.mrb[0].mxu0
  %2536 = vmatprep.mubr.f32.mxu0 0.0
  %2537 = vmatmul.mubr.f32.gmra.mrb[0].mxu0 %v2437
  %v2538 = vpop.f32.mrb[0].mxu0
  %v2539 = vadd.f32 0.0, %v2538
  %v2540 = vpop.f32.mrb[0].mxu0
  %2541 = vmatprep.mubr.f32.mxu0 0.0
  %2542 = vmatmul.mubr.f32.gmra.mrb[0].mxu0 %v2440
  %v2543 = vpop.f32.mrb[0].mxu0
  %v2544 = vadd.f32 0.0, %v2543
  %v2545 = vpop.f32.mrb[0].mxu0
  %2546 = vdwg.mxu0
  %v2547 = vadd.f32 %v2410, %v2509
  %v2548 = vadd.f32 %v2411, %v2514
  %v2549 = vadd.f32 %v2412, %v2519
  %v2550 = vadd.f32 %v2413, %v2524
  %v2551 = vadd.f32 %v2414, %v2529
  %v2552 = vadd.f32 %v2415, %v2534
  %v2553 = vadd.f32 %v2416, %v2539
  %v2554 = vadd.f32 %v2417, %v2544
  %v2555 = vld [vmem:[%s5] sm:$0xff]
  %v2556 = vlaneseq
  %v2557 = vshrl.u32 %v2556, 7
  %v2558 = vsub.s32 0, %v2557
  %v2559 = vrot.slane %v2555, %v2558
  %v2560 = vadd.f32 %v2547, %v2559
  %v2561 = vadd.f32 %v2548, %v2559
  %v2562 = vadd.f32 %v2549, %v2559
  %v2563 = vadd.f32 %v2550, %v2559
  %v2564 = vadd.f32 %v2551, %v2559
  %v2565 = vadd.f32 %v2552, %v2559
  %v2566 = vadd.f32 %v2553, %v2559
  %v2567 = vadd.f32 %v2554, %v2559
  %v2568 = vtanh.pop %v2560
  %v2569 = vtanh.pop %v2561
  %v2570 = vtanh.pop %v2562
  %v2571 = vtanh.pop %v2563
  %v2572 = vtanh.pop %v2564
  %v2573 = vtanh.pop %v2565
  %v2574 = vtanh.pop %v2566
  %v2575 = vtanh.pop %v2567
  %v2576 = vadd.f32 %v2568, %v2569
  %v2577 = vadd.f32 %v2576, %v2570
  %v2578 = vadd.f32 %v2577, %v2571
  %v2579 = vadd.f32 %v2578, %v2572
  %v2580 = vadd.f32 %v2579, %v2573
  %v2581 = vadd.f32 %v2580, %v2574
  %v2582 = vadd.f32 %v2581, %v2575
  %v2583 = vrot.slane %v2582, 4
  %v2584 = vadd.f32 %v2582, %v2583
  %v2585 = vrot.slane %v2584, 2
  %v2586 = vadd.f32 %v2584, %v2585
  %v2587 = vrot.slane %v2586, 1
  %v2588 = vadd.f32 %v2586, %v2587
  %v2589 = vmul.f32 %v2568, %v2568
  %v2590 = vmul.f32 %v2569, %v2569
  %v2591 = vmul.f32 %v2570, %v2570
  %v2592 = vmul.f32 %v2571, %v2571
  %v2593 = vmul.f32 %v2572, %v2572
  %v2594 = vmul.f32 %v2573, %v2573
  %v2595 = vmul.f32 %v2574, %v2574
  %v2596 = vmul.f32 %v2575, %v2575
  %v2597 = vadd.f32 %v2589, %v2590
  %v2598 = vadd.f32 %v2597, %v2591
  %v2599 = vadd.f32 %v2598, %v2592
  %v2600 = vadd.f32 %v2599, %v2593
  %v2601 = vadd.f32 %v2600, %v2594
  %v2602 = vadd.f32 %v2601, %v2595
  %v2603 = vadd.f32 %v2602, %v2596
  %v2604 = vrot.slane %v2603, 4
  %v2605 = vadd.f32 %v2603, %v2604
  %v2606 = vrot.slane %v2605, 2
  %v2607 = vadd.f32 %v2605, %v2606
  %v2608 = vrot.slane %v2607, 1
  %v2609 = vadd.f32 %v2607, %v2608
  %2611 = vrot.lane.b32.xlu0 %v2588, 64
  %v2612 = vpop.permute.xlu0 %2611
  %v2614 = vadd.f32 %v2588, %v2612
  %2616 = vrot.lane.b32.xlu0 %v2609, 64
  %v2617 = vpop.permute.xlu0 %2616
  %v2619 = vadd.f32 %v2609, %v2617
  %v2620 = vrcp.pop 128.0
  %v2621 = vmul.f32 %v2614, %v2620
  %v2622 = vmul.f32 %v2619, %v2620
  %v2623 = vmul.f32 %v2621, %v2621
  %v2624 = vsub.f32 %v2622, %v2623
  %2626 = vrot.lane.b32.xlu0 %v2621, 64
  %v2627 = vpop.permute.xlu0 %2626
  %v2629 = vsel %vm342, %v2621, %v2627
  %2631 = vrot.lane.b32.xlu0 %v2624, 64
  %v2632 = vpop.permute.xlu0 %2631
  %v2634 = vsel %vm342, %v2624, %v2632
  %v2635 = vadd.f32 %v2634, 1e-05
  %v2636 = vrsqrt.pop %v2635
  %v2638 = vrot.slane %v2636, 7
  %v2640 = vmul.f32 %v2555, %v2638
  %v2642 = vrot.slane %v2640, 1
  %v2644 = vmul.f32 %v2629, %v2642
  %v2646 = vrot.slane %v2644, 6
  %v2648 = vsub.f32 %v2555, %v2646
  %v2649 = vlaneseq
  %v2650 = vshrl.u32 %v2649, 7
  %v2651 = vsub.s32 1, %v2650
  %v2652 = vrot.slane %v2640, %v2651
  %v2653 = vmul.f32 %v2568, %v2652
  %v2654 = vmul.f32 %v2569, %v2652
  %v2655 = vmul.f32 %v2570, %v2652
  %v2656 = vmul.f32 %v2571, %v2652
  %v2657 = vmul.f32 %v2572, %v2652
  %v2658 = vmul.f32 %v2573, %v2652
  %v2659 = vmul.f32 %v2574, %v2652
  %v2660 = vmul.f32 %v2575, %v2652
  %v2661 = vlaneseq
  %v2662 = vshrl.u32 %v2661, 7
  %v2663 = vsub.s32 2, %v2662
  %v2664 = vrot.slane %v2648, %v2663
  %v2665 = vadd.f32 %v2653, %v2664
  %v2666 = vadd.f32 %v2654, %v2664
  %v2667 = vadd.f32 %v2655, %v2664
  %v2668 = vadd.f32 %v2656, %v2664
  %v2669 = vadd.f32 %v2657, %v2664
  %v2670 = vadd.f32 %v2658, %v2664
  %v2671 = vadd.f32 %v2659, %v2664
  %v2672 = vadd.f32 %v2660, %v2664
  %v2673 = vld [vmem:[%s6] sm:$0xf]
  %v2674 = vld [vmem:[%s6 + $0x4] sm:$0xf]
  %v2675 = vld [vmem:[%s6 + $0x8] sm:$0xf]
  %v2676 = vld [vmem:[%s6 + $0xc] sm:$0xf]
  %v2677 = vld [vmem:[%s6 + $0x10] sm:$0xf]
  %v2678 = vld [vmem:[%s6 + $0x14] sm:$0xf]
  %v2679 = vld [vmem:[%s6 + $0x18] sm:$0xf]
  %v2680 = vld [vmem:[%s6 + $0x1c] sm:$0xf]
  %v2681 = vld [vmem:[%s6 + $0x20] sm:$0xf]
  %v2682 = vld [vmem:[%s6 + $0x24] sm:$0xf]
  %v2683 = vld [vmem:[%s6 + $0x28] sm:$0xf]
  %v2684 = vld [vmem:[%s6 + $0x2c] sm:$0xf]
  %v2685 = vld [vmem:[%s6 + $0x30] sm:$0xf]
  %v2686 = vld [vmem:[%s6 + $0x34] sm:$0xf]
  %v2687 = vld [vmem:[%s6 + $0x38] sm:$0xf]
  %v2688 = vld [vmem:[%s6 + $0x3c] sm:$0xf]
  %v2689 = vld [vmem:[%s6 + $0x40] sm:$0xf]
  %v2690 = vld [vmem:[%s6 + $0x44] sm:$0xf]
  %v2691 = vunpack.c.l.bf16 %v2673
  %v2692 = vunpack.c.l.bf16 %v2674
  %v2693 = vunpack.c.l.bf16 %v2675
  %v2694 = vunpack.c.l.bf16 %v2676
  %v2695 = vunpack.c.l.bf16 %v2677
  %v2696 = vunpack.c.l.bf16 %v2678
  %v2697 = vunpack.c.l.bf16 %v2679
  %v2698 = vunpack.c.l.bf16 %v2680
  %v2699 = vunpack.c.l.bf16 %v2681
  %v2700 = vunpack.c.l.bf16 %v2682
  %v2701 = vunpack.c.l.bf16 %v2683
  %v2702 = vunpack.c.l.bf16 %v2684
  %v2703 = vunpack.c.l.bf16 %v2685
  %v2704 = vunpack.c.l.bf16 %v2686
  %v2705 = vunpack.c.l.bf16 %v2687
  %v2706 = vunpack.c.l.bf16 %v2688
  %v2707 = vunpack.c.l.bf16 %v2689
  %v2708 = vunpack.c.l.bf16 %v2690
  %v2709 = vld [vmem:[%s7] sm:$0xff]
  %v2710 = vld [vmem:[%s7 + $0x8] sm:$0xff]
  %v2711 = vld [vmem:[%s7 + $0x10] sm:$0xff]
  %v2712 = vld [vmem:[%s7 + $0x18] sm:$0xff]
  %v2713 = vld [vmem:[%s7 + $0x20] sm:$0xff]
  %v2714 = vld [vmem:[%s7 + $0x28] sm:$0xff]
  %v2715 = vld [vmem:[%s7 + $0x30] sm:$0xff]
  %v2716 = vld [vmem:[%s7 + $0x38] sm:$0xff]
  %v2717 = vld [vmem:[%s7 + $0x40] sm:$0xff]
  %v2718 = vld [vmem:[%s7 + $0x48] sm:$0xff]
  %v2719 = vld [vmem:[%s7 + $0x50] sm:$0xff]
  %v2720 = vld [vmem:[%s7 + $0x58] sm:$0xff]
  %v2721 = vld [vmem:[%s7 + $0x60] sm:$0xff]
  %v2722 = vld [vmem:[%s7 + $0x68] sm:$0xff]
  %v2723 = vld [vmem:[%s7 + $0x70] sm:$0xff]
  %v2724 = vld [vmem:[%s7 + $0x78] sm:$0xff]
  %v2725 = vld [vmem:[%s7 + $0x80] sm:$0xff]
  %v2726 = vld [vmem:[%s7 + $0x88] sm:$0xff]
  %v2727 = vld [vmem:[%s7 + $0x90] sm:$0xff]
  %v2728 = vld [vmem:[%s7 + $0x98] sm:$0xff]
  %v2729 = vld [vmem:[%s7 + $0xa0] sm:$0xff]
  %v2730 = vld [vmem:[%s7 + $0xa8] sm:$0xff]
  %v2731 = vld [vmem:[%s7 + $0xb0] sm:$0xff]
  %v2732 = vld [vmem:[%s7 + $0xb8] sm:$0xff]
  %v2733 = vld [vmem:[%s7 + $0xc0] sm:$0xff]
  %v2734 = vld [vmem:[%s7 + $0xc8] sm:$0xff]
  %v2735 = vld [vmem:[%s7 + $0xd0] sm:$0xff]
  %v2736 = vld [vmem:[%s7 + $0xd8] sm:$0xff]
  %v2737 = vld [vmem:[%s7 + $0xe0] sm:$0xff]
  %v2738 = vld [vmem:[%s7 + $0xe8] sm:$0xff]
  %v2739 = vld [vmem:[%s7 + $0xf0] sm:$0xff]
  %v2740 = vld [vmem:[%s7 + $0xf8] sm:$0xff]
  %v2741 = vld [vmem:[%s7 + $0x100] sm:$0xff]
  %v2742 = vld [vmem:[%s7 + $0x108] sm:$0xff]
  %v2743 = vld [vmem:[%s7 + $0x110] sm:$0xff]
  %v2744 = vld [vmem:[%s7 + $0x118] sm:$0xff]
  %v2745 = vld [vmem:[%s7 + $0x120] sm:$0xff]
  %v2746 = vld [vmem:[%s7 + $0x128] sm:$0xff]
  %v2747 = vld [vmem:[%s7 + $0x130] sm:$0xff]
  %v2748 = vld [vmem:[%s7 + $0x138] sm:$0xff]
  %v2749 = vld [vmem:[%s7 + $0x140] sm:$0xff]
  %v2750 = vld [vmem:[%s7 + $0x148] sm:$0xff]
  %v2751 = vld [vmem:[%s7 + $0x150] sm:$0xff]
  %v2752 = vld [vmem:[%s7 + $0x158] sm:$0xff]
  %v2753 = vld [vmem:[%s7 + $0x160] sm:$0xff]
  %v2754 = vld [vmem:[%s7 + $0x168] sm:$0xff]
  %v2755 = vld [vmem:[%s7 + $0x170] sm:$0xff]
  %v2756 = vld [vmem:[%s7 + $0x178] sm:$0xff]
  %v2757 = vld [vmem:[%s7 + $0x180] sm:$0xff]
  %v2758 = vld [vmem:[%s7 + $0x188] sm:$0xff]
  %v2759 = vld [vmem:[%s7 + $0x190] sm:$0xff]
  %v2760 = vld [vmem:[%s7 + $0x198] sm:$0xff]
  %v2761 = vld [vmem:[%s7 + $0x1a0] sm:$0xff]
  %v2762 = vld [vmem:[%s7 + $0x1a8] sm:$0xff]
  %v2763 = vld [vmem:[%s7 + $0x1b0] sm:$0xff]
  %v2764 = vld [vmem:[%s7 + $0x1b8] sm:$0xff]
  %v2765 = vld [vmem:[%s7 + $0x1c0] sm:$0xff]
  %v2766 = vld [vmem:[%s7 + $0x1c8] sm:$0xff]
  %v2767 = vld [vmem:[%s7 + $0x1d0] sm:$0xff]
  %v2768 = vld [vmem:[%s7 + $0x1d8] sm:$0xff]
  %v2769 = vld [vmem:[%s7 + $0x1e0] sm:$0xff]
  %v2770 = vld [vmem:[%s7 + $0x1e8] sm:$0xff]
  %v2771 = vld [vmem:[%s7 + $0x1f0] sm:$0xff]
  %v2772 = vld [vmem:[%s7 + $0x1f8] sm:$0xff]
  %v2773 = vld [vmem:[%s7 + $0x200] sm:$0xff]
  %v2774 = vld [vmem:[%s7 + $0x208] sm:$0xff]
  %v2775 = vld [vmem:[%s7 + $0x210] sm:$0xff]
  %v2776 = vld [vmem:[%s7 + $0x218] sm:$0xff]
  %v2777 = vld [vmem:[%s7 + $0x220] sm:$0xff]
  %v2778 = vld [vmem:[%s7 + $0x228] sm:$0xff]
  %v2779 = vld [vmem:[%s7 + $0x230] sm:$0xff]
  %v2780 = vld [vmem:[%s7 + $0x238] sm:$0xff]
  %v2781 = vld [vmem:[%s7 + $0x240] sm:$0xff]
  %v2782 = vld [vmem:[%s7 + $0x248] sm:$0xff]
  %v2783 = vld [vmem:[%s7 + $0x250] sm:$0xff]
  %v2784 = vld [vmem:[%s7 + $0x258] sm:$0xff]
  %v2785 = vld [vmem:[%s7 + $0x260] sm:$0xff]
  %v2786 = vld [vmem:[%s7 + $0x268] sm:$0xff]
  %v2787 = vld [vmem:[%s7 + $0x270] sm:$0xff]
  %v2788 = vld [vmem:[%s7 + $0x278] sm:$0xff]
  %v2789 = vld [vmem:[%s7 + $0x280] sm:$0xff]
  %v2790 = vld [vmem:[%s7 + $0x288] sm:$0xff]
  %v2791 = vld [vmem:[%s7 + $0x290] sm:$0xff]
  %v2792 = vld [vmem:[%s7 + $0x298] sm:$0xff]
  %v2793 = vld [vmem:[%s7 + $0x2a0] sm:$0xff]
  %v2794 = vld [vmem:[%s7 + $0x2a8] sm:$0xff]
  %v2795 = vld [vmem:[%s7 + $0x2b0] sm:$0xff]
  %v2796 = vld [vmem:[%s7 + $0x2b8] sm:$0xff]
  %v2797 = vld [vmem:[%s7 + $0x2c0] sm:$0xff]
  %v2798 = vld [vmem:[%s7 + $0x2c8] sm:$0xff]
  %v2799 = vld [vmem:[%s7 + $0x2d0] sm:$0xff]
  %v2800 = vld [vmem:[%s7 + $0x2d8] sm:$0xff]
  %v2801 = vld [vmem:[%s7 + $0x2e0] sm:$0xff]
  %v2802 = vld [vmem:[%s7 + $0x2e8] sm:$0xff]
  %v2803 = vld [vmem:[%s7 + $0x2f0] sm:$0xff]
  %v2804 = vld [vmem:[%s7 + $0x2f8] sm:$0xff]
  %v2805 = vld [vmem:[%s7 + $0x300] sm:$0xff]
  %v2806 = vld [vmem:[%s7 + $0x308] sm:$0xff]
  %v2807 = vld [vmem:[%s7 + $0x310] sm:$0xff]
  %v2808 = vld [vmem:[%s7 + $0x318] sm:$0xff]
  %v2809 = vld [vmem:[%s7 + $0x320] sm:$0xff]
  %v2810 = vld [vmem:[%s7 + $0x328] sm:$0xff]
  %v2811 = vld [vmem:[%s7 + $0x330] sm:$0xff]
  %v2812 = vld [vmem:[%s7 + $0x338] sm:$0xff]
  %v2813 = vld [vmem:[%s7 + $0x340] sm:$0xff]
  %v2814 = vld [vmem:[%s7 + $0x348] sm:$0xff]
  %v2815 = vld [vmem:[%s7 + $0x350] sm:$0xff]
  %v2816 = vld [vmem:[%s7 + $0x358] sm:$0xff]
  %v2817 = vld [vmem:[%s7 + $0x360] sm:$0xff]
  %v2818 = vld [vmem:[%s7 + $0x368] sm:$0xff]
  %v2819 = vld [vmem:[%s7 + $0x370] sm:$0xff]
  %v2820 = vld [vmem:[%s7 + $0x378] sm:$0xff]
  %v2821 = vld [vmem:[%s7 + $0x380] sm:$0xff]
  %v2822 = vld [vmem:[%s7 + $0x388] sm:$0xff]
  %v2823 = vld [vmem:[%s7 + $0x390] sm:$0xff]
  %v2824 = vld [vmem:[%s7 + $0x398] sm:$0xff]
  %v2825 = vld [vmem:[%s7 + $0x3a0] sm:$0xff]
  %v2826 = vld [vmem:[%s7 + $0x3a8] sm:$0xff]
  %v2827 = vld [vmem:[%s7 + $0x3b0] sm:$0xff]
  %v2828 = vld [vmem:[%s7 + $0x3b8] sm:$0xff]
  %v2829 = vld [vmem:[%s7 + $0x3c0] sm:$0xff]
  %v2830 = vld [vmem:[%s7 + $0x3c8] sm:$0xff]
  %v2831 = vld [vmem:[%s7 + $0x3d0] sm:$0xff]
  %v2832 = vld [vmem:[%s7 + $0x3d8] sm:$0xff]
  %v2833 = vld [vmem:[%s7 + $0x3e0] sm:$0xff]
  %v2834 = vld [vmem:[%s7 + $0x3e8] sm:$0xff]
  %v2835 = vld [vmem:[%s7 + $0x3f0] sm:$0xff]
  %v2836 = vld [vmem:[%s7 + $0x3f8] sm:$0xff]
  %v2837 = vld [vmem:[%s7 + $0x400] sm:$0xff]
  %v2838 = vld [vmem:[%s7 + $0x408] sm:$0xff]
  %v2839 = vld [vmem:[%s7 + $0x410] sm:$0xff]
  %v2840 = vld [vmem:[%s7 + $0x418] sm:$0xff]
  %v2841 = vld [vmem:[%s7 + $0x420] sm:$0xff]
  %v2842 = vld [vmem:[%s7 + $0x428] sm:$0xff]
  %v2843 = vld [vmem:[%s7 + $0x430] sm:$0xff]
  %v2844 = vld [vmem:[%s7 + $0x438] sm:$0xff]
  %v2845 = vld [vmem:[%s7 + $0x440] sm:$0xff]
  %v2846 = vld [vmem:[%s7 + $0x448] sm:$0xff]
  %v2847 = vld [vmem:[%s7 + $0x450] sm:$0xff]
  %v2848 = vld [vmem:[%s7 + $0x458] sm:$0xff]
  %v2849 = vld [vmem:[%s7 + $0x460] sm:$0xff]
  %v2850 = vld [vmem:[%s7 + $0x468] sm:$0xff]
  %v2851 = vld [vmem:[%s7 + $0x470] sm:$0xff]
  %v2852 = vld [vmem:[%s7 + $0x478] sm:$0xff]
  %v2854 = vsel %vm342, %v2691, 0
  %v2857 = vsel %vm342, %v2692, 0
  %v2860 = vsel %vm342, %v2693, 0
  %v2863 = vsel %vm342, %v2694, 0
  %v2866 = vsel %vm342, %v2695, 0
  %v2869 = vsel %vm342, %v2696, 0
  %v2872 = vsel %vm342, %v2697, 0
  %v2875 = vsel %vm342, %v2698, 0
  %v2878 = vsel %vm342, %v2699, 0
  %v2881 = vsel %vm342, %v2700, 0
  %v2884 = vsel %vm342, %v2701, 0
  %v2887 = vsel %vm342, %v2702, 0
  %v2890 = vsel %vm342, %v2703, 0
  %v2893 = vsel %vm342, %v2704, 0
  %v2896 = vsel %vm342, %v2705, 0
  %v2899 = vsel %vm342, %v2706, 0
  %v2902 = vsel %vm342, %v2707, 0
  %v2905 = vsel %vm342, %v2708, 0
  %2907 = vmatprep.subr.mxu0 0.0
  %2908 = vmatpush1.msra.mxu0 %v2665
  %2909 = vmatprep.subr.mxu0 0.0
  %2910 = vmatpush1.msra.mxu0 %v2666
  %2911 = vmatprep.subr.mxu0 0.0
  %2912 = vmatpush1.msra.mxu0 %v2667
  %2913 = vmatprep.subr.mxu0 0.0
  %2914 = vmatpush1.msra.mxu0 %v2668
  %2915 = vmatprep.subr.mxu0 0.0
  %2916 = vmatpush1.msra.mxu0 %v2669
  %2917 = vmatprep.subr.mxu0 0.0
  %2918 = vmatpush1.msra.mxu0 %v2670
  %2919 = vmatprep.subr.mxu0 0.0
  %2920 = vmatpush1.msra.mxu0 %v2671
  %2921 = vmatprep.subr.mxu0 0.0
  %2922 = vmatpush1.msra.mxu0 %v2672
  %2923 = vmatprep.subr.mxu0 0.0
  %2924 = vmatpush1.msra.mxu0 0.0
  %2925 = vmatprep.subr.mxu0 0.0
  %2926 = vmatpush1.msra.mxu0 0.0
  %2927 = vmatprep.subr.mxu0 0.0
  %2928 = vmatpush1.msra.mxu0 0.0
  %2929 = vmatprep.subr.mxu0 0.0
  %2930 = vmatpush1.msra.mxu0 0.0
  %2931 = vmatprep.subr.mxu0 0.0
  %2932 = vmatpush1.msra.mxu0 0.0
  %2933 = vmatprep.subr.mxu0 0.0
  %2934 = vmatpush1.msra.mxu0 0.0
  %2935 = vmatprep.subr.mxu0 0.0
  %2936 = vmatpush1.msra.mxu0 0.0
  %2937 = vmatprep.subr.mxu0 0.0
  %2938 = vmatpush1.msra.mxu0 0.0
  %2939 = vmatprep.subr.mxu0 0.0
  %2940 = vmatpush1.msra.mxu0 0.0
  %2941 = vmatprep.subr.mxu0 0.0
  %2942 = vmatpush1.msra.mxu0 0.0
  %2943 = vmatprep.subr.mxu0 0.0
  %2944 = vmatpush1.msra.mxu0 0.0
  %2945 = vmatprep.subr.mxu0 0.0
  %2946 = vmatpush1.msra.mxu0 0.0
  %2947 = vmatprep.subr.mxu0 0.0
  %2948 = vmatpush1.msra.mxu0 0.0
  %2949 = vmatprep.subr.mxu0 0.0
  %2950 = vmatpush1.msra.mxu0 0.0
  %2951 = vmatprep.subr.mxu0 0.0
  %2952 = vmatpush1.msra.mxu0 0.0
  %2953 = vmatprep.subr.mxu0 0.0
  %2954 = vmatpush1.msra.mxu0 0.0
  %2955 = vmatprep.subr.mxu0 0.0
  %2956 = vmatpush1.msra.mxu0 0.0
  %2957 = vmatprep.subr.mxu0 0.0
  %2958 = vmatpush1.msra.mxu0 0.0
  %2959 = vmatprep.subr.mxu0 0.0
  %2960 = vmatpush1.msra.mxu0 0.0
  %2961 = vmatprep.subr.mxu0 0.0
  %2962 = vmatpush1.msra.mxu0 0.0
  %2963 = vmatprep.subr.mxu0 0.0
  %2964 = vmatpush1.msra.mxu0 0.0
  %2965 = vmatprep.subr.mxu0 0.0
  %2966 = vmatpush1.msra.mxu0 0.0
  %2967 = vmatprep.subr.mxu0 0.0
  %2968 = vmatpush1.msra.mxu0 0.0
  %2969 = vmatprep.subr.mxu0 0.0
  %2970 = vmatpush1.msra.mxu0 0.0
  %2971 = vmatprep.mubr.f32.mxu0 0.0
  %2972 = vmatmul.mubr.f32.gmra.mrb[0].mxu0 %v2854
  %v2973 = vpop.f32.mrb[0].mxu0
  %v2974 = vadd.f32 0.0, %v2973
  %v2975 = vpop.f32.mrb[0].mxu0
  %2976 = vmatprep.mubr.f32.mxu0 0.0
  %2977 = vmatmul.mubr.f32.gmra.mrb[0].mxu0 %v2857
  %v2978 = vpop.f32.mrb[0].mxu0
  %v2979 = vadd.f32 0.0, %v2978
  %v2980 = vpop.f32.mrb[0].mxu0
  %2981 = vmatprep.mubr.f32.mxu0 0.0
  %2982 = vmatmul.mubr.f32.gmra.mrb[0].mxu0 %v2860
  %v2983 = vpop.f32.mrb[0].mxu0
  %v2984 = vadd.f32 0.0, %v2983
  %v2985 = vpop.f32.mrb[0].mxu0
  %2986 = vmatprep.mubr.f32.mxu0 0.0
  %2987 = vmatmul.mubr.f32.gmra.mrb[0].mxu0 %v2863
  %v2988 = vpop.f32.mrb[0].mxu0
  %v2989 = vadd.f32 0.0, %v2988
  %v2990 = vpop.f32.mrb[0].mxu0
  %2991 = vmatprep.mubr.f32.mxu0 0.0
  %2992 = vmatmul.mubr.f32.gmra.mrb[0].mxu0 %v2866
  %v2993 = vpop.f32.mrb[0].mxu0
  %v2994 = vadd.f32 0.0, %v2993
  %v2995 = vpop.f32.mrb[0].mxu0
  %2996 = vmatprep.mubr.f32.mxu0 0.0
  %2997 = vmatmul.mubr.f32.gmra.mrb[0].mxu0 %v2869
  %v2998 = vpop.f32.mrb[0].mxu0
  %v2999 = vadd.f32 0.0, %v2998
  %v3000 = vpop.f32.mrb[0].mxu0
  %3001 = vmatprep.mubr.f32.mxu0 0.0
  %3002 = vmatmul.mubr.f32.gmra.mrb[0].mxu0 %v2872
  %v3003 = vpop.f32.mrb[0].mxu0
  %v3004 = vadd.f32 0.0, %v3003
  %v3005 = vpop.f32.mrb[0].mxu0
  %3006 = vmatprep.mubr.f32.mxu0 0.0
  %3007 = vmatmul.mubr.f32.gmra.mrb[0].mxu0 %v2875
  %v3008 = vpop.f32.mrb[0].mxu0
  %v3009 = vadd.f32 0.0, %v3008
  %v3010 = vpop.f32.mrb[0].mxu0
  %3011 = vmatprep.mubr.f32.mxu0 0.0
  %3012 = vmatmul.mubr.f32.gmra.mrb[0].mxu0 %v2878
  %v3013 = vpop.f32.mrb[0].mxu0
  %v3014 = vadd.f32 0.0, %v3013
  %v3015 = vpop.f32.mrb[0].mxu0
  %3016 = vmatprep.mubr.f32.mxu0 0.0
  %3017 = vmatmul.mubr.f32.gmra.mrb[0].mxu0 %v2881
  %v3018 = vpop.f32.mrb[0].mxu0
  %v3019 = vadd.f32 0.0, %v3018
  %v3020 = vpop.f32.mrb[0].mxu0
  %3021 = vmatprep.mubr.f32.mxu0 0.0
  %3022 = vmatmul.mubr.f32.gmra.mrb[0].mxu0 %v2884
  %v3023 = vpop.f32.mrb[0].mxu0
  %v3024 = vadd.f32 0.0, %v3023
  %v3025 = vpop.f32.mrb[0].mxu0
  %3026 = vmatprep.mubr.f32.mxu0 0.0
  %3027 = vmatmul.mubr.f32.gmra.mrb[0].mxu0 %v2887
  %v3028 = vpop.f32.mrb[0].mxu0
  %v3029 = vadd.f32 0.0, %v3028
  %v3030 = vpop.f32.mrb[0].mxu0
  %3031 = vmatprep.mubr.f32.mxu0 0.0
  %3032 = vmatmul.mubr.f32.gmra.mrb[0].mxu0 %v2890
  %v3033 = vpop.f32.mrb[0].mxu0
  %v3034 = vadd.f32 0.0, %v3033
  %v3035 = vpop.f32.mrb[0].mxu0
  %3036 = vmatprep.mubr.f32.mxu0 0.0
  %3037 = vmatmul.mubr.f32.gmra.mrb[0].mxu0 %v2893
  %v3038 = vpop.f32.mrb[0].mxu0
  %v3039 = vadd.f32 0.0, %v3038
  %v3040 = vpop.f32.mrb[0].mxu0
  %3041 = vmatprep.mubr.f32.mxu0 0.0
  %3042 = vmatmul.mubr.f32.gmra.mrb[0].mxu0 %v2896
  %v3043 = vpop.f32.mrb[0].mxu0
  %v3044 = vadd.f32 0.0, %v3043
  %v3045 = vpop.f32.mrb[0].mxu0
  %3046 = vmatprep.mubr.f32.mxu0 0.0
  %3047 = vmatmul.mubr.f32.gmra.mrb[0].mxu0 %v2899
  %v3048 = vpop.f32.mrb[0].mxu0
  %v3049 = vadd.f32 0.0, %v3048
  %v3050 = vpop.f32.mrb[0].mxu0
  %3051 = vmatprep.mubr.f32.mxu0 0.0
  %3052 = vmatmul.mubr.f32.gmra.mrb[0].mxu0 %v2902
  %v3053 = vpop.f32.mrb[0].mxu0
  %v3054 = vadd.f32 0.0, %v3053
  %v3055 = vpop.f32.mrb[0].mxu0
  %3056 = vmatprep.mubr.f32.mxu0 0.0
  %3057 = vmatmul.mubr.f32.gmra.mrb[0].mxu0 %v2905
  %v3058 = vpop.f32.mrb[0].mxu0
  %v3059 = vadd.f32 0.0, %v3058
  %v3060 = vpop.f32.mrb[0].mxu0
  %3061 = vdwg.mxu0
  %3062 = vmatprep.subr.mxu0 0.0
  %3063 = vmatpush1.msra.mxu0 %v2725
  %3064 = vmatprep.subr.mxu0 0.0
  %3065 = vmatpush1.msra.mxu0 %v2726
  %3066 = vmatprep.subr.mxu0 0.0
  %3067 = vmatpush1.msra.mxu0 %v2727
  %3068 = vmatprep.subr.mxu0 0.0
  %3069 = vmatpush1.msra.mxu0 %v2728
  %3070 = vmatprep.subr.mxu0 0.0
  %3071 = vmatpush1.msra.mxu0 %v2729
  %3072 = vmatprep.subr.mxu0 0.0
  %3073 = vmatpush1.msra.mxu0 %v2730
  %3074 = vmatprep.subr.mxu0 0.0
  %3075 = vmatpush1.msra.mxu0 %v2731
  %3076 = vmatprep.subr.mxu0 0.0
  %3077 = vmatpush1.msra.mxu0 %v2732
  %3078 = vmatprep.subr.mxu0 0.0
  %3079 = vmatpush1.msra.mxu0 %v2733
  %3080 = vmatprep.subr.mxu0 0.0
  %3081 = vmatpush1.msra.mxu0 %v2734
  %3082 = vmatprep.subr.mxu0 0.0
  %3083 = vmatpush1.msra.mxu0 %v2735
  %3084 = vmatprep.subr.mxu0 0.0
  %3085 = vmatpush1.msra.mxu0 %v2736
  %3086 = vmatprep.subr.mxu0 0.0
  %3087 = vmatpush1.msra.mxu0 %v2737
  %3088 = vmatprep.subr.mxu0 0.0
  %3089 = vmatpush1.msra.mxu0 %v2738
  %3090 = vmatprep.subr.mxu0 0.0
  %3091 = vmatpush1.msra.mxu0 %v2739
  %3092 = vmatprep.subr.mxu0 0.0
  %3093 = vmatpush1.msra.mxu0 %v2740
  %3094 = vmatprep.subr.mxu0 0.0
  %3095 = vmatpush1.msra.mxu0 0.0
  %3096 = vmatprep.subr.mxu0 0.0
  %3097 = vmatpush1.msra.mxu0 0.0
  %3098 = vmatprep.subr.mxu0 0.0
  %3099 = vmatpush1.msra.mxu0 0.0
  %3100 = vmatprep.subr.mxu0 0.0
  %3101 = vmatpush1.msra.mxu0 0.0
  %3102 = vmatprep.subr.mxu0 0.0
  %3103 = vmatpush1.msra.mxu0 0.0
  %3104 = vmatprep.subr.mxu0 0.0
  %3105 = vmatpush1.msra.mxu0 0.0
  %3106 = vmatprep.subr.mxu0 0.0
  %3107 = vmatpush1.msra.mxu0 0.0
  %3108 = vmatprep.subr.mxu0 0.0
  %3109 = vmatpush1.msra.mxu0 0.0
  %3110 = vmatprep.subr.mxu0 0.0
  %3111 = vmatpush1.msra.mxu0 0.0
  %3112 = vmatprep.subr.mxu0 0.0
  %3113 = vmatpush1.msra.mxu0 0.0
  %3114 = vmatprep.subr.mxu0 0.0
  %3115 = vmatpush1.msra.mxu0 0.0
  %3116 = vmatprep.subr.mxu0 0.0
  %3117 = vmatpush1.msra.mxu0 0.0
  %3118 = vmatprep.subr.mxu0 0.0
  %3119 = vmatpush1.msra.mxu0 0.0
  %3120 = vmatprep.subr.mxu0 0.0
  %3121 = vmatpush1.msra.mxu0 0.0
  %3122 = vmatprep.subr.mxu0 0.0
  %3123 = vmatpush1.msra.mxu0 0.0
  %3124 = vmatprep.subr.mxu0 0.0
  %3125 = vmatpush1.msra.mxu0 0.0
  %3126 = vmatprep.mubr.f32.mxu0 0.0
  %3127 = vmatmul.mubr.f32.gmra.mrb[0].mxu0 %v2984
  %v3128 = vpop.f32.mrb[0].mxu0
  %v3129 = vadd.f32 0.0, %v3128
  %v3130 = vpop.f32.mrb[0].mxu0
  %3131 = vmatprep.mubr.f32.mxu0 0.0
  %3132 = vmatmul.mubr.f32.gmra.mrb[0].mxu0 %v2989
  %v3133 = vpop.f32.mrb[0].mxu0
  %v3134 = vadd.f32 0.0, %v3133
  %v3135 = vpop.f32.mrb[0].mxu0
  %3136 = vdwg.mxu0
  %3137 = vmatprep.subr.mxu0 0.0
  %3138 = vmatpush1.msra.mxu0 %v2709
  %3139 = vmatprep.subr.mxu0 0.0
  %3140 = vmatpush1.msra.mxu0 %v2710
  %3141 = vmatprep.subr.mxu0 0.0
  %3142 = vmatpush1.msra.mxu0 %v2711
  %3143 = vmatprep.subr.mxu0 0.0
  %3144 = vmatpush1.msra.mxu0 %v2712
  %3145 = vmatprep.subr.mxu0 0.0
  %3146 = vmatpush1.msra.mxu0 %v2713
  %3147 = vmatprep.subr.mxu0 0.0
  %3148 = vmatpush1.msra.mxu0 %v2714
  %3149 = vmatprep.subr.mxu0 0.0
  %3150 = vmatpush1.msra.mxu0 %v2715
  %3151 = vmatprep.subr.mxu0 0.0
  %3152 = vmatpush1.msra.mxu0 %v2716
  %3153 = vmatprep.subr.mxu0 0.0
  %3154 = vmatpush1.msra.mxu0 %v2717
  %3155 = vmatprep.subr.mxu0 0.0
  %3156 = vmatpush1.msra.mxu0 %v2718
  %3157 = vmatprep.subr.mxu0 0.0
  %3158 = vmatpush1.msra.mxu0 %v2719
  %3159 = vmatprep.subr.mxu0 0.0
  %3160 = vmatpush1.msra.mxu0 %v2720
  %3161 = vmatprep.subr.mxu0 0.0
  %3162 = vmatpush1.msra.mxu0 %v2721
  %3163 = vmatprep.subr.mxu0 0.0
  %3164 = vmatpush1.msra.mxu0 %v2722
  %3165 = vmatprep.subr.mxu0 0.0
  %3166 = vmatpush1.msra.mxu0 %v2723
  %3167 = vmatprep.subr.mxu0 0.0
  %3168 = vmatpush1.msra.mxu0 %v2724
  %3169 = vmatprep.subr.mxu0 0.0
  %3170 = vmatpush1.msra.mxu0 0.0
  %3171 = vmatprep.subr.mxu0 0.0
  %3172 = vmatpush1.msra.mxu0 0.0
  %3173 = vmatprep.subr.mxu0 0.0
  %3174 = vmatpush1.msra.mxu0 0.0
  %3175 = vmatprep.subr.mxu0 0.0
  %3176 = vmatpush1.msra.mxu0 0.0
  %3177 = vmatprep.subr.mxu0 0.0
  %3178 = vmatpush1.msra.mxu0 0.0
  %3179 = vmatprep.subr.mxu0 0.0
  %3180 = vmatpush1.msra.mxu0 0.0
  %3181 = vmatprep.subr.mxu0 0.0
  %3182 = vmatpush1.msra.mxu0 0.0
  %3183 = vmatprep.subr.mxu0 0.0
  %3184 = vmatpush1.msra.mxu0 0.0
  %3185 = vmatprep.subr.mxu0 0.0
  %3186 = vmatpush1.msra.mxu0 0.0
  %3187 = vmatprep.subr.mxu0 0.0
  %3188 = vmatpush1.msra.mxu0 0.0
  %3189 = vmatprep.subr.mxu0 0.0
  %3190 = vmatpush1.msra.mxu0 0.0
  %3191 = vmatprep.subr.mxu0 0.0
  %3192 = vmatpush1.msra.mxu0 0.0
  %3193 = vmatprep.subr.mxu0 0.0
  %3194 = vmatpush1.msra.mxu0 0.0
  %3195 = vmatprep.subr.mxu0 0.0
  %3196 = vmatpush1.msra.mxu0 0.0
  %3197 = vmatprep.subr.mxu0 0.0
  %3198 = vmatpush1.msra.mxu0 0.0
  %3199 = vmatprep.subr.mxu0 0.0
  %3200 = vmatpush1.msra.mxu0 0.0
  %3201 = vmatprep.mubr.f32.mxu0 0.0
  %3202 = vmatmul.mubr.f32.gmra.mrb[0].mxu0 %v2974
  %v3203 = vpop.f32.mrb[0].mxu0
  %v3204 = vadd.f32 %v3129, %v3203
  %v3205 = vpop.f32.mrb[0].mxu0
  %3206 = vmatprep.mubr.f32.mxu0 0.0
  %3207 = vmatmul.mubr.f32.gmra.mrb[0].mxu0 %v2979
  %v3208 = vpop.f32.mrb[0].mxu0
  %v3209 = vadd.f32 %v3134, %v3208
  %v3210 = vpop.f32.mrb[0].mxu0
  %3211 = vdwg.mxu0
  %3212 = vmatprep.subr.mxu0 0.0
  %3213 = vmatpush1.msra.mxu0 %v2741
  %3214 = vmatprep.subr.mxu0 0.0
  %3215 = vmatpush1.msra.mxu0 %v2742
  %3216 = vmatprep.subr.mxu0 0.0
  %3217 = vmatpush1.msra.mxu0 %v2743
  %3218 = vmatprep.subr.mxu0 0.0
  %3219 = vmatpush1.msra.mxu0 %v2744
  %3220 = vmatprep.subr.mxu0 0.0
  %3221 = vmatpush1.msra.mxu0 %v2745
  %3222 = vmatprep.subr.mxu0 0.0
  %3223 = vmatpush1.msra.mxu0 %v2746
  %3224 = vmatprep.subr.mxu0 0.0
  %3225 = vmatpush1.msra.mxu0 %v2747
  %3226 = vmatprep.subr.mxu0 0.0
  %3227 = vmatpush1.msra.mxu0 %v2748
  %3228 = vmatprep.subr.mxu0 0.0
  %3229 = vmatpush1.msra.mxu0 %v2749
  %3230 = vmatprep.subr.mxu0 0.0
  %3231 = vmatpush1.msra.mxu0 %v2750
  %3232 = vmatprep.subr.mxu0 0.0
  %3233 = vmatpush1.msra.mxu0 %v2751
  %3234 = vmatprep.subr.mxu0 0.0
  %3235 = vmatpush1.msra.mxu0 %v2752
  %3236 = vmatprep.subr.mxu0 0.0
  %3237 = vmatpush1.msra.mxu0 %v2753
  %3238 = vmatprep.subr.mxu0 0.0
  %3239 = vmatpush1.msra.mxu0 %v2754
  %3240 = vmatprep.subr.mxu0 0.0
  %3241 = vmatpush1.msra.mxu0 %v2755
  %3242 = vmatprep.subr.mxu0 0.0
  %3243 = vmatpush1.msra.mxu0 %v2756
  %3244 = vmatprep.subr.mxu0 0.0
  %3245 = vmatpush1.msra.mxu0 0.0
  %3246 = vmatprep.subr.mxu0 0.0
  %3247 = vmatpush1.msra.mxu0 0.0
  %3248 = vmatprep.subr.mxu0 0.0
  %3249 = vmatpush1.msra.mxu0 0.0
  %3250 = vmatprep.subr.mxu0 0.0
  %3251 = vmatpush1.msra.mxu0 0.0
  %3252 = vmatprep.subr.mxu0 0.0
  %3253 = vmatpush1.msra.mxu0 0.0
  %3254 = vmatprep.subr.mxu0 0.0
  %3255 = vmatpush1.msra.mxu0 0.0
  %3256 = vmatprep.subr.mxu0 0.0
  %3257 = vmatpush1.msra.mxu0 0.0
  %3258 = vmatprep.subr.mxu0 0.0
  %3259 = vmatpush1.msra.mxu0 0.0
  %3260 = vmatprep.subr.mxu0 0.0
  %3261 = vmatpush1.msra.mxu0 0.0
  %3262 = vmatprep.subr.mxu0 0.0
  %3263 = vmatpush1.msra.mxu0 0.0
  %3264 = vmatprep.subr.mxu0 0.0
  %3265 = vmatpush1.msra.mxu0 0.0
  %3266 = vmatprep.subr.mxu0 0.0
  %3267 = vmatpush1.msra.mxu0 0.0
  %3268 = vmatprep.subr.mxu0 0.0
  %3269 = vmatpush1.msra.mxu0 0.0
  %3270 = vmatprep.subr.mxu0 0.0
  %3271 = vmatpush1.msra.mxu0 0.0
  %3272 = vmatprep.subr.mxu0 0.0
  %3273 = vmatpush1.msra.mxu0 0.0
  %3274 = vmatprep.subr.mxu0 0.0
  %3275 = vmatpush1.msra.mxu0 0.0
  %3276 = vmatprep.mubr.f32.mxu0 0.0
  %3277 = vmatmul.mubr.f32.gmra.mrb[0].mxu0 %v2994
  %v3278 = vpop.f32.mrb[0].mxu0
  %v3279 = vadd.f32 0.0, %v3278
  %v3280 = vpop.f32.mrb[0].mxu0
  %3281 = vmatprep.mubr.f32.mxu0 0.0
  %3282 = vmatmul.mubr.f32.gmra.mrb[0].mxu0 %v2999
  %v3283 = vpop.f32.mrb[0].mxu0
  %v3284 = vadd.f32 0.0, %v3283
  %v3285 = vpop.f32.mrb[0].mxu0
  %3286 = vdwg.mxu0
  %v3287 = vadd.f32 %v3204, %v3279
  %v3288 = vadd.f32 %v3209, %v3284
  %3289 = vmatprep.subr.mxu0 0.0
  %3290 = vmatpush1.msra.mxu0 %v2757
  %3291 = vmatprep.subr.mxu0 0.0
  %3292 = vmatpush1.msra.mxu0 %v2758
  %3293 = vmatprep.subr.mxu0 0.0
  %3294 = vmatpush1.msra.mxu0 %v2759
  %3295 = vmatprep.subr.mxu0 0.0
  %3296 = vmatpush1.msra.mxu0 %v2760
  %3297 = vmatprep.subr.mxu0 0.0
  %3298 = vmatpush1.msra.mxu0 %v2761
  %3299 = vmatprep.subr.mxu0 0.0
  %3300 = vmatpush1.msra.mxu0 %v2762
  %3301 = vmatprep.subr.mxu0 0.0
  %3302 = vmatpush1.msra.mxu0 %v2763
  %3303 = vmatprep.subr.mxu0 0.0
  %3304 = vmatpush1.msra.mxu0 %v2764
  %3305 = vmatprep.subr.mxu0 0.0
  %3306 = vmatpush1.msra.mxu0 %v2765
  %3307 = vmatprep.subr.mxu0 0.0
  %3308 = vmatpush1.msra.mxu0 %v2766
  %3309 = vmatprep.subr.mxu0 0.0
  %3310 = vmatpush1.msra.mxu0 %v2767
  %3311 = vmatprep.subr.mxu0 0.0
  %3312 = vmatpush1.msra.mxu0 %v2768
  %3313 = vmatprep.subr.mxu0 0.0
  %3314 = vmatpush1.msra.mxu0 %v2769
  %3315 = vmatprep.subr.mxu0 0.0
  %3316 = vmatpush1.msra.mxu0 %v2770
  %3317 = vmatprep.subr.mxu0 0.0
  %3318 = vmatpush1.msra.mxu0 %v2771
  %3319 = vmatprep.subr.mxu0 0.0
  %3320 = vmatpush1.msra.mxu0 %v2772
  %3321 = vmatprep.subr.mxu0 0.0
  %3322 = vmatpush1.msra.mxu0 0.0
  %3323 = vmatprep.subr.mxu0 0.0
  %3324 = vmatpush1.msra.mxu0 0.0
  %3325 = vmatprep.subr.mxu0 0.0
  %3326 = vmatpush1.msra.mxu0 0.0
  %3327 = vmatprep.subr.mxu0 0.0
  %3328 = vmatpush1.msra.mxu0 0.0
  %3329 = vmatprep.subr.mxu0 0.0
  %3330 = vmatpush1.msra.mxu0 0.0
  %3331 = vmatprep.subr.mxu0 0.0
  %3332 = vmatpush1.msra.mxu0 0.0
  %3333 = vmatprep.subr.mxu0 0.0
  %3334 = vmatpush1.msra.mxu0 0.0
  %3335 = vmatprep.subr.mxu0 0.0
  %3336 = vmatpush1.msra.mxu0 0.0
  %3337 = vmatprep.subr.mxu0 0.0
  %3338 = vmatpush1.msra.mxu0 0.0
  %3339 = vmatprep.subr.mxu0 0.0
  %3340 = vmatpush1.msra.mxu0 0.0
  %3341 = vmatprep.subr.mxu0 0.0
  %3342 = vmatpush1.msra.mxu0 0.0
  %3343 = vmatprep.subr.mxu0 0.0
  %3344 = vmatpush1.msra.mxu0 0.0
  %3345 = vmatprep.subr.mxu0 0.0
  %3346 = vmatpush1.msra.mxu0 0.0
  %3347 = vmatprep.subr.mxu0 0.0
  %3348 = vmatpush1.msra.mxu0 0.0
  %3349 = vmatprep.subr.mxu0 0.0
  %3350 = vmatpush1.msra.mxu0 0.0
  %3351 = vmatprep.subr.mxu0 0.0
  %3352 = vmatpush1.msra.mxu0 0.0
  %3353 = vmatprep.mubr.f32.mxu0 0.0
  %3354 = vmatmul.mubr.f32.gmra.mrb[0].mxu0 %v3004
  %v3355 = vpop.f32.mrb[0].mxu0
  %v3356 = vadd.f32 0.0, %v3355
  %v3357 = vpop.f32.mrb[0].mxu0
  %3358 = vmatprep.mubr.f32.mxu0 0.0
  %3359 = vmatmul.mubr.f32.gmra.mrb[0].mxu0 %v3009
  %v3360 = vpop.f32.mrb[0].mxu0
  %v3361 = vadd.f32 0.0, %v3360
  %v3362 = vpop.f32.mrb[0].mxu0
  %3363 = vdwg.mxu0
  %v3364 = vadd.f32 %v3287, %v3356
  %v3365 = vadd.f32 %v3288, %v3361
  %3366 = vmatprep.subr.mxu0 0.0
  %3367 = vmatpush1.msra.mxu0 %v2773
  %3368 = vmatprep.subr.mxu0 0.0
  %3369 = vmatpush1.msra.mxu0 %v2774
  %3370 = vmatprep.subr.mxu0 0.0
  %3371 = vmatpush1.msra.mxu0 %v2775
  %3372 = vmatprep.subr.mxu0 0.0
  %3373 = vmatpush1.msra.mxu0 %v2776
  %3374 = vmatprep.subr.mxu0 0.0
  %3375 = vmatpush1.msra.mxu0 %v2777
  %3376 = vmatprep.subr.mxu0 0.0
  %3377 = vmatpush1.msra.mxu0 %v2778
  %3378 = vmatprep.subr.mxu0 0.0
  %3379 = vmatpush1.msra.mxu0 %v2779
  %3380 = vmatprep.subr.mxu0 0.0
  %3381 = vmatpush1.msra.mxu0 %v2780
  %3382 = vmatprep.subr.mxu0 0.0
  %3383 = vmatpush1.msra.mxu0 %v2781
  %3384 = vmatprep.subr.mxu0 0.0
  %3385 = vmatpush1.msra.mxu0 %v2782
  %3386 = vmatprep.subr.mxu0 0.0
  %3387 = vmatpush1.msra.mxu0 %v2783
  %3388 = vmatprep.subr.mxu0 0.0
  %3389 = vmatpush1.msra.mxu0 %v2784
  %3390 = vmatprep.subr.mxu0 0.0
  %3391 = vmatpush1.msra.mxu0 %v2785
  %3392 = vmatprep.subr.mxu0 0.0
  %3393 = vmatpush1.msra.mxu0 %v2786
  %3394 = vmatprep.subr.mxu0 0.0
  %3395 = vmatpush1.msra.mxu0 %v2787
  %3396 = vmatprep.subr.mxu0 0.0
  %3397 = vmatpush1.msra.mxu0 %v2788
  %3398 = vmatprep.subr.mxu0 0.0
  %3399 = vmatpush1.msra.mxu0 0.0
  %3400 = vmatprep.subr.mxu0 0.0
  %3401 = vmatpush1.msra.mxu0 0.0
  %3402 = vmatprep.subr.mxu0 0.0
  %3403 = vmatpush1.msra.mxu0 0.0
  %3404 = vmatprep.subr.mxu0 0.0
  %3405 = vmatpush1.msra.mxu0 0.0
  %3406 = vmatprep.subr.mxu0 0.0
  %3407 = vmatpush1.msra.mxu0 0.0
  %3408 = vmatprep.subr.mxu0 0.0
  %3409 = vmatpush1.msra.mxu0 0.0
  %3410 = vmatprep.subr.mxu0 0.0
  %3411 = vmatpush1.msra.mxu0 0.0
  %3412 = vmatprep.subr.mxu0 0.0
  %3413 = vmatpush1.msra.mxu0 0.0
  %3414 = vmatprep.subr.mxu0 0.0
  %3415 = vmatpush1.msra.mxu0 0.0
  %3416 = vmatprep.subr.mxu0 0.0
  %3417 = vmatpush1.msra.mxu0 0.0
  %3418 = vmatprep.subr.mxu0 0.0
  %3419 = vmatpush1.msra.mxu0 0.0
  %3420 = vmatprep.subr.mxu0 0.0
  %3421 = vmatpush1.msra.mxu0 0.0
  %3422 = vmatprep.subr.mxu0 0.0
  %3423 = vmatpush1.msra.mxu0 0.0
  %3424 = vmatprep.subr.mxu0 0.0
  %3425 = vmatpush1.msra.mxu0 0.0
  %3426 = vmatprep.subr.mxu0 0.0
  %3427 = vmatpush1.msra.mxu0 0.0
  %3428 = vmatprep.subr.mxu0 0.0
  %3429 = vmatpush1.msra.mxu0 0.0
  %3430 = vmatprep.mubr.f32.mxu0 0.0
  %3431 = vmatmul.mubr.f32.gmra.mrb[0].mxu0 %v3014
  %v3432 = vpop.f32.mrb[0].mxu0
  %v3433 = vadd.f32 0.0, %v3432
  %v3434 = vpop.f32.mrb[0].mxu0
  %3435 = vmatprep.mubr.f32.mxu0 0.0
  %3436 = vmatmul.mubr.f32.gmra.mrb[0].mxu0 %v3019
  %v3437 = vpop.f32.mrb[0].mxu0
  %v3438 = vadd.f32 0.0, %v3437
  %v3439 = vpop.f32.mrb[0].mxu0
  %3440 = vdwg.mxu0
  %v3441 = vadd.f32 %v3364, %v3433
  %v3442 = vadd.f32 %v3365, %v3438
  %3443 = vmatprep.subr.mxu0 0.0
  %3444 = vmatpush1.msra.mxu0 %v2789
  %3445 = vmatprep.subr.mxu0 0.0
  %3446 = vmatpush1.msra.mxu0 %v2790
  %3447 = vmatprep.subr.mxu0 0.0
  %3448 = vmatpush1.msra.mxu0 %v2791
  %3449 = vmatprep.subr.mxu0 0.0
  %3450 = vmatpush1.msra.mxu0 %v2792
  %3451 = vmatprep.subr.mxu0 0.0
  %3452 = vmatpush1.msra.mxu0 %v2793
  %3453 = vmatprep.subr.mxu0 0.0
  %3454 = vmatpush1.msra.mxu0 %v2794
  %3455 = vmatprep.subr.mxu0 0.0
  %3456 = vmatpush1.msra.mxu0 %v2795
  %3457 = vmatprep.subr.mxu0 0.0
  %3458 = vmatpush1.msra.mxu0 %v2796
  %3459 = vmatprep.subr.mxu0 0.0
  %3460 = vmatpush1.msra.mxu0 %v2797
  %3461 = vmatprep.subr.mxu0 0.0
  %3462 = vmatpush1.msra.mxu0 %v2798
  %3463 = vmatprep.subr.mxu0 0.0
  %3464 = vmatpush1.msra.mxu0 %v2799
  %3465 = vmatprep.subr.mxu0 0.0
  %3466 = vmatpush1.msra.mxu0 %v2800
  %3467 = vmatprep.subr.mxu0 0.0
  %3468 = vmatpush1.msra.mxu0 %v2801
  %3469 = vmatprep.subr.mxu0 0.0
  %3470 = vmatpush1.msra.mxu0 %v2802
  %3471 = vmatprep.subr.mxu0 0.0
  %3472 = vmatpush1.msra.mxu0 %v2803
  %3473 = vmatprep.subr.mxu0 0.0
  %3474 = vmatpush1.msra.mxu0 %v2804
  %3475 = vmatprep.subr.mxu0 0.0
  %3476 = vmatpush1.msra.mxu0 0.0
  %3477 = vmatprep.subr.mxu0 0.0
  %3478 = vmatpush1.msra.mxu0 0.0
  %3479 = vmatprep.subr.mxu0 0.0
  %3480 = vmatpush1.msra.mxu0 0.0
  %3481 = vmatprep.subr.mxu0 0.0
  %3482 = vmatpush1.msra.mxu0 0.0
  %3483 = vmatprep.subr.mxu0 0.0
  %3484 = vmatpush1.msra.mxu0 0.0
  %3485 = vmatprep.subr.mxu0 0.0
  %3486 = vmatpush1.msra.mxu0 0.0
  %3487 = vmatprep.subr.mxu0 0.0
  %3488 = vmatpush1.msra.mxu0 0.0
  %3489 = vmatprep.subr.mxu0 0.0
  %3490 = vmatpush1.msra.mxu0 0.0
  %3491 = vmatprep.subr.mxu0 0.0
  %3492 = vmatpush1.msra.mxu0 0.0
  %3493 = vmatprep.subr.mxu0 0.0
  %3494 = vmatpush1.msra.mxu0 0.0
  %3495 = vmatprep.subr.mxu0 0.0
  %3496 = vmatpush1.msra.mxu0 0.0
  %3497 = vmatprep.subr.mxu0 0.0
  %3498 = vmatpush1.msra.mxu0 0.0
  %3499 = vmatprep.subr.mxu0 0.0
  %3500 = vmatpush1.msra.mxu0 0.0
  %3501 = vmatprep.subr.mxu0 0.0
  %3502 = vmatpush1.msra.mxu0 0.0
  %3503 = vmatprep.subr.mxu0 0.0
  %3504 = vmatpush1.msra.mxu0 0.0
  %3505 = vmatprep.subr.mxu0 0.0
  %3506 = vmatpush1.msra.mxu0 0.0
  %3507 = vmatprep.mubr.f32.mxu0 0.0
  %3508 = vmatmul.mubr.f32.gmra.mrb[0].mxu0 %v3024
  %v3509 = vpop.f32.mrb[0].mxu0
  %v3510 = vadd.f32 0.0, %v3509
  %v3511 = vpop.f32.mrb[0].mxu0
  %3512 = vmatprep.mubr.f32.mxu0 0.0
  %3513 = vmatmul.mubr.f32.gmra.mrb[0].mxu0 %v3029
  %v3514 = vpop.f32.mrb[0].mxu0
  %v3515 = vadd.f32 0.0, %v3514
  %v3516 = vpop.f32.mrb[0].mxu0
  %3517 = vdwg.mxu0
  %v3518 = vadd.f32 %v3441, %v3510
  %v3519 = vadd.f32 %v3442, %v3515
  %3520 = vmatprep.subr.mxu0 0.0
  %3521 = vmatpush1.msra.mxu0 %v2805
  %3522 = vmatprep.subr.mxu0 0.0
  %3523 = vmatpush1.msra.mxu0 %v2806
  %3524 = vmatprep.subr.mxu0 0.0
  %3525 = vmatpush1.msra.mxu0 %v2807
  %3526 = vmatprep.subr.mxu0 0.0
  %3527 = vmatpush1.msra.mxu0 %v2808
  %3528 = vmatprep.subr.mxu0 0.0
  %3529 = vmatpush1.msra.mxu0 %v2809
  %3530 = vmatprep.subr.mxu0 0.0
  %3531 = vmatpush1.msra.mxu0 %v2810
  %3532 = vmatprep.subr.mxu0 0.0
  %3533 = vmatpush1.msra.mxu0 %v2811
  %3534 = vmatprep.subr.mxu0 0.0
  %3535 = vmatpush1.msra.mxu0 %v2812
  %3536 = vmatprep.subr.mxu0 0.0
  %3537 = vmatpush1.msra.mxu0 %v2813
  %3538 = vmatprep.subr.mxu0 0.0
  %3539 = vmatpush1.msra.mxu0 %v2814
  %3540 = vmatprep.subr.mxu0 0.0
  %3541 = vmatpush1.msra.mxu0 %v2815
  %3542 = vmatprep.subr.mxu0 0.0
  %3543 = vmatpush1.msra.mxu0 %v2816
  %3544 = vmatprep.subr.mxu0 0.0
  %3545 = vmatpush1.msra.mxu0 %v2817
  %3546 = vmatprep.subr.mxu0 0.0
  %3547 = vmatpush1.msra.mxu0 %v2818
  %3548 = vmatprep.subr.mxu0 0.0
  %3549 = vmatpush1.msra.mxu0 %v2819
  %3550 = vmatprep.subr.mxu0 0.0
  %3551 = vmatpush1.msra.mxu0 %v2820
  %3552 = vmatprep.subr.mxu0 0.0
  %3553 = vmatpush1.msra.mxu0 0.0
  %3554 = vmatprep.subr.mxu0 0.0
  %3555 = vmatpush1.msra.mxu0 0.0
  %3556 = vmatprep.subr.mxu0 0.0
  %3557 = vmatpush1.msra.mxu0 0.0
  %3558 = vmatprep.subr.mxu0 0.0
  %3559 = vmatpush1.msra.mxu0 0.0
  %3560 = vmatprep.subr.mxu0 0.0
  %3561 = vmatpush1.msra.mxu0 0.0
  %3562 = vmatprep.subr.mxu0 0.0
  %3563 = vmatpush1.msra.mxu0 0.0
  %3564 = vmatprep.subr.mxu0 0.0
  %3565 = vmatpush1.msra.mxu0 0.0
  %3566 = vmatprep.subr.mxu0 0.0
  %3567 = vmatpush1.msra.mxu0 0.0
  %3568 = vmatprep.subr.mxu0 0.0
  %3569 = vmatpush1.msra.mxu0 0.0
  %3570 = vmatprep.subr.mxu0 0.0
  %3571 = vmatpush1.msra.mxu0 0.0
  %3572 = vmatprep.subr.mxu0 0.0
  %3573 = vmatpush1.msra.mxu0 0.0
  %3574 = vmatprep.subr.mxu0 0.0
  %3575 = vmatpush1.msra.mxu0 0.0
  %3576 = vmatprep.subr.mxu0 0.0
  %3577 = vmatpush1.msra.mxu0 0.0
  %3578 = vmatprep.subr.mxu0 0.0
  %3579 = vmatpush1.msra.mxu0 0.0
  %3580 = vmatprep.subr.mxu0 0.0
  %3581 = vmatpush1.msra.mxu0 0.0
  %3582 = vmatprep.subr.mxu0 0.0
  %3583 = vmatpush1.msra.mxu0 0.0
  %3584 = vmatprep.mubr.f32.mxu0 0.0
  %3585 = vmatmul.mubr.f32.gmra.mrb[0].mxu0 %v3034
  %v3586 = vpop.f32.mrb[0].mxu0
  %v3587 = vadd.f32 0.0, %v3586
  %v3588 = vpop.f32.mrb[0].mxu0
  %3589 = vmatprep.mubr.f32.mxu0 0.0
  %3590 = vmatmul.mubr.f32.gmra.mrb[0].mxu0 %v3039
  %v3591 = vpop.f32.mrb[0].mxu0
  %v3592 = vadd.f32 0.0, %v3591
  %v3593 = vpop.f32.mrb[0].mxu0
  %3594 = vdwg.mxu0
  %v3595 = vadd.f32 %v3518, %v3587
  %v3596 = vadd.f32 %v3519, %v3592
  %3597 = vmatprep.subr.mxu0 0.0
  %3598 = vmatpush1.msra.mxu0 %v2821
  %3599 = vmatprep.subr.mxu0 0.0
  %3600 = vmatpush1.msra.mxu0 %v2822
  %3601 = vmatprep.subr.mxu0 0.0
  %3602 = vmatpush1.msra.mxu0 %v2823
  %3603 = vmatprep.subr.mxu0 0.0
  %3604 = vmatpush1.msra.mxu0 %v2824
  %3605 = vmatprep.subr.mxu0 0.0
  %3606 = vmatpush1.msra.mxu0 %v2825
  %3607 = vmatprep.subr.mxu0 0.0
  %3608 = vmatpush1.msra.mxu0 %v2826
  %3609 = vmatprep.subr.mxu0 0.0
  %3610 = vmatpush1.msra.mxu0 %v2827
  %3611 = vmatprep.subr.mxu0 0.0
  %3612 = vmatpush1.msra.mxu0 %v2828
  %3613 = vmatprep.subr.mxu0 0.0
  %3614 = vmatpush1.msra.mxu0 %v2829
  %3615 = vmatprep.subr.mxu0 0.0
  %3616 = vmatpush1.msra.mxu0 %v2830
  %3617 = vmatprep.subr.mxu0 0.0
  %3618 = vmatpush1.msra.mxu0 %v2831
  %3619 = vmatprep.subr.mxu0 0.0
  %3620 = vmatpush1.msra.mxu0 %v2832
  %3621 = vmatprep.subr.mxu0 0.0
  %3622 = vmatpush1.msra.mxu0 %v2833
  %3623 = vmatprep.subr.mxu0 0.0
  %3624 = vmatpush1.msra.mxu0 %v2834
  %3625 = vmatprep.subr.mxu0 0.0
  %3626 = vmatpush1.msra.mxu0 %v2835
  %3627 = vmatprep.subr.mxu0 0.0
  %3628 = vmatpush1.msra.mxu0 %v2836
  %3629 = vmatprep.subr.mxu0 0.0
  %3630 = vmatpush1.msra.mxu0 0.0
  %3631 = vmatprep.subr.mxu0 0.0
  %3632 = vmatpush1.msra.mxu0 0.0
  %3633 = vmatprep.subr.mxu0 0.0
  %3634 = vmatpush1.msra.mxu0 0.0
  %3635 = vmatprep.subr.mxu0 0.0
  %3636 = vmatpush1.msra.mxu0 0.0
  %3637 = vmatprep.subr.mxu0 0.0
  %3638 = vmatpush1.msra.mxu0 0.0
  %3639 = vmatprep.subr.mxu0 0.0
  %3640 = vmatpush1.msra.mxu0 0.0
  %3641 = vmatprep.subr.mxu0 0.0
  %3642 = vmatpush1.msra.mxu0 0.0
  %3643 = vmatprep.subr.mxu0 0.0
  %3644 = vmatpush1.msra.mxu0 0.0
  %3645 = vmatprep.subr.mxu0 0.0
  %3646 = vmatpush1.msra.mxu0 0.0
  %3647 = vmatprep.subr.mxu0 0.0
  %3648 = vmatpush1.msra.mxu0 0.0
  %3649 = vmatprep.subr.mxu0 0.0
  %3650 = vmatpush1.msra.mxu0 0.0
  %3651 = vmatprep.subr.mxu0 0.0
  %3652 = vmatpush1.msra.mxu0 0.0
  %3653 = vmatprep.subr.mxu0 0.0
  %3654 = vmatpush1.msra.mxu0 0.0
  %3655 = vmatprep.subr.mxu0 0.0
  %3656 = vmatpush1.msra.mxu0 0.0
  %3657 = vmatprep.subr.mxu0 0.0
  %3658 = vmatpush1.msra.mxu0 0.0
  %3659 = vmatprep.subr.mxu0 0.0
  %3660 = vmatpush1.msra.mxu0 0.0
  %3661 = vmatprep.mubr.f32.mxu0 0.0
  %3662 = vmatmul.mubr.f32.gmra.mrb[0].mxu0 %v3044
  %v3663 = vpop.f32.mrb[0].mxu0
  %v3664 = vadd.f32 0.0, %v3663
  %v3665 = vpop.f32.mrb[0].mxu0
  %3666 = vmatprep.mubr.f32.mxu0 0.0
  %3667 = vmatmul.mubr.f32.gmra.mrb[0].mxu0 %v3049
  %v3668 = vpop.f32.mrb[0].mxu0
  %v3669 = vadd.f32 0.0, %v3668
  %v3670 = vpop.f32.mrb[0].mxu0
  %3671 = vdwg.mxu0
  %v3672 = vadd.f32 %v3595, %v3664
  %v3673 = vadd.f32 %v3596, %v3669
  %3674 = vmatprep.subr.mxu0 0.0
  %3675 = vmatpush1.msra.mxu0 %v2837
  %3676 = vmatprep.subr.mxu0 0.0
  %3677 = vmatpush1.msra.mxu0 %v2838
  %3678 = vmatprep.subr.mxu0 0.0
  %3679 = vmatpush1.msra.mxu0 %v2839
  %3680 = vmatprep.subr.mxu0 0.0
  %3681 = vmatpush1.msra.mxu0 %v2840
  %3682 = vmatprep.subr.mxu0 0.0
  %3683 = vmatpush1.msra.mxu0 %v2841
  %3684 = vmatprep.subr.mxu0 0.0
  %3685 = vmatpush1.msra.mxu0 %v2842
  %3686 = vmatprep.subr.mxu0 0.0
  %3687 = vmatpush1.msra.mxu0 %v2843
  %3688 = vmatprep.subr.mxu0 0.0
  %3689 = vmatpush1.msra.mxu0 %v2844
  %3690 = vmatprep.subr.mxu0 0.0
  %3691 = vmatpush1.msra.mxu0 %v2845
  %3692 = vmatprep.subr.mxu0 0.0
  %3693 = vmatpush1.msra.mxu0 %v2846
  %3694 = vmatprep.subr.mxu0 0.0
  %3695 = vmatpush1.msra.mxu0 %v2847
  %3696 = vmatprep.subr.mxu0 0.0
  %3697 = vmatpush1.msra.mxu0 %v2848
  %3698 = vmatprep.subr.mxu0 0.0
  %3699 = vmatpush1.msra.mxu0 %v2849
  %3700 = vmatprep.subr.mxu0 0.0
  %3701 = vmatpush1.msra.mxu0 %v2850
  %3702 = vmatprep.subr.mxu0 0.0
  %3703 = vmatpush1.msra.mxu0 %v2851
  %3704 = vmatprep.subr.mxu0 0.0
  %3705 = vmatpush1.msra.mxu0 %v2852
  %3706 = vmatprep.subr.mxu0 0.0
  %3707 = vmatpush1.msra.mxu0 0.0
  %3708 = vmatprep.subr.mxu0 0.0
  %3709 = vmatpush1.msra.mxu0 0.0
  %3710 = vmatprep.subr.mxu0 0.0
  %3711 = vmatpush1.msra.mxu0 0.0
  %3712 = vmatprep.subr.mxu0 0.0
  %3713 = vmatpush1.msra.mxu0 0.0
  %3714 = vmatprep.subr.mxu0 0.0
  %3715 = vmatpush1.msra.mxu0 0.0
  %3716 = vmatprep.subr.mxu0 0.0
  %3717 = vmatpush1.msra.mxu0 0.0
  %3718 = vmatprep.subr.mxu0 0.0
  %3719 = vmatpush1.msra.mxu0 0.0
  %3720 = vmatprep.subr.mxu0 0.0
  %3721 = vmatpush1.msra.mxu0 0.0
  %3722 = vmatprep.subr.mxu0 0.0
  %3723 = vmatpush1.msra.mxu0 0.0
  %3724 = vmatprep.subr.mxu0 0.0
  %3725 = vmatpush1.msra.mxu0 0.0
  %3726 = vmatprep.subr.mxu0 0.0
  %3727 = vmatpush1.msra.mxu0 0.0
  %3728 = vmatprep.subr.mxu0 0.0
  %3729 = vmatpush1.msra.mxu0 0.0
  %3730 = vmatprep.subr.mxu0 0.0
  %3731 = vmatpush1.msra.mxu0 0.0
  %3732 = vmatprep.subr.mxu0 0.0
  %3733 = vmatpush1.msra.mxu0 0.0
  %3734 = vmatprep.subr.mxu0 0.0
  %3735 = vmatpush1.msra.mxu0 0.0
  %3736 = vmatprep.subr.mxu0 0.0
  %3737 = vmatpush1.msra.mxu0 0.0
  %3738 = vmatprep.mubr.f32.mxu0 0.0
  %3739 = vmatmul.mubr.f32.gmra.mrb[0].mxu0 %v3054
  %v3740 = vpop.f32.mrb[0].mxu0
  %v3741 = vadd.f32 0.0, %v3740
  %v3742 = vpop.f32.mrb[0].mxu0
  %3743 = vmatprep.mubr.f32.mxu0 0.0
  %3744 = vmatmul.mubr.f32.gmra.mrb[0].mxu0 %v3059
  %v3745 = vpop.f32.mrb[0].mxu0
  %v3746 = vadd.f32 0.0, %v3745
  %v3747 = vpop.f32.mrb[0].mxu0
  %3748 = vdwg.mxu0
  %v3749 = vadd.f32 %v3672, %v3741
  %v3750 = vadd.f32 %v3673, %v3746
  %v3751 = vld [vmem:[%s8] sm:$0xff]
  %v3752 = vlaneseq
  %v3753 = vshrl.u32 %v3752, 7
  %v3754 = vsub.s32 0, %v3753
  %v3755 = vrot.slane %v3751, %v3754
  %v3756 = vadd.f32 %v3749, %v3755
  %v3757 = vadd.f32 %v3750, %v3755
  %v3758 = vtanh.pop %v3756
  %v3759 = vtanh.pop %v3757
  %v3760 = vadd.f32 %v3758, %v3759
  %v3761 = vrot.slane %v3760, 4
  %v3762 = vadd.f32 %v3760, %v3761
  %v3763 = vrot.slane %v3762, 2
  %v3764 = vadd.f32 %v3762, %v3763
  %v3765 = vrot.slane %v3764, 1
  %v3766 = vadd.f32 %v3764, %v3765
  %v3767 = vmul.f32 %v3758, %v3758
  %v3768 = vmul.f32 %v3759, %v3759
  %v3769 = vadd.f32 %v3767, %v3768
  %v3770 = vrot.slane %v3769, 4
  %v3771 = vadd.f32 %v3769, %v3770
  %v3772 = vrot.slane %v3771, 2
  %v3773 = vadd.f32 %v3771, %v3772
  %v3774 = vrot.slane %v3773, 1
  %v3775 = vadd.f32 %v3773, %v3774
  %3777 = vrot.lane.b32.xlu0 %v3766, 64
  %v3778 = vpop.permute.xlu0 %3777
  %v3780 = vadd.f32 %v3766, %v3778
  %3782 = vrot.lane.b32.xlu0 %v3775, 64
  %v3783 = vpop.permute.xlu0 %3782
  %v3785 = vadd.f32 %v3775, %v3783
  %v3786 = vrcp.pop 32.0
  %v3787 = vmul.f32 %v3780, %v3786
  %v3788 = vmul.f32 %v3785, %v3786
  %v3789 = vmul.f32 %v3787, %v3787
  %v3790 = vsub.f32 %v3788, %v3789
  %3792 = vrot.lane.b32.xlu0 %v3787, 64
  %v3793 = vpop.permute.xlu0 %3792
  %v3795 = vsel %vm342, %v3787, %v3793
  %3797 = vrot.lane.b32.xlu0 %v3790, 64
  %v3798 = vpop.permute.xlu0 %3797
  %v3800 = vsel %vm342, %v3790, %v3798
  %v3801 = vadd.f32 %v3800, 1e-05
  %v3802 = vrsqrt.pop %v3801
  %v3804 = vrot.slane %v3802, 7
  %v3806 = vmul.f32 %v3751, %v3804
  %v3808 = vrot.slane %v3806, 1
  %v3810 = vmul.f32 %v3795, %v3808
  %v3812 = vrot.slane %v3810, 6
  %v3814 = vsub.f32 %v3751, %v3812
  %v3815 = vlaneseq
  %v3816 = vshrl.u32 %v3815, 7
  %v3817 = vsub.s32 1, %v3816
  %v3818 = vrot.slane %v3806, %v3817
  %v3819 = vmul.f32 %v3758, %v3818
  %v3820 = vmul.f32 %v3759, %v3818
  %v3821 = vlaneseq
  %v3822 = vshrl.u32 %v3821, 7
  %v3823 = vsub.s32 2, %v3822
  %v3824 = vrot.slane %v3814, %v3823
  %v3825 = vadd.f32 %v3819, %v3824
  %v3826 = vadd.f32 %v3820, %v3824
  %3827 = vst [vmem:[%s9] sm:$0xff] %v3825
  %3828 = vst [vmem:[%s9 + $0x8] sm:$0xff] %v3826
  // Predicated region
  $region38: #{cnn_encoder_forward.1} parent=0 // pred_check
    _
  $region39: #{cnn_encoder_forward.1} parent=0 // pred_check_branch
    %3830 = sbr.rel (0) target = $region41
  $region40: #{cnn_encoder_forward.1} parent=0 // pred_region
    _
  $region41: #{cnn_encoder_forward.1} parent=0 // pred_fallthru
    _
  // Predicated region
  $region42: #{cnn_encoder_forward.1} parent=0 // pred_check
    _
  $region43: #{cnn_encoder_forward.1} parent=0 // pred_check_branch
    %3832 = sbr.rel (0) target = $region45
  $region44: #{cnn_encoder_forward.1} parent=0 // pred_region
    _
  $region45: #{cnn_encoder_forward.1} parent=0 // pred_fallthru
    _

</llo_original>
